<compile_context>
chip_gen: v6e
topology: v6e:2x2x1
jax: 0.10.0
libtpu: 0.0.40
codegen_flags: <defaults>
</compile_context>

<pallas_src>
import functools
import numpy as np
import jax
import jax.numpy as jnp
from jax.experimental import pallas as pl
from jax.experimental.pallas import tpu as pltpu


def _round_up(x, m):
    return ((int(x) + m - 1) // m) * m


# ---------------------------------------------------------------------------
# Descriptor glue (plain numpy; mirrors sgdml.utils.desc.Desc.d_desc_from_comp)
# ---------------------------------------------------------------------------
def d_desc_from_comp(R_d_desc, tril_rows, tril_cols, n_atoms):
    """(n, dim_d, 3) compressed Jacobian -> (n, dim_d, 3*n_atoms) full Jacobian."""
    R_d_desc = np.asarray(R_d_desc)
    if R_d_desc.ndim == 2:
        R_d_desc = R_d_desc[None]
    n, dim_d, _ = R_d_desc.shape
    out = np.zeros((n, dim_d, n_atoms, 3), dtype=R_d_desc.dtype)
    dr = np.arange(dim_d)
    out[:, dr, tril_rows, :] = R_d_desc
    out[:, dr, tril_cols, :] = -R_d_desc
    return out.reshape(n, dim_d, 3 * n_atoms)


# ---------------------------------------------------------------------------
# Generation-aware VMEM plan / tile choice
# ---------------------------------------------------------------------------
def _vmem_plan():
    cap = 128 * 1024 * 1024
    try:
        info = pltpu.get_tpu_info()
        cap = int(getattr(info, "vmem_capacity_bytes", cap))
    except Exception:
        pass
    if cap <= 64 * 1024 * 1024:   # v7x-class part: 64 MiB VMEM per TensorCore
        return dict(budget=18 * 2**20, vmem_limit=44 * 2**20, ti_cap=128)
    # 128 MiB parts (v5e / v6e): spend more VMEM on bigger tiles / DMA slabs.
    return dict(budget=48 * 2**20, vmem_limit=96 * 2**20, ti_cap=256)


def _choose_ti(n_train, dim_d, ia_pad, gb, p_eff, budget_bytes, cap):
    """Largest multiple-of-8 training-point tile whose estimated VMEM footprint fits."""
    per_i = 4 * (2 * dim_d                 # ri_desc (double-buffered)
                 + 2 * ia_pad * dim_d      # ri_jacT (double-buffered)
                 + 2 * ia_pad * gb         # output tile (double-buffered)
                 + p_eff * dim_d           # x_diffs
                 + 4 * p_eff               # dists / exp / ex1 / misc
                 + p_eff * gb              # tmp scratch
                 + 2 * ia_pad * p_eff      # v / u
                 + 2 * dim_d * gb          # B (flat + reshaped)
                 + ia_pad * gb)            # one live matmul result before the store
    fixed = 4 * (2 * p_eff * dim_d         # rj_desc blocks (double-buffered)
                 + 3 * p_eff * dim_d * gb)  # rj_jac blocks (dbl-buf) + in-kernel reshape copy
    ti = (budget_bytes - fixed) // max(per_i, 1)
    ti = int(max(8, min(cap, ti)) // 8 * 8)
    ti = min(ti, _round_up(n_train, 8))
    return max(ti, 8)


# ---------------------------------------------------------------------------
# Pallas kernel: one (TI x G-packed-columns) slab of kernel-matrix blocks per grid step
# ---------------------------------------------------------------------------
def _gdml_assemble_kernel(rj_desc_ref, rj_jac_ref, ri_desc_ref, ri_jacT_ref,
                          out_ref, tmp_ref, *, q, n_perms_eff):
    rj_desc = rj_desc_ref[0]          # (P, D)      packed permuted descriptors of the column group
    rj_jac = rj_jac_ref[0]            # (P, D, GB)  packed (block-diagonal) permuted Jacobians
    ri_desc = ri_desc_ref[...]        # (TI, D)     descriptors of a tile of training points
    ri_jacT = ri_jacT_ref[...]        # (TI, Ia, D) transposed full Jacobians of the tile

    ti = ri_jacT.shape[0]
    dim_d = rj_desc.shape[1]
    gb = rj_jac.shape[2]

    # Pairwise Matern-5/2 scalars, (TI, P) orientation.
    x_diffs = q * (ri_desc[:, None, :] - rj_desc[None, :, :])            # (TI, P, D)
    x_dists = jnp.sqrt(jnp.sum(x_diffs * x_diffs, axis=-1))              # (TI, P)
    exp_xs = jnp.exp(-x_dists) * (q * q / 3.0)                           # (TI, P)
    ex1 = exp_xs * (1.0 + x_dists)                                       # (TI, P)

    # tmp[i, p, b] = sum_d x_diffs[i, p, d] * rj_jac[p, d, b]   (torch '...ki,jik->...kj')
    # One 2-D MXU matmul per permutation; the (TI, D) operand is rebuilt from rj_desc[p]
    # so there is no sublane-strided extract of x_diffs.
    # TODO(synk): the per-p scratch stores are still sublane-masked; a single batched
    # einsum would need a non-leading-batch dot_general lowering.
    for p in range(n_perms_eff):
        xd_p = q * (ri_desc - rj_desc[p][None, :])                       # (TI, D) dense slab
        tmp_ref[:, p:p + 1, :] = jnp.dot(
            xd_p, rj_jac[p], preferred_element_type=jnp.float32)[:, None, :]

    # kA re-associated as (R_jacT[i] @ x_diffs[i].T) * exp_xs -> @ tmp[i]; both on the MXU,
    # the big (TI, D, GB) intermediate A is never materialized.
    v = jnp.einsum('iad,ipd->iap', ri_jacT, x_diffs,
                   preferred_element_type=jnp.float32)                   # (TI, Ia, P)
    u = v * exp_xs[:, None, :]                                           # (TI, Ia, P)
    out_ref[0] = jnp.einsum('iap,ipb->iab', u, tmp_ref[...],
                            preferred_element_type=jnp.float32)          # kA, (TI, Ia, GB)

    # B[i, d, b] = sum_p ex1[i, p] * rj_jac[p, d, b]   (torch 'ikj,...j->...ki')
    if n_perms_eff >= 4:
        # MXU: ex1 (TI, P) @ rj_jac (P, D*GB), then lane-splitting reshape back to (TI, D, GB).
        b_flat = jnp.dot(ex1, rj_jac.reshape(n_perms_eff, dim_d * gb),
                         preferred_element_type=jnp.float32)             # (TI, D*GB)
        b_mat = b_flat.reshape(ti, dim_d, gb)
    else:
        # Tiny perm counts: the unrolled broadcast-MAC is cheaper than the reshapes.
        b_mat = ex1[:, 0][:, None, None] * rj_jac[0]                     # (TI, D, GB)
        for p in range(1, n_perms_eff):
            b_mat = b_mat + ex1[:, p][:, None, None] * rj_jac[p]

    # out = kA - R_jacT @ B   (torch '...ij,...ik->...kj'); accumulate into the output tile
    # so only one (TI, Ia, GB) temporary is live at a time.
    out_ref[0] = out_ref[0] - jnp.einsum('iad,idb->iab', ri_jacT, b_mat,
                                         preferred_element_type=jnp.float32)


@functools.lru_cache(maxsize=None)
def _build_assemble(n_groups, n_train_pad, n_perms_eff, dim_d, ia_pad, gb, ti, q, vmem_limit):
    kernel = functools.partial(_gdml_assemble_kernel, q=q, n_perms_eff=n_perms_eff)
    n_outer = n_train_pad // ti
    return pl.pallas_call(
        kernel,
        out_shape=jax.ShapeDtypeStruct((n_groups, n_train_pad, ia_pad, gb), jnp.float32),
        grid_spec=pltpu.PrefetchScalarGridSpec(
            num_scalar_prefetch=0,
            # Training-point tiles on the outer (slow) axis, column groups on the inner
            # (fast) axis: the big ri_* tiles keep a constant block index across the inner
            # sweep and are NOT re-DMA'd from HBM once per column.
            grid=(n_outer, n_groups),
            in_specs=[
                pl.BlockSpec((1, n_perms_eff, dim_d), lambda it, c: (c, 0, 0)),
                pl.BlockSpec((1, n_perms_eff, dim_d, gb), lambda it, c: (c, 0, 0, 0)),
                pl.BlockSpec((ti, dim_d), lambda it, c: (it, 0)),
                pl.BlockSpec((ti, ia_pad, dim_d), lambda it, c: (it, 0, 0)),
            ],
            out_specs=pl.BlockSpec((1, ti, ia_pad, gb), lambda it, c: (c, it, 0, 0)),
            scratch_shapes=[pltpu.VMEM((ti, n_perms_eff, gb), jnp.float32)],
        ),
        compiler_params=pltpu.CompilerParams(
            dimension_semantics=("parallel", "parallel"),
            vmem_limit_bytes=int(vmem_limit)),
    )


# ---------------------------------------------------------------------------
# Module-equivalent wrapper
# ---------------------------------------------------------------------------
class GDMLAssemblePallas:
    """Pallas re-implementation of sgdml.torchtools.GDMLTorchAssemble (j < n_train path)."""

    def __init__(self, J, tril_perms_lin, sig, use_E_cstr, R_desc, R_d_desc, out, ti=None):
        # TODO(synk): use_E_cstr (energy-constraint rows, j >= n_train branch) not implemented.
        assert not use_E_cstr
        R_d_desc = np.asarray(R_d_desc)
        self.n_train, self.dim_d = R_d_desc.shape[:2]
        self.n_atoms = int((1 + np.sqrt(8 * self.dim_d + 1)) / 2)
        self.dim_i = 3 * self.n_atoms
        self.sig = float(sig)
        self.tril_perms_lin = np.asarray(tril_perms_lin)
        self.n_perms = len(self.tril_perms_lin) // self.dim_d
        self.J = list(J)
        self.out = out

        self.R_desc = np.asarray(R_desc, dtype=np.float32)
        rows, cols = np.tril_indices(self.n_atoms, -1)
        self.R_d_desc_full = d_desc_from_comp(
            R_d_desc.astype(np.float32), rows, cols, self.n_atoms)        # (n, D, I)

        # --- pack G columns per grid step along the 128-lane axis --------------------
        g_lane = max(1, 128 // self.dim_i) if self.dim_i <= 128 else 1
        g_perm = max(1, 32 // self.n_perms)        # keep the unrolled perm loop bounded
        self.G = max(1, min(g_lane, g_perm))
        self.gb = _round_up(self.G * self.dim_i, 128)   # lane-dense packed block width
        self.p_eff = self.G * self.n_perms              # effective perm count per group
        self.ia_pad = _round_up(self.dim_i, 8)          # sublane-padded row-block width

        # --- generation-aware tiling --------------------------------------------------
        plan = _vmem_plan()
        self.vmem_limit = plan["vmem_limit"]
        self.ti = ti if ti is not None else _choose_ti(
            self.n_train, self.dim_d, self.ia_pad, self.gb, self.p_eff,
            plan["budget"], plan["ti_cap"])
        n_outer = -(-self.n_train // self.ti)
        if n_outer > 1 and n_outer % 2 == 1:
            n_outer += 1   # keep the leading parallel axis even for the 2-TC v7x split
        self.n_train_pad = n_outer * self.ti

        # Device-resident, padded training-point tensors (uploaded once, reused by forward()).
        R_desc_pad = np.zeros((self.n_train_pad, self.dim_d), np.float32)
        R_desc_pad[: self.n_train] = self.R_desc
        R_d_fullT_pad = np.zeros((self.n_train_pad, self.ia_pad, self.dim_d), np.float32)
        R_d_fullT_pad[: self.n_train, : self.dim_i] = np.transpose(self.R_d_desc_full, (0, 2, 1))
        self.R_desc_dev = jnp.asarray(R_desc_pad)
        self.R_d_fullT_dev = jnp.asarray(R_d_fullT_pad)

    def _packed_column_blocks(self, col_idxs):
        """Vectorized permutation expansion + lane-packing of the requested column points."""
        cols = np.asarray(col_idxs)
        n_cols = len(cols)
        P, D, I, G = self.n_perms, self.dim_d, self.dim_i, self.G
        n_groups = -(-n_cols // G)
        n_cols_pad = n_groups * G

        tiled = np.tile(self.R_desc[cols], (1, P))[:, self.tril_perms_lin]       # (C, P*D)
        rj_desc_perms = tiled.reshape(n_cols, D, P).transpose(0, 2, 1)            # (C, P, D)
        jacsT = self.R_d_desc_full[cols].transpose(0, 2, 1)                       # (C, I, D)
        tiled_j = np.tile(jacsT, (1, 1, P))[:, :, self.tril_perms_lin]            # (C, I, P*D)
        rj_jac_perms = tiled_j.reshape(n_cols, I, D, P).transpose(0, 3, 2, 1)     # (C, P, D, I)

        desc_pad = np.zeros((n_cols_pad, P, D), np.float32)
        desc_pad[:n_cols] = rj_desc_perms
        jac_pad = np.zeros((n_cols_pad, P, D, I), np.float32)
        jac_pad[:n_cols] = rj_jac_perms

        rj_desc_grp = desc_pad.reshape(n_groups, G * P, D)
        rj_jac_grp = np.zeros((n_groups, G * P, D, self.gb), np.float32)
        jac5 = jac_pad.reshape(n_groups, G, P, D, I)
        for g in range(G):   # block-diagonal lane placement of the G packed columns
            rj_jac_grp[:, g * P:(g + 1) * P, :, g * I:(g + 1) * I] = jac5[:, g]
        return np.ascontiguousarray(rj_desc_grp), rj_jac_grp, n_groups

    def forward(self, J_indx):
        col_idxs = [self.J[i] for i in J_indx]
        n_cols = len(col_idxs)
        rj_desc_grp, rj_jac_grp, n_groups = self._packed_column_blocks(col_idxs)

        q = float(np.sqrt(5.0) / self.sig)
        fn = _build_assemble(n_groups, self.n_train_pad, self.p_eff, self.dim_d,
                             self.ia_pad, self.gb, self.ti, q, self.vmem_limit)
        blocks = fn(jnp.asarray(rj_desc_grp), jnp.asarray(rj_jac_grp),
                    self.R_desc_dev, self.R_d_fullT_dev)

        # Un-pad / un-pack on device so only real data crosses the host link.
        I, G = self.dim_i, self.G
        trimmed = blocks[:, : self.n_train, : I, : G * I]
        trimmed = trimmed.reshape(n_groups, self.n_train, I, G, I)
        trimmed = jnp.transpose(trimmed, (0, 3, 1, 2, 4))
        trimmed = trimmed.reshape(n_groups * G, self.n_train * I, I)[:n_cols]
        trimmed = jax.block_until_ready(trimmed)

        # Single vectorized scatter into the (numpy) output matrix.
        blocks_np = np.asarray(trimmed)                                     # (C, n_train*I, I)
        rows = self.n_train * I
        lane_cols = (np.asarray(col_idxs)[:, None] * I + np.arange(I)[None, :]).ravel()
        self.out[:rows, lane_cols] = blocks_np.transpose(1, 0, 2).reshape(rows, -1)
        return trimmed


# ---------------------------------------------------------------------------
# Pure-numpy float64 reference (mirrors the torch einsums exactly)
# ---------------------------------------------------------------------------
def _reference_column(j, R_desc, R_d_desc_full, tril_perms_lin, sig, dim_d, dim_i, n_perms):
    q = np.sqrt(5.0) / sig
    R_desc = R_desc.astype(np.float64)
    R_d_desc_full = R_d_desc_full.astype(np.float64)
    rj_jac = R_d_desc_full[j]                                                       # (D, I)
    rj_desc_perms = np.tile(R_desc[j], n_perms)[tril_perms_lin].reshape(-1, n_perms).T
    rj_d_desc_perms = np.tile(rj_jac.T, n_perms)[:, tril_perms_lin].reshape(-1, dim_d, n_perms)
    x_diffs = q * (R_desc[:, None, :] - rj_desc_perms[None, :, :])                  # (n, P, D)
    x_dists = np.linalg.norm(x_diffs, axis=-1)                                      # (n, P)
    exp_xs = np.exp(-x_dists) * q ** 2 / 3.0
    ex1 = exp_xs * (1.0 + x_dists)
    tmp = np.einsum('npd,idp->npi', x_diffs, rj_d_desc_perms)
    dab = np.einsum('npd,npi->ndi', x_diffs * exp_xs[:, :, None], tmp)
    dab -= np.einsum('idp,np->ndi', rj_d_desc_perms, ex1)
    k = np.einsum('ndi,nda->nai', dab, R_d_desc_full)                               # (n, I, I)
    return k.reshape(-1, dim_i)


# ---------------------------------------------------------------------------
if __name__ == "__main__":
    n_atoms, n_train, n_perms, sig = 5, 8, 2, 10.0
    dim_d = n_atoms * (n_atoms - 1) // 2   # 10
    dim_i = 3 * n_atoms                    # 15

    key = jax.random.PRNGKey(0)
    k1, k2 = jax.random.split(key)
    R_desc = np.asarray(jax.random.normal(k1, (n_train, dim_d))).astype(np.float64) * 0.5 + 1.0
    R_d_desc = np.asarray(jax.random.normal(k2, (n_train, dim_d, 3))).astype(np.float64)

    # tril_perms_lin (sGDML flatten('F') convention): identity + atom-reversal permutation.
    rows, cols = np.tril_indices(n_atoms, -1)
    pair_to_idx = np.zeros((n_atoms, n_atoms), dtype=np.int64)
    pair_to_idx[rows, cols] = np.arange(dim_d)
    pair_to_idx[cols, rows] = pair_to_idx[rows, cols]
    atom_perms = [np.arange(n_atoms), np.arange(n_atoms)[::-1]]
    tril_perms = np.stack([pair_to_idx[p[rows], p[cols]] for p in atom_perms])      # (P, D)
    tril_perms_lin = (tril_perms + np.arange(n_perms)[:, None] * dim_d).flatten('F')

    J = list(range(n_train))
    out = np.zeros((n_train * dim_i, n_train * dim_i), dtype=np.float32)

    model = GDMLAssemblePallas(J, tril_perms_lin, sig, False, R_desc, R_d_desc, out)
    blocks = model.forward(list(range(len(J))))
    jax.block_until_ready(blocks)

    # Correctness check against float64 numpy reference of the torch math.
    R_d_desc_full64 = d_desc_from_comp(R_d_desc, rows, cols, n_atoms)
    ref = np.zeros_like(out, dtype=np.float64)
    for j in J:
        ref[:, j * dim_i:(j + 1) * dim_i] = _reference_column(
            j, R_desc, R_d_desc_full64, tril_perms_lin, sig, dim_d, dim_i, n_perms)
    np.testing.assert_allclose(out, ref, rtol=5e-3, atol=2e-4)

    print("KERNEL_OK")
</pallas_src>

<mosaic_0001>
module attributes {stable_mosaic.version = 11 : i64} {
  func.func @_gdml_assemble_kernel(%arg0: i32, %arg1: i32, %arg2: memref<1x16x10xf32, #tpu.memory_space<vmem>>, %arg3: memref<1x16x10x128xf32, #tpu.memory_space<vmem>>, %arg4: memref<8x10xf32, #tpu.memory_space<vmem>>, %arg5: memref<8x16x10xf32, #tpu.memory_space<vmem>>, %arg6: memref<1x8x16x128xf32, #tpu.memory_space<vmem>>, %arg7: memref<8x16x128xf32, #tpu.memory_space<vmem>>) attributes {dimension_semantics = [#tpu.dimension_semantics<parallel>, #tpu.dimension_semantics<parallel>], iteration_bounds = array<i64: 1, 1>, scalar_prefetch = 0 : i64, scratch_operands = 1 : i64, tpu.core_type = #tpu.core_type<tc>, window_params = [{transform_indices = @transform_0, window_bounds = array<i64: 1, 16, 10>}, {transform_indices = @transform_1, window_bounds = array<i64: 1, 16, 10, 128>}, {transform_indices = @transform_2, window_bounds = array<i64: 8, 10>}, {transform_indices = @transform_3, window_bounds = array<i64: 8, 16, 10>}, {transform_indices = @transform_4, window_bounds = array<i64: 1, 8, 16, 128>}]} {
    %c0 = arith.constant 0 : index
    %c0_0 = arith.constant 0 : index
    %c0_1 = arith.constant 0 : index
    %0 = vector.load %arg2[%c0, %c0_0, %c0_1] : memref<1x16x10xf32, #tpu.memory_space<vmem>>, vector<1x16x10xf32>
    %1 = vector.shape_cast %0 : vector<1x16x10xf32> to vector<16x10xf32>
    %c0_2 = arith.constant 0 : index
    %c0_3 = arith.constant 0 : index
    %c0_4 = arith.constant 0 : index
    %c0_5 = arith.constant 0 : index
    %2 = vector.load %arg3[%c0_2, %c0_3, %c0_4, %c0_5] : memref<1x16x10x128xf32, #tpu.memory_space<vmem>>, vector<1x16x10x128xf32>
    %3 = vector.shape_cast %2 : vector<1x16x10x128xf32> to vector<16x10x128xf32>
    %c0_6 = arith.constant 0 : index
    %c0_7 = arith.constant 0 : index
    %4 = vector.load %arg4[%c0_6, %c0_7] : memref<8x10xf32, #tpu.memory_space<vmem>>, vector<8x10xf32>
    %c0_8 = arith.constant 0 : index
    %c0_9 = arith.constant 0 : index
    %c0_10 = arith.constant 0 : index
    %5 = vector.load %arg5[%c0_8, %c0_9, %c0_10] : memref<8x16x10xf32, #tpu.memory_space<vmem>>, vector<8x16x10xf32>
    %6 = vector.shape_cast %4 : vector<8x10xf32> to vector<8x1x10xf32>
    %7 = vector.shape_cast %1 : vector<16x10xf32> to vector<1x16x10xf32>
    %8 = vector.broadcast %6 : vector<8x1x10xf32> to vector<8x16x10xf32>
    %9 = vector.broadcast %7 : vector<1x16x10xf32> to vector<8x16x10xf32>
    %10 = arith.subf %8, %9 : vector<8x16x10xf32>
    %cst = arith.constant 0.223606795 : f32
    %11 = vector.broadcast %cst : f32 to vector<8x16x10xf32>
    %12 = arith.mulf %11, %10 : vector<8x16x10xf32>
    %13 = arith.mulf %12, %12 : vector<8x16x10xf32>
    %cst_11 = arith.constant dense<0.000000e+00> : vector<8x16xf32>
    %14 = vector.multi_reduction <add>, %13, %cst_11 [2] : vector<8x16x10xf32> to vector<8x16xf32>
    %15 = math.sqrt %14 : vector<8x16xf32>
    %cst_12 = arith.constant 0.000000e+00 : f32
    %16 = vector.broadcast %cst_12 : f32 to vector<8x16xf32>
    %17 = arith.subf %16, %15 : vector<8x16xf32>
    %18 = math.exp %17 : vector<8x16xf32>
    %cst_13 = arith.constant 0.0166666675 : f32
    %19 = vector.broadcast %cst_13 : f32 to vector<8x16xf32>
    %20 = arith.mulf %18, %19 : vector<8x16xf32>
    %cst_14 = arith.constant 1.000000e+00 : f32
    %21 = vector.broadcast %cst_14 : f32 to vector<8x16xf32>
    %22 = arith.addf %21, %15 : vector<8x16xf32>
    %23 = arith.mulf %20, %22 : vector<8x16xf32>
    %24 = vector.extract_strided_slice %1 {offsets = [0, 0], sizes = [1, 10], strides = [1, 1]} : vector<16x10xf32> to vector<1x10xf32>
    %25 = vector.shape_cast %24 : vector<1x10xf32> to vector<10xf32>
    %26 = vector.shape_cast %25 : vector<10xf32> to vector<1x10xf32>
    %27 = vector.broadcast %26 : vector<1x10xf32> to vector<8x10xf32>
    %28 = arith.subf %4, %27 : vector<8x10xf32>
    %cst_15 = arith.constant 0.223606795 : f32
    %29 = vector.broadcast %cst_15 : f32 to vector<8x10xf32>
    %30 = arith.mulf %29, %28 : vector<8x10xf32>
    %31 = vector.extract_strided_slice %3 {offsets = [0, 0, 0], sizes = [1, 10, 128], strides = [1, 1, 1]} : vector<16x10x128xf32> to vector<1x10x128xf32>
    %32 = vector.shape_cast %31 : vector<1x10x128xf32> to vector<10x128xf32>
    %cst_16 = arith.constant dense<0.000000e+00> : vector<8x128xf32>
    %33 = tpu.matmul %30, %32, %cst_16 {dimension_numbers = #tpu.dot_dimension_numbers<[1], [0], [0], [1], [0, 0, 1, 1], [], []>} : vector<8x10xf32>, vector<10x128xf32>, vector<8x128xf32> -> vector<8x128xf32>
    %34 = vector.shape_cast %33 : vector<8x128xf32> to vector<8x1x128xf32>
    %c0_17 = arith.constant 0 : index
    %c0_18 = arith.constant 0 : index
    %c0_19 = arith.constant 0 : index
    %35 = vector.load %arg7[%c0_17, %c0_18, %c0_19] : memref<8x16x128xf32, #tpu.memory_space<vmem>>, vector<8x1x128xf32>
    tpu.vector_store %arg7[%c0_17, %c0_18, %c0_19], %34 {strides = array<i32>} : memref<8x16x128xf32, #tpu.memory_space<vmem>>, vector<8x1x128xf32>,
    %36 = vector.extract_strided_slice %1 {offsets = [1, 0], sizes = [1, 10], strides = [1, 1]} : vector<16x10xf32> to vector<1x10xf32>
    %37 = vector.shape_cast %36 : vector<1x10xf32> to vector<10xf32>
    %38 = vector.shape_cast %37 : vector<10xf32> to vector<1x10xf32>
    %39 = vector.broadcast %38 : vector<1x10xf32> to vector<8x10xf32>
    %40 = arith.subf %4, %39 : vector<8x10xf32>
    %cst_20 = arith.constant 0.223606795 : f32
    %41 = vector.broadcast %cst_20 : f32 to vector<8x10xf32>
    %42 = arith.mulf %41, %40 : vector<8x10xf32>
    %43 = vector.extract_strided_slice %3 {offsets = [1, 0, 0], sizes = [1, 10, 128], strides = [1, 1, 1]} : vector<16x10x128xf32> to vector<1x10x128xf32>
    %44 = vector.shape_cast %43 : vector<1x10x128xf32> to vector<10x128xf32>
    %cst_21 = arith.constant dense<0.000000e+00> : vector<8x128xf32>
    %45 = tpu.matmul %42, %44, %cst_21 {dimension_numbers = #tpu.dot_dimension_numbers<[1], [0], [0], [1], [0, 0, 1, 1], [], []>} : vector<8x10xf32>, vector<10x128xf32>, vector<8x128xf32> -> vector<8x128xf32>
    %46 = vector.shape_cast %45 : vector<8x128xf32> to vector<8x1x128xf32>
    %c0_22 = arith.constant 0 : index
    %c1 = arith.constant 1 : index
    %c0_23 = arith.constant 0 : index
    %47 = vector.load %arg7[%c0_22, %c1, %c0_23] : memref<8x16x128xf32, #tpu.memory_space<vmem>>, vector<8x1x128xf32>
    tpu.vector_store %arg7[%c0_22, %c1, %c0_23], %46 {strides = array<i32>} : memref<8x16x128xf32, #tpu.memory_space<vmem>>, vector<8x1x128xf32>,
    %48 = vector.extract_strided_slice %1 {offsets = [2, 0], sizes = [1, 10], strides = [1, 1]} : vector<16x10xf32> to vector<1x10xf32>
    %49 = vector.shape_cast %48 : vector<1x10xf32> to vector<10xf32>
    %50 = vector.shape_cast %49 : vector<10xf32> to vector<1x10xf32>
    %51 = vector.broadcast %50 : vector<1x10xf32> to vector<8x10xf32>
    %52 = arith.subf %4, %51 : vector<8x10xf32>
    %cst_24 = arith.constant 0.223606795 : f32
    %53 = vector.broadcast %cst_24 : f32 to vector<8x10xf32>
    %54 = arith.mulf %53, %52 : vector<8x10xf32>
    %55 = vector.extract_strided_slice %3 {offsets = [2, 0, 0], sizes = [1, 10, 128], strides = [1, 1, 1]} : vector<16x10x128xf32> to vector<1x10x128xf32>
    %56 = vector.shape_cast %55 : vector<1x10x128xf32> to vector<10x128xf32>
    %cst_25 = arith.constant dense<0.000000e+00> : vector<8x128xf32>
    %57 = tpu.matmul %54, %56, %cst_25 {dimension_numbers = #tpu.dot_dimension_numbers<[1], [0], [0], [1], [0, 0, 1, 1], [], []>} : vector<8x10xf32>, vector<10x128xf32>, vector<8x128xf32> -> vector<8x128xf32>
    %58 = vector.shape_cast %57 : vector<8x128xf32> to vector<8x1x128xf32>
    %c0_26 = arith.constant 0 : index
    %c2 = arith.constant 2 : index
    %c0_27 = arith.constant 0 : index
    %59 = vector.load %arg7[%c0_26, %c2, %c0_27] : memref<8x16x128xf32, #tpu.memory_space<vmem>>, vector<8x1x128xf32>
    tpu.vector_store %arg7[%c0_26, %c2, %c0_27], %58 {strides = array<i32>} : memref<8x16x128xf32, #tpu.memory_space<vmem>>, vector<8x1x128xf32>,
    %60 = vector.extract_strided_slice %1 {offsets = [3, 0], sizes = [1, 10], strides = [1, 1]} : vector<16x10xf32> to vector<1x10xf32>
    %61 = vector.shape_cast %60 : vector<1x10xf32> to vector<10xf32>
    %62 = vector.shape_cast %61 : vector<10xf32> to vector<1x10xf32>
    %63 = vector.broadcast %62 : vector<1x10xf32> to vector<8x10xf32>
    %64 = arith.subf %4, %63 : vector<8x10xf32>
    %cst_28 = arith.constant 0.223606795 : f32
    %65 = vector.broadcast %cst_28 : f32 to vector<8x10xf32>
    %66 = arith.mulf %65, %64 : vector<8x10xf32>
    %67 = vector.extract_strided_slice %3 {offsets = [3, 0, 0], sizes = [1, 10, 128], strides = [1, 1, 1]} : vector<16x10x128xf32> to vector<1x10x128xf32>
    %68 = vector.shape_cast %67 : vector<1x10x128xf32> to vector<10x128xf32>
    %cst_29 = arith.constant dense<0.000000e+00> : vector<8x128xf32>
    %69 = tpu.matmul %66, %68, %cst_29 {dimension_numbers = #tpu.dot_dimension_numbers<[1], [0], [0], [1], [0, 0, 1, 1], [], []>} : vector<8x10xf32>, vector<10x128xf32>, vector<8x128xf32> -> vector<8x128xf32>
    %70 = vector.shape_cast %69 : vector<8x128xf32> to vector<8x1x128xf32>
    %c0_30 = arith.constant 0 : index
    %c3 = arith.constant 3 : index
    %c0_31 = arith.constant 0 : index
    %71 = vector.load %arg7[%c0_30, %c3, %c0_31] : memref<8x16x128xf32, #tpu.memory_space<vmem>>, vector<8x1x128xf32>
    tpu.vector_store %arg7[%c0_30, %c3, %c0_31], %70 {strides = array<i32>} : memref<8x16x128xf32, #tpu.memory_space<vmem>>, vector<8x1x128xf32>,
    %72 = vector.extract_strided_slice %1 {offsets = [4, 0], sizes = [1, 10], strides = [1, 1]} : vector<16x10xf32> to vector<1x10xf32>
    %73 = vector.shape_cast %72 : vector<1x10xf32> to vector<10xf32>
    %74 = vector.shape_cast %73 : vector<10xf32> to vector<1x10xf32>
    %75 = vector.broadcast %74 : vector<1x10xf32> to vector<8x10xf32>
    %76 = arith.subf %4, %75 : vector<8x10xf32>
    %cst_32 = arith.constant 0.223606795 : f32
    %77 = vector.broadcast %cst_32 : f32 to vector<8x10xf32>
    %78 = arith.mulf %77, %76 : vector<8x10xf32>
    %79 = vector.extract_strided_slice %3 {offsets = [4, 0, 0], sizes = [1, 10, 128], strides = [1, 1, 1]} : vector<16x10x128xf32> to vector<1x10x128xf32>
    %80 = vector.shape_cast %79 : vector<1x10x128xf32> to vector<10x128xf32>
    %cst_33 = arith.constant dense<0.000000e+00> : vector<8x128xf32>
    %81 = tpu.matmul %78, %80, %cst_33 {dimension_numbers = #tpu.dot_dimension_numbers<[1], [0], [0], [1], [0, 0, 1, 1], [], []>} : vector<8x10xf32>, vector<10x128xf32>, vector<8x128xf32> -> vector<8x128xf32>
    %82 = vector.shape_cast %81 : vector<8x128xf32> to vector<8x1x128xf32>
    %c0_34 = arith.constant 0 : index
    %c4 = arith.constant 4 : index
    %c0_35 = arith.constant 0 : index
    %83 = vector.load %arg7[%c0_34, %c4, %c0_35] : memref<8x16x128xf32, #tpu.memory_space<vmem>>, vector<8x1x128xf32>
    tpu.vector_store %arg7[%c0_34, %c4, %c0_35], %82 {strides = array<i32>} : memref<8x16x128xf32, #tpu.memory_space<vmem>>, vector<8x1x128xf32>,
    %84 = vector.extract_strided_slice %1 {offsets = [5, 0], sizes = [1, 10], strides = [1, 1]} : vector<16x10xf32> to vector<1x10xf32>
    %85 = vector.shape_cast %84 : vector<1x10xf32> to vector<10xf32>
    %86 = vector.shape_cast %85 : vector<10xf32> to vector<1x10xf32>
    %87 = vector.broadcast %86 : vector<1x10xf32> to vector<8x10xf32>
    %88 = arith.subf %4, %87 : vector<8x10xf32>
    %cst_36 = arith.constant 0.223606795 : f32
    %89 = vector.broadcast %cst_36 : f32 to vector<8x10xf32>
    %90 = arith.mulf %89, %88 : vector<8x10xf32>
    %91 = vector.extract_strided_slice %3 {offsets = [5, 0, 0], sizes = [1, 10, 128], strides = [1, 1, 1]} : vector<16x10x128xf32> to vector<1x10x128xf32>
    %92 = vector.shape_cast %91 : vector<1x10x128xf32> to vector<10x128xf32>
    %cst_37 = arith.constant dense<0.000000e+00> : vector<8x128xf32>
    %93 = tpu.matmul %90, %92, %cst_37 {dimension_numbers = #tpu.dot_dimension_numbers<[1], [0], [0], [1], [0, 0, 1, 1], [], []>} : vector<8x10xf32>, vector<10x128xf32>, vector<8x128xf32> -> vector<8x128xf32>
    %94 = vector.shape_cast %93 : vector<8x128xf32> to vector<8x1x128xf32>
    %c0_38 = arith.constant 0 : index
    %c5 = arith.constant 5 : index
    %c0_39 = arith.constant 0 : index
    %95 = vector.load %arg7[%c0_38, %c5, %c0_39] : memref<8x16x128xf32, #tpu.memory_space<vmem>>, vector<8x1x128xf32>
    tpu.vector_store %arg7[%c0_38, %c5, %c0_39], %94 {strides = array<i32>} : memref<8x16x128xf32, #tpu.memory_space<vmem>>, vector<8x1x128xf32>,
    %96 = vector.extract_strided_slice %1 {offsets = [6, 0], sizes = [1, 10], strides = [1, 1]} : vector<16x10xf32> to vector<1x10xf32>
    %97 = vector.shape_cast %96 : vector<1x10xf32> to vector<10xf32>
    %98 = vector.shape_cast %97 : vector<10xf32> to vector<1x10xf32>
    %99 = vector.broadcast %98 : vector<1x10xf32> to vector<8x10xf32>
    %100 = arith.subf %4, %99 : vector<8x10xf32>
    %cst_40 = arith.constant 0.223606795 : f32
    %101 = vector.broadcast %cst_40 : f32 to vector<8x10xf32>
    %102 = arith.mulf %101, %100 : vector<8x10xf32>
    %103 = vector.extract_strided_slice %3 {offsets = [6, 0, 0], sizes = [1, 10, 128], strides = [1, 1, 1]} : vector<16x10x128xf32> to vector<1x10x128xf32>
    %104 = vector.shape_cast %103 : vector<1x10x128xf32> to vector<10x128xf32>
    %cst_41 = arith.constant dense<0.000000e+00> : vector<8x128xf32>
    %105 = tpu.matmul %102, %104, %cst_41 {dimension_numbers = #tpu.dot_dimension_numbers<[1], [0], [0], [1], [0, 0, 1, 1], [], []>} : vector<8x10xf32>, vector<10x128xf32>, vector<8x128xf32> -> vector<8x128xf32>
    %106 = vector.shape_cast %105 : vector<8x128xf32> to vector<8x1x128xf32>
    %c0_42 = arith.constant 0 : index
    %c6 = arith.constant 6 : index
    %c0_43 = arith.constant 0 : index
    %107 = vector.load %arg7[%c0_42, %c6, %c0_43] : memref<8x16x128xf32, #tpu.memory_space<vmem>>, vector<8x1x128xf32>
    tpu.vector_store %arg7[%c0_42, %c6, %c0_43], %106 {strides = array<i32>} : memref<8x16x128xf32, #tpu.memory_space<vmem>>, vector<8x1x128xf32>,
    %108 = vector.extract_strided_slice %1 {offsets = [7, 0], sizes = [1, 10], strides = [1, 1]} : vector<16x10xf32> to vector<1x10xf32>
    %109 = vector.shape_cast %108 : vector<1x10xf32> to vector<10xf32>
    %110 = vector.shape_cast %109 : vector<10xf32> to vector<1x10xf32>
    %111 = vector.broadcast %110 : vector<1x10xf32> to vector<8x10xf32>
    %112 = arith.subf %4, %111 : vector<8x10xf32>
    %cst_44 = arith.constant 0.223606795 : f32
    %113 = vector.broadcast %cst_44 : f32 to vector<8x10xf32>
    %114 = arith.mulf %113, %112 : vector<8x10xf32>
    %115 = vector.extract_strided_slice %3 {offsets = [7, 0, 0], sizes = [1, 10, 128], strides = [1, 1, 1]} : vector<16x10x128xf32> to vector<1x10x128xf32>
    %116 = vector.shape_cast %115 : vector<1x10x128xf32> to vector<10x128xf32>
    %cst_45 = arith.constant dense<0.000000e+00> : vector<8x128xf32>
    %117 = tpu.matmul %114, %116, %cst_45 {dimension_numbers = #tpu.dot_dimension_numbers<[1], [0], [0], [1], [0, 0, 1, 1], [], []>} : vector<8x10xf32>, vector<10x128xf32>, vector<8x128xf32> -> vector<8x128xf32>
    %118 = vector.shape_cast %117 : vector<8x128xf32> to vector<8x1x128xf32>
    %c0_46 = arith.constant 0 : index
    %c7 = arith.constant 7 : index
    %c0_47 = arith.constant 0 : index
    %119 = vector.load %arg7[%c0_46, %c7, %c0_47] : memref<8x16x128xf32, #tpu.memory_space<vmem>>, vector<8x1x128xf32>
    tpu.vector_store %arg7[%c0_46, %c7, %c0_47], %118 {strides = array<i32>} : memref<8x16x128xf32, #tpu.memory_space<vmem>>, vector<8x1x128xf32>,
    %120 = vector.extract_strided_slice %1 {offsets = [8, 0], sizes = [1, 10], strides = [1, 1]} : vector<16x10xf32> to vector<1x10xf32>
    %121 = vector.shape_cast %120 : vector<1x10xf32> to vector<10xf32>
    %122 = vector.shape_cast %121 : vector<10xf32> to vector<1x10xf32>
    %123 = vector.broadcast %122 : vector<1x10xf32> to vector<8x10xf32>
    %124 = arith.subf %4, %123 : vector<8x10xf32>
    %cst_48 = arith.constant 0.223606795 : f32
    %125 = vector.broadcast %cst_48 : f32 to vector<8x10xf32>
    %126 = arith.mulf %125, %124 : vector<8x10xf32>
    %127 = vector.extract_strided_slice %3 {offsets = [8, 0, 0], sizes = [1, 10, 128], strides = [1, 1, 1]} : vector<16x10x128xf32> to vector<1x10x128xf32>
    %128 = vector.shape_cast %127 : vector<1x10x128xf32> to vector<10x128xf32>
    %cst_49 = arith.constant dense<0.000000e+00> : vector<8x128xf32>
    %129 = tpu.matmul %126, %128, %cst_49 {dimension_numbers = #tpu.dot_dimension_numbers<[1], [0], [0], [1], [0, 0, 1, 1], [], []>} : vector<8x10xf32>, vector<10x128xf32>, vector<8x128xf32> -> vector<8x128xf32>
    %130 = vector.shape_cast %129 : vector<8x128xf32> to vector<8x1x128xf32>
    %c0_50 = arith.constant 0 : index
    %c8 = arith.constant 8 : index
    %c0_51 = arith.constant 0 : index
    %131 = vector.load %arg7[%c0_50, %c8, %c0_51] : memref<8x16x128xf32, #tpu.memory_space<vmem>>, vector<8x1x128xf32>
    tpu.vector_store %arg7[%c0_50, %c8, %c0_51], %130 {strides = array<i32>} : memref<8x16x128xf32, #tpu.memory_space<vmem>>, vector<8x1x128xf32>,
    %132 = vector.extract_strided_slice %1 {offsets = [9, 0], sizes = [1, 10], strides = [1, 1]} : vector<16x10xf32> to vector<1x10xf32>
    %133 = vector.shape_cast %132 : vector<1x10xf32> to vector<10xf32>
    %134 = vector.shape_cast %133 : vector<10xf32> to vector<1x10xf32>
    %135 = vector.broadcast %134 : vector<1x10xf32> to vector<8x10xf32>
    %136 = arith.subf %4, %135 : vector<8x10xf32>
    %cst_52 = arith.constant 0.223606795 : f32
    %137 = vector.broadcast %cst_52 : f32 to vector<8x10xf32>
    %138 = arith.mulf %137, %136 : vector<8x10xf32>
    %139 = vector.extract_strided_slice %3 {offsets = [9, 0, 0], sizes = [1, 10, 128], strides = [1, 1, 1]} : vector<16x10x128xf32> to vector<1x10x128xf32>
    %140 = vector.shape_cast %139 : vector<1x10x128xf32> to vector<10x128xf32>
    %cst_53 = arith.constant dense<0.000000e+00> : vector<8x128xf32>
    %141 = tpu.matmul %138, %140, %cst_53 {dimension_numbers = #tpu.dot_dimension_numbers<[1], [0], [0], [1], [0, 0, 1, 1], [], []>} : vector<8x10xf32>, vector<10x128xf32>, vector<8x128xf32> -> vector<8x128xf32>
    %142 = vector.shape_cast %141 : vector<8x128xf32> to vector<8x1x128xf32>
    %c0_54 = arith.constant 0 : index
    %c9 = arith.constant 9 : index
    %c0_55 = arith.constant 0 : index
    %143 = vector.load %arg7[%c0_54, %c9, %c0_55] : memref<8x16x128xf32, #tpu.memory_space<vmem>>, vector<8x1x128xf32>
    tpu.vector_store %arg7[%c0_54, %c9, %c0_55], %142 {strides = array<i32>} : memref<8x16x128xf32, #tpu.memory_space<vmem>>, vector<8x1x128xf32>,
    %144 = vector.extract_strided_slice %1 {offsets = [10, 0], sizes = [1, 10], strides = [1, 1]} : vector<16x10xf32> to vector<1x10xf32>
    %145 = vector.shape_cast %144 : vector<1x10xf32> to vector<10xf32>
    %146 = vector.shape_cast %145 : vector<10xf32> to vector<1x10xf32>
    %147 = vector.broadcast %146 : vector<1x10xf32> to vector<8x10xf32>
    %148 = arith.subf %4, %147 : vector<8x10xf32>
    %cst_56 = arith.constant 0.223606795 : f32
    %149 = vector.broadcast %cst_56 : f32 to vector<8x10xf32>
    %150 = arith.mulf %149, %148 : vector<8x10xf32>
    %151 = vector.extract_strided_slice %3 {offsets = [10, 0, 0], sizes = [1, 10, 128], strides = [1, 1, 1]} : vector<16x10x128xf32> to vector<1x10x128xf32>
    %152 = vector.shape_cast %151 : vector<1x10x128xf32> to vector<10x128xf32>
    %cst_57 = arith.constant dense<0.000000e+00> : vector<8x128xf32>
    %153 = tpu.matmul %150, %152, %cst_57 {dimension_numbers = #tpu.dot_dimension_numbers<[1], [0], [0], [1], [0, 0, 1, 1], [], []>} : vector<8x10xf32>, vector<10x128xf32>, vector<8x128xf32> -> vector<8x128xf32>
    %154 = vector.shape_cast %153 : vector<8x128xf32> to vector<8x1x128xf32>
    %c0_58 = arith.constant 0 : index
    %c10 = arith.constant 10 : index
    %c0_59 = arith.constant 0 : index
    %155 = vector.load %arg7[%c0_58, %c10, %c0_59] : memref<8x16x128xf32, #tpu.memory_space<vmem>>, vector<8x1x128xf32>
    tpu.vector_store %arg7[%c0_58, %c10, %c0_59], %154 {strides = array<i32>} : memref<8x16x128xf32, #tpu.memory_space<vmem>>, vector<8x1x128xf32>,
    %156 = vector.extract_strided_slice %1 {offsets = [11, 0], sizes = [1, 10], strides = [1, 1]} : vector<16x10xf32> to vector<1x10xf32>
    %157 = vector.shape_cast %156 : vector<1x10xf32> to vector<10xf32>
    %158 = vector.shape_cast %157 : vector<10xf32> to vector<1x10xf32>
    %159 = vector.broadcast %158 : vector<1x10xf32> to vector<8x10xf32>
    %160 = arith.subf %4, %159 : vector<8x10xf32>
    %cst_60 = arith.constant 0.223606795 : f32
    %161 = vector.broadcast %cst_60 : f32 to vector<8x10xf32>
    %162 = arith.mulf %161, %160 : vector<8x10xf32>
    %163 = vector.extract_strided_slice %3 {offsets = [11, 0, 0], sizes = [1, 10, 128], strides = [1, 1, 1]} : vector<16x10x128xf32> to vector<1x10x128xf32>
    %164 = vector.shape_cast %163 : vector<1x10x128xf32> to vector<10x128xf32>
    %cst_61 = arith.constant dense<0.000000e+00> : vector<8x128xf32>
    %165 = tpu.matmul %162, %164, %cst_61 {dimension_numbers = #tpu.dot_dimension_numbers<[1], [0], [0], [1], [0, 0, 1, 1], [], []>} : vector<8x10xf32>, vector<10x128xf32>, vector<8x128xf32> -> vector<8x128xf32>
    %166 = vector.shape_cast %165 : vector<8x128xf32> to vector<8x1x128xf32>
    %c0_62 = arith.constant 0 : index
    %c11 = arith.constant 11 : index
    %c0_63 = arith.constant 0 : index
    %167 = vector.load %arg7[%c0_62, %c11, %c0_63] : memref<8x16x128xf32, #tpu.memory_space<vmem>>, vector<8x1x128xf32>
    tpu.vector_store %arg7[%c0_62, %c11, %c0_63], %166 {strides = array<i32>} : memref<8x16x128xf32, #tpu.memory_space<vmem>>, vector<8x1x128xf32>,
    %168 = vector.extract_strided_slice %1 {offsets = [12, 0], sizes = [1, 10], strides = [1, 1]} : vector<16x10xf32> to vector<1x10xf32>
    %169 = vector.shape_cast %168 : vector<1x10xf32> to vector<10xf32>
    %170 = vector.shape_cast %169 : vector<10xf32> to vector<1x10xf32>
    %171 = vector.broadcast %170 : vector<1x10xf32> to vector<8x10xf32>
    %172 = arith.subf %4, %171 : vector<8x10xf32>
    %cst_64 = arith.constant 0.223606795 : f32
    %173 = vector.broadcast %cst_64 : f32 to vector<8x10xf32>
    %174 = arith.mulf %173, %172 : vector<8x10xf32>
    %175 = vector.extract_strided_slice %3 {offsets = [12, 0, 0], sizes = [1, 10, 128], strides = [1, 1, 1]} : vector<16x10x128xf32> to vector<1x10x128xf32>
    %176 = vector.shape_cast %175 : vector<1x10x128xf32> to vector<10x128xf32>
    %cst_65 = arith.constant dense<0.000000e+00> : vector<8x128xf32>
    %177 = tpu.matmul %174, %176, %cst_65 {dimension_numbers = #tpu.dot_dimension_numbers<[1], [0], [0], [1], [0, 0, 1, 1], [], []>} : vector<8x10xf32>, vector<10x128xf32>, vector<8x128xf32> -> vector<8x128xf32>
    %178 = vector.shape_cast %177 : vector<8x128xf32> to vector<8x1x128xf32>
    %c0_66 = arith.constant 0 : index
    %c12 = arith.constant 12 : index
    %c0_67 = arith.constant 0 : index
    %179 = vector.load %arg7[%c0_66, %c12, %c0_67] : memref<8x16x128xf32, #tpu.memory_space<vmem>>, vector<8x1x128xf32>
    tpu.vector_store %arg7[%c0_66, %c12, %c0_67], %178 {strides = array<i32>} : memref<8x16x128xf32, #tpu.memory_space<vmem>>, vector<8x1x128xf32>,
    %180 = vector.extract_strided_slice %1 {offsets = [13, 0], sizes = [1, 10], strides = [1, 1]} : vector<16x10xf32> to vector<1x10xf32>
    %181 = vector.shape_cast %180 : vector<1x10xf32> to vector<10xf32>
    %182 = vector.shape_cast %181 : vector<10xf32> to vector<1x10xf32>
    %183 = vector.broadcast %182 : vector<1x10xf32> to vector<8x10xf32>
    %184 = arith.subf %4, %183 : vector<8x10xf32>
    %cst_68 = arith.constant 0.223606795 : f32
    %185 = vector.broadcast %cst_68 : f32 to vector<8x10xf32>
    %186 = arith.mulf %185, %184 : vector<8x10xf32>
    %187 = vector.extract_strided_slice %3 {offsets = [13, 0, 0], sizes = [1, 10, 128], strides = [1, 1, 1]} : vector<16x10x128xf32> to vector<1x10x128xf32>
    %188 = vector.shape_cast %187 : vector<1x10x128xf32> to vector<10x128xf32>
    %cst_69 = arith.constant dense<0.000000e+00> : vector<8x128xf32>
    %189 = tpu.matmul %186, %188, %cst_69 {dimension_numbers = #tpu.dot_dimension_numbers<[1], [0], [0], [1], [0, 0, 1, 1], [], []>} : vector<8x10xf32>, vector<10x128xf32>, vector<8x128xf32> -> vector<8x128xf32>
    %190 = vector.shape_cast %189 : vector<8x128xf32> to vector<8x1x128xf32>
    %c0_70 = arith.constant 0 : index
    %c13 = arith.constant 13 : index
    %c0_71 = arith.constant 0 : index
    %191 = vector.load %arg7[%c0_70, %c13, %c0_71] : memref<8x16x128xf32, #tpu.memory_space<vmem>>, vector<8x1x128xf32>
    tpu.vector_store %arg7[%c0_70, %c13, %c0_71], %190 {strides = array<i32>} : memref<8x16x128xf32, #tpu.memory_space<vmem>>, vector<8x1x128xf32>,
    %192 = vector.extract_strided_slice %1 {offsets = [14, 0], sizes = [1, 10], strides = [1, 1]} : vector<16x10xf32> to vector<1x10xf32>
    %193 = vector.shape_cast %192 : vector<1x10xf32> to vector<10xf32>
    %194 = vector.shape_cast %193 : vector<10xf32> to vector<1x10xf32>
    %195 = vector.broadcast %194 : vector<1x10xf32> to vector<8x10xf32>
    %196 = arith.subf %4, %195 : vector<8x10xf32>
    %cst_72 = arith.constant 0.223606795 : f32
    %197 = vector.broadcast %cst_72 : f32 to vector<8x10xf32>
    %198 = arith.mulf %197, %196 : vector<8x10xf32>
    %199 = vector.extract_strided_slice %3 {offsets = [14, 0, 0], sizes = [1, 10, 128], strides = [1, 1, 1]} : vector<16x10x128xf32> to vector<1x10x128xf32>
    %200 = vector.shape_cast %199 : vector<1x10x128xf32> to vector<10x128xf32>
    %cst_73 = arith.constant dense<0.000000e+00> : vector<8x128xf32>
    %201 = tpu.matmul %198, %200, %cst_73 {dimension_numbers = #tpu.dot_dimension_numbers<[1], [0], [0], [1], [0, 0, 1, 1], [], []>} : vector<8x10xf32>, vector<10x128xf32>, vector<8x128xf32> -> vector<8x128xf32>
    %202 = vector.shape_cast %201 : vector<8x128xf32> to vector<8x1x128xf32>
    %c0_74 = arith.constant 0 : index
    %c14 = arith.constant 14 : index
    %c0_75 = arith.constant 0 : index
    %203 = vector.load %arg7[%c0_74, %c14, %c0_75] : memref<8x16x128xf32, #tpu.memory_space<vmem>>, vector<8x1x128xf32>
    tpu.vector_store %arg7[%c0_74, %c14, %c0_75], %202 {strides = array<i32>} : memref<8x16x128xf32, #tpu.memory_space<vmem>>, vector<8x1x128xf32>,
    %204 = vector.extract_strided_slice %1 {offsets = [15, 0], sizes = [1, 10], strides = [1, 1]} : vector<16x10xf32> to vector<1x10xf32>
    %205 = vector.shape_cast %204 : vector<1x10xf32> to vector<10xf32>
    %206 = vector.shape_cast %205 : vector<10xf32> to vector<1x10xf32>
    %207 = vector.broadcast %206 : vector<1x10xf32> to vector<8x10xf32>
    %208 = arith.subf %4, %207 : vector<8x10xf32>
    %cst_76 = arith.constant 0.223606795 : f32
    %209 = vector.broadcast %cst_76 : f32 to vector<8x10xf32>
    %210 = arith.mulf %209, %208 : vector<8x10xf32>
    %211 = vector.extract_strided_slice %3 {offsets = [15, 0, 0], sizes = [1, 10, 128], strides = [1, 1, 1]} : vector<16x10x128xf32> to vector<1x10x128xf32>
    %212 = vector.shape_cast %211 : vector<1x10x128xf32> to vector<10x128xf32>
    %cst_77 = arith.constant dense<0.000000e+00> : vector<8x128xf32>
    %213 = tpu.matmul %210, %212, %cst_77 {dimension_numbers = #tpu.dot_dimension_numbers<[1], [0], [0], [1], [0, 0, 1, 1], [], []>} : vector<8x10xf32>, vector<10x128xf32>, vector<8x128xf32> -> vector<8x128xf32>
    %214 = vector.shape_cast %213 : vector<8x128xf32> to vector<8x1x128xf32>
    %c0_78 = arith.constant 0 : index
    %c15 = arith.constant 15 : index
    %c0_79 = arith.constant 0 : index
    %215 = vector.load %arg7[%c0_78, %c15, %c0_79] : memref<8x16x128xf32, #tpu.memory_space<vmem>>, vector<8x1x128xf32>
    tpu.vector_store %arg7[%c0_78, %c15, %c0_79], %214 {strides = array<i32>} : memref<8x16x128xf32, #tpu.memory_space<vmem>>, vector<8x1x128xf32>,
    "tpu.trace_start"() <{level = 10 : i32, message = "iad,ipd->iap"}> : () -> ()
    %cst_80 = arith.constant dense<0.000000e+00> : vector<8x16x16xf32>
    %216 = tpu.matmul %5, %12, %cst_80 {dimension_numbers = #tpu.dot_dimension_numbers<[2], [2], [1], [1], [0, 0, 0, 1, 1, 1], [0], [0]>} : vector<8x16x10xf32>, vector<8x16x10xf32>, vector<8x16x16xf32> -> vector<8x16x16xf32>
    "tpu.trace_stop"() : () -> ()
    %217 = vector.shape_cast %20 : vector<8x16xf32> to vector<8x1x16xf32>
    %218 = vector.broadcast %217 : vector<8x1x16xf32> to vector<8x16x16xf32>
    %219 = arith.mulf %216, %218 : vector<8x16x16xf32>
    %c0_81 = arith.constant 0 : index
    %c0_82 = arith.constant 0 : index
    %c0_83 = arith.constant 0 : index
    %220 = vector.load %arg7[%c0_81, %c0_82, %c0_83] : memref<8x16x128xf32, #tpu.memory_space<vmem>>, vector<8x16x128xf32>
    "tpu.trace_start"() <{level = 10 : i32, message = "iap,ipb->iab"}> : () -> ()
    %cst_84 = arith.constant dense<0.000000e+00> : vector<8x16x128xf32>
    %221 = tpu.matmul %219, %220, %cst_84 {dimension_numbers = #tpu.dot_dimension_numbers<[2], [1], [1], [2], [0, 0, 0, 1, 1, 2], [0], [0]>} : vector<8x16x16xf32>, vector<8x16x128xf32>, vector<8x16x128xf32> -> vector<8x16x128xf32>
    "tpu.trace_stop"() : () -> ()
    %c0_85 = arith.constant 0 : index
    %c0_86 = arith.constant 0 : index
    %c0_87 = arith.constant 0 : index
    %c0_88 = arith.constant 0 : index
    %222 = vector.load %arg6[%c0_85, %c0_86, %c0_87, %c0_88] : memref<1x8x16x128xf32, #tpu.memory_space<vmem>>, vector<1x8x16x128xf32>
    %223 = vector.shape_cast %222 : vector<1x8x16x128xf32> to vector<8x16x128xf32>
    %224 = vector.shape_cast %221 : vector<8x16x128xf32> to vector<1x8x16x128xf32>
    tpu.vector_store %arg6[%c0_85, %c0_86, %c0_87, %c0_88], %224 {strides = array<i32>} : memref<1x8x16x128xf32, #tpu.memory_space<vmem>>, vector<1x8x16x128xf32>,
    %225 = vector.shape_cast %3 : vector<16x10x128xf32> to vector<16x1280xf32>
    %cst_89 = arith.constant dense<0.000000e+00> : vector<8x1280xf32>
    %226 = tpu.matmul %23, %225, %cst_89 {dimension_numbers = #tpu.dot_dimension_numbers<[1], [0], [0], [1], [0, 0, 1, 1], [], []>} : vector<8x16xf32>, vector<16x1280xf32>, vector<8x1280xf32> -> vector<8x1280xf32>
    %227 = vector.shape_cast %226 : vector<8x1280xf32> to vector<8x10x128xf32>
    %c0_90 = arith.constant 0 : index
    %c0_91 = arith.constant 0 : index
    %c0_92 = arith.constant 0 : index
    %c0_93 = arith.constant 0 : index
    %228 = vector.load %arg6[%c0_90, %c0_91, %c0_92, %c0_93] : memref<1x8x16x128xf32, #tpu.memory_space<vmem>>, vector<1x8x16x128xf32>
    %229 = vector.shape_cast %228 : vector<1x8x16x128xf32> to vector<8x16x128xf32>
    "tpu.trace_start"() <{level = 10 : i32, message = "iad,idb->iab"}> : () -> ()
    %cst_94 = arith.constant dense<0.000000e+00> : vector<8x16x128xf32>
    %230 = tpu.matmul %5, %227, %cst_94 {dimension_numbers = #tpu.dot_dimension_numbers<[2], [1], [1], [2], [0, 0, 0, 1, 1, 2], [0], [0]>} : vector<8x16x10xf32>, vector<8x10x128xf32>, vector<8x16x128xf32> -> vector<8x16x128xf32>
    "tpu.trace_stop"() : () -> ()
    %231 = arith.subf %229, %230 : vector<8x16x128xf32>
    %c0_95 = arith.constant 0 : index
    %c0_96 = arith.constant 0 : index
    %c0_97 = arith.constant 0 : index
    %c0_98 = arith.constant 0 : index
    %232 = vector.load %arg6[%c0_95, %c0_96, %c0_97, %c0_98] : memref<1x8x16x128xf32, #tpu.memory_space<vmem>>, vector<1x8x16x128xf32>
    %233 = vector.shape_cast %232 : vector<1x8x16x128xf32> to vector<8x16x128xf32>
    %234 = vector.shape_cast %231 : vector<8x16x128xf32> to vector<1x8x16x128xf32>
    tpu.vector_store %arg6[%c0_95, %c0_96, %c0_97, %c0_98], %234 {strides = array<i32>} : memref<1x8x16x128xf32, #tpu.memory_space<vmem>>, vector<1x8x16x128xf32>,
    return
  }
  func.func @transform_0(%arg0: i32, %arg1: i32) -> (i32, i32, i32) {
    %c0_i32 = arith.constant 0 : i32
    %c0_i32_0 = arith.constant 0 : i32
    %c0_i32_1 = arith.constant 0 : i32
    return %arg1, %c0_i32, %c0_i32_0 : i32, i32, i32
  }
  func.func @transform_1(%arg0: i32, %arg1: i32) -> (i32, i32, i32, i32) {
    %c0_i32 = arith.constant 0 : i32
    %c0_i32_0 = arith.constant 0 : i32
    %c0_i32_1 = arith.constant 0 : i32
    %c0_i32_2 = arith.constant 0 : i32
    return %arg1, %c0_i32, %c0_i32_0, %c0_i32_1 : i32, i32, i32, i32
  }
  func.func @transform_2(%arg0: i32, %arg1: i32) -> (i32, i32) {
    %c0_i32 = arith.constant 0 : i32
    %c0_i32_0 = arith.constant 0 : i32
    return %arg0, %c0_i32 : i32, i32
  }
  func.func @transform_3(%arg0: i32, %arg1: i32) -> (i32, i32, i32) {
    %c0_i32 = arith.constant 0 : i32
    %c0_i32_0 = arith.constant 0 : i32
    %c0_i32_1 = arith.constant 0 : i32
    return %arg0, %c0_i32, %c0_i32_0 : i32, i32, i32
  }
  func.func @transform_4(%arg0: i32, %arg1: i32) -> (i32, i32, i32, i32) {
    %c0_i32 = arith.constant 0 : i32
    %c0_i32_0 = arith.constant 0 : i32
    %c0_i32_1 = arith.constant 0 : i32
    return %arg1, %arg0, %c0_i32, %c0_i32_0 : i32, i32, i32, i32
  }
}

</mosaic_0001>

<llo_original>
// kernel: tpu_custom_call.1
$region0: #{tpu_custom_call.1}
  #allocation0 [shape = 'u32[]', space=smem, size = 0x4, offset = 0x4, fixed_abs, tag = 'smem constant byte address 0x4 - core index']
  #allocation1 [shape = 'u32[144,128]{1,0:T(1,128)}', space=vmem, size = 0x12000, scoped, tag = 'internal scratch']
  #allocation2 [shape = 'f32[8,16,128]{2,1,0:T(8,128)}', space=vmem, size = 0x10000, scoped, tag = 'scratch operand']
  %s0 = inlined_call_operand.vmem [shape: f32[1,16,10], index: 0, kind: input, shape index: {}]
  %s1 = inlined_call_operand.vmem [shape: f32[1,16,10,128], index: 1, kind: input, shape index: {}]
  %s2 = inlined_call_operand.vmem [shape: f32[8,10], index: 2, kind: input, shape index: {}]
  %s3 = inlined_call_operand.vmem [shape: f32[8,16,10], index: 3, kind: input, shape index: {}]
  %s4 = inlined_call_operand.hbm [shape: f32[1,8,16,128], index: 4, kind: output, shape index: {}]
  %s5 = sld [smem:[#allocation0]]
  $region26: #{tpu_custom_call.1} parent=0
    _
  %s7 = ssub.s32 1, %s5
  %s8 = scalar_select 0, %s7, %s5
  $region1: #{tpu_custom_call.1} parent=0
    #allocation3 [shape = 'u8[65536]{0}', space=vmem, size = 0x10000, scoped, tag = 'output window, operand 0, single buffered']
    #allocation4 [shape = 's32[1]{0}', space=sflag, size = 0x4, scoped, tag = 'scoped memory for tpu_custom_call.1']
    %9 = vsyncpa [#allocation4], 0
    // Predicated region
    $region2: #{tpu_custom_call.1} parent=1 // pred_check
      _
    $region3: #{tpu_custom_call.1} parent=1 // pred_check_branch
      %11 = sbr.rel (0) target = $region5
    $region4: #{tpu_custom_call.1} parent=1 // pred_region
      _
    $region5: #{tpu_custom_call.1} parent=1 // pred_fallthru
      _
    // Predicated region
    $region6: #{tpu_custom_call.1} parent=1 // pred_check
      _
    $region7: #{tpu_custom_call.1} parent=1 // pred_check_branch
      %13 = sbr.rel (0) target = $region9
    $region8: #{tpu_custom_call.1} parent=1 // pred_region
      _
    $region9: #{tpu_custom_call.1} parent=1 // pred_fallthru
      _
    // Predicated region
    $region10: #{tpu_custom_call.1} parent=1 // pred_check
      _
    $region11: #{tpu_custom_call.1} parent=1 // pred_check_branch
      %15 = sbr.rel (0) target = $region13
    $region12: #{tpu_custom_call.1} parent=1 // pred_region
      _
    $region13: #{tpu_custom_call.1} parent=1 // pred_fallthru
      _
    // Predicated region
    $region14: #{tpu_custom_call.1} parent=1 // pred_check
      _
    $region15: #{tpu_custom_call.1} parent=1 // pred_check_branch
      %17 = sbr.rel (0) target = $region17
    $region16: #{tpu_custom_call.1} parent=1 // pred_region
      _
    $region17: #{tpu_custom_call.1} parent=1 // pred_fallthru
      _
    %v18 = vld [vmem:[%s0] sm:$0xff]
    %v19 = vld [vmem:[%s0 + $0x8] sm:$0xff]
    %v20 = vld [vmem:[%s1] sm:$0xff]
    %v21 = vld [vmem:[%s1 + $0x8] sm:$0x3]
    %v22 = vld [vmem:[%s1 + $0x10] sm:$0xff]
    %v23 = vld [vmem:[%s1 + $0x18] sm:$0x3]
    %v24 = vld [vmem:[%s1 + $0x20] sm:$0xff]
    %v25 = vld [vmem:[%s1 + $0x28] sm:$0x3]
    %v26 = vld [vmem:[%s1 + $0x30] sm:$0xff]
    %v27 = vld [vmem:[%s1 + $0x38] sm:$0x3]
    %v28 = vld [vmem:[%s1 + $0x40] sm:$0xff]
    %v29 = vld [vmem:[%s1 + $0x48] sm:$0x3]
    %v30 = vld [vmem:[%s1 + $0x50] sm:$0xff]
    %v31 = vld [vmem:[%s1 + $0x58] sm:$0x3]
    %v32 = vld [vmem:[%s1 + $0x60] sm:$0xff]
    %v33 = vld [vmem:[%s1 + $0x68] sm:$0x3]
    %v34 = vld [vmem:[%s1 + $0x70] sm:$0xff]
    %v35 = vld [vmem:[%s1 + $0x78] sm:$0x3]
    %v36 = vld [vmem:[%s1 + $0x80] sm:$0xff]
    %v37 = vld [vmem:[%s1 + $0x88] sm:$0x3]
    %v38 = vld [vmem:[%s1 + $0x90] sm:$0xff]
    %v39 = vld [vmem:[%s1 + $0x98] sm:$0x3]
    %v40 = vld [vmem:[%s1 + $0xa0] sm:$0xff]
    %v41 = vld [vmem:[%s1 + $0xa8] sm:$0x3]
    %v42 = vld [vmem:[%s1 + $0xb0] sm:$0xff]
    %v43 = vld [vmem:[%s1 + $0xb8] sm:$0x3]
    %v44 = vld [vmem:[%s1 + $0xc0] sm:$0xff]
    %v45 = vld [vmem:[%s1 + $0xc8] sm:$0x3]
    %v46 = vld [vmem:[%s1 + $0xd0] sm:$0xff]
    %v47 = vld [vmem:[%s1 + $0xd8] sm:$0x3]
    %v48 = vld [vmem:[%s1 + $0xe0] sm:$0xff]
    %v49 = vld [vmem:[%s1 + $0xe8] sm:$0x3]
    %v50 = vld [vmem:[%s1 + $0xf0] sm:$0xff]
    %v51 = vld [vmem:[%s1 + $0xf8] sm:$0x3]
    %v52 = vld [vmem:[%s2] sm:$0xff]
    %v53 = vld [vmem:[%s3] sm:$0xff]
    %v54 = vld [vmem:[%s3 + $0x8] sm:$0xff]
    %v55 = vld [vmem:[%s3 + $0x10] sm:$0xff]
    %v56 = vld [vmem:[%s3 + $0x18] sm:$0xff]
    %v57 = vld [vmem:[%s3 + $0x20] sm:$0xff]
    %v58 = vld [vmem:[%s3 + $0x28] sm:$0xff]
    %v59 = vld [vmem:[%s3 + $0x30] sm:$0xff]
    %v60 = vld [vmem:[%s3 + $0x38] sm:$0xff]
    %v61 = vld [vmem:[%s3 + $0x40] sm:$0xff]
    %v62 = vld [vmem:[%s3 + $0x48] sm:$0xff]
    %v63 = vld [vmem:[%s3 + $0x50] sm:$0xff]
    %v64 = vld [vmem:[%s3 + $0x58] sm:$0xff]
    %v65 = vld [vmem:[%s3 + $0x60] sm:$0xff]
    %v66 = vld [vmem:[%s3 + $0x68] sm:$0xff]
    %v67 = vld [vmem:[%s3 + $0x70] sm:$0xff]
    %v68 = vld [vmem:[%s3 + $0x78] sm:$0xff]
    %v70 = vcombine.high %v52, %v52
    %v72 = vunpack.c.l.s4 1966171168
    %v73 = vunpack.c.0.s8 %v72
    %v74 = vlaneseq
    %v75 = vshrl.u32 %v74, 7
    %v76 = vsub.s32 %v73, %v75
    %v77 = vrot.slane %v52, %v76
    %v79 = vunpack.c.l.s4 1966171168
    %v80 = vunpack.c.0.s8 %v79
    %v81 = vlaneseq
    %v82 = vshrl.u32 %v81, 7
    %v83 = vsub.s32 %v80, %v82
    %v84 = vrot.slane %v70, %v83
    %v85 = vcombine.high %v77, %v77
    %v86 = vcombine.high %v84, %v84
    %v88 = vunpack.c.l.s4 1966171168
    %v89 = vunpack.c.0.s8 %v88
    %v90 = vlaneseq
    %v91 = vshrl.u32 %v90, 7
    %v92 = vsub.s32 %v89, %v91
    %v93 = vrot.slane %v77, %v92
    %v95 = vunpack.c.l.s4 1966171168
    %v96 = vunpack.c.0.s8 %v95
    %v97 = vlaneseq
    %v98 = vshrl.u32 %v97, 7
    %v99 = vsub.s32 %v96, %v98
    %v100 = vrot.slane %v84, %v99
    %v102 = vunpack.c.l.s4 1966171168
    %v103 = vunpack.c.0.s8 %v102
    %v104 = vlaneseq
    %v105 = vshrl.u32 %v104, 7
    %v106 = vsub.s32 %v103, %v105
    %v107 = vrot.slane %v85, %v106
    %v109 = vunpack.c.l.s4 1966171168
    %v110 = vunpack.c.0.s8 %v109
    %v111 = vlaneseq
    %v112 = vshrl.u32 %v111, 7
    %v113 = vsub.s32 %v110, %v112
    %v114 = vrot.slane %v86, %v113
    %v115 = vcombine.high %v93, %v93
    %v116 = vcombine.high %v100, %v100
    %v117 = vcombine.high %v107, %v107
    %v118 = vcombine.high %v114, %v114
    %v119 = vlaneseq
    %v120 = vshrl.u32 %v119, 7
    %v121 = vsub.s32 0, %v120
    %v122 = vrot.slane %v93, %v121
    %v123 = vlaneseq
    %v124 = vshrl.u32 %v123, 7
    %v125 = vsub.s32 0, %v124
    %v126 = vrot.slane %v107, %v125
    %v127 = vlaneseq
    %v128 = vshrl.u32 %v127, 7
    %v129 = vsub.s32 0, %v128
    %v130 = vrot.slane %v115, %v129
    %v131 = vlaneseq
    %v132 = vshrl.u32 %v131, 7
    %v133 = vsub.s32 0, %v132
    %v134 = vrot.slane %v117, %v133
    %v135 = vlaneseq
    %v136 = vshrl.u32 %v135, 7
    %v137 = vsub.s32 0, %v136
    %v138 = vrot.slane %v100, %v137
    %v139 = vlaneseq
    %v140 = vshrl.u32 %v139, 7
    %v141 = vsub.s32 0, %v140
    %v142 = vrot.slane %v114, %v141
    %v143 = vlaneseq
    %v144 = vshrl.u32 %v143, 7
    %v145 = vsub.s32 0, %v144
    %v146 = vrot.slane %v116, %v145
    %v147 = vlaneseq
    %v148 = vshrl.u32 %v147, 7
    %v149 = vsub.s32 0, %v148
    %v150 = vrot.slane %v118, %v149
    %v159 = vsub.f32 %v122, %v18
    %v160 = vsub.f32 %v122, %v19
    %v161 = vsub.f32 %v126, %v18
    %v162 = vsub.f32 %v126, %v19
    %v163 = vsub.f32 %v130, %v18
    %v164 = vsub.f32 %v130, %v19
    %v165 = vsub.f32 %v134, %v18
    %v166 = vsub.f32 %v134, %v19
    %v167 = vsub.f32 %v138, %v18
    %v168 = vsub.f32 %v138, %v19
    %v169 = vsub.f32 %v142, %v18
    %v170 = vsub.f32 %v142, %v19
    %v171 = vsub.f32 %v146, %v18
    %v172 = vsub.f32 %v146, %v19
    %v173 = vsub.f32 %v150, %v18
    %v174 = vsub.f32 %v150, %v19
    %v175 = vmul.f32 %v159, 0.2236068
    %v176 = vmul.f32 %v160, 0.2236068
    %v177 = vmul.f32 %v161, 0.2236068
    %v178 = vmul.f32 %v162, 0.2236068
    %v179 = vmul.f32 %v163, 0.2236068
    %v180 = vmul.f32 %v164, 0.2236068
    %v181 = vmul.f32 %v165, 0.2236068
    %v182 = vmul.f32 %v166, 0.2236068
    %v183 = vmul.f32 %v167, 0.2236068
    %v184 = vmul.f32 %v168, 0.2236068
    %v185 = vmul.f32 %v169, 0.2236068
    %v186 = vmul.f32 %v170, 0.2236068
    %v187 = vmul.f32 %v171, 0.2236068
    %v188 = vmul.f32 %v172, 0.2236068
    %v189 = vmul.f32 %v173, 0.2236068
    %v190 = vmul.f32 %v174, 0.2236068
    %v191 = vmul.f32 %v175, %v175
    %v192 = vmul.f32 %v176, %v176
    %v193 = vmul.f32 %v177, %v177
    %v194 = vmul.f32 %v178, %v178
    %v195 = vmul.f32 %v179, %v179
    %v196 = vmul.f32 %v180, %v180
    %v197 = vmul.f32 %v181, %v181
    %v198 = vmul.f32 %v182, %v182
    %v199 = vmul.f32 %v183, %v183
    %v200 = vmul.f32 %v184, %v184
    %v201 = vmul.f32 %v185, %v185
    %v202 = vmul.f32 %v186, %v186
    %v203 = vmul.f32 %v187, %v187
    %v204 = vmul.f32 %v188, %v188
    %v205 = vmul.f32 %v189, %v189
    %v206 = vmul.f32 %v190, %v190
    %vm207 = vcmask 80896
    %v208 = vsel %vm207, %v191, 0.0
    %209 = vadd.xlane.f32.xlu0 %v208
    %v210 = vpop.xlane.xlu0 %209
    %v211 = vsel %vm207, %v192, 0.0
    %212 = vadd.xlane.f32.xlu0 %v211
    %v213 = vpop.xlane.xlu0 %212
    %v214 = vsel %vm207, %v193, 0.0
    %215 = vadd.xlane.f32.xlu0 %v214
    %v216 = vpop.xlane.xlu0 %215
    %v217 = vsel %vm207, %v194, 0.0
    %218 = vadd.xlane.f32.xlu0 %v217
    %v219 = vpop.xlane.xlu0 %218
    %v220 = vsel %vm207, %v195, 0.0
    %221 = vadd.xlane.f32.xlu0 %v220
    %v222 = vpop.xlane.xlu0 %221
    %v223 = vsel %vm207, %v196, 0.0
    %224 = vadd.xlane.f32.xlu0 %v223
    %v225 = vpop.xlane.xlu0 %224
    %v226 = vsel %vm207, %v197, 0.0
    %227 = vadd.xlane.f32.xlu0 %v226
    %v228 = vpop.xlane.xlu0 %227
    %v229 = vsel %vm207, %v198, 0.0
    %230 = vadd.xlane.f32.xlu0 %v229
    %v231 = vpop.xlane.xlu0 %230
    %v232 = vsel %vm207, %v199, 0.0
    %233 = vadd.xlane.f32.xlu0 %v232
    %v234 = vpop.xlane.xlu0 %233
    %v235 = vsel %vm207, %v200, 0.0
    %236 = vadd.xlane.f32.xlu0 %v235
    %v237 = vpop.xlane.xlu0 %236
    %v238 = vsel %vm207, %v201, 0.0
    %239 = vadd.xlane.f32.xlu0 %v238
    %v240 = vpop.xlane.xlu0 %239
    %v241 = vsel %vm207, %v202, 0.0
    %242 = vadd.xlane.f32.xlu0 %v241
    %v243 = vpop.xlane.xlu0 %242
    %v244 = vsel %vm207, %v203, 0.0
    %245 = vadd.xlane.f32.xlu0 %v244
    %v246 = vpop.xlane.xlu0 %245
    %v247 = vsel %vm207, %v204, 0.0
    %248 = vadd.xlane.f32.xlu0 %v247
    %v249 = vpop.xlane.xlu0 %248
    %v250 = vsel %vm207, %v205, 0.0
    %251 = vadd.xlane.f32.xlu0 %v250
    %v252 = vpop.xlane.xlu0 %251
    %v253 = vsel %vm207, %v206, 0.0
    %254 = vadd.xlane.f32.xlu0 %v253
    %v255 = vpop.xlane.xlu0 %254
    %v256 = vrsqrt.pop %v210
    %v257 = vmul.f32 %v210, %v256
    %vm258 = vcmp.eq.f32.partialorder %v210, inf
    %v259 = vsel %vm258, %v210, %v257
    %vm260 = vcmp.eq.f32.partialorder %v210, 0.0
    %v261 = vand.u32 %v210, 2147483648
    %v262 = vsel %vm260, %v261, %v259
    %v263 = vrsqrt.pop %v213
    %v264 = vmul.f32 %v213, %v263
    %vm265 = vcmp.eq.f32.partialorder %v213, inf
    %v266 = vsel %vm265, %v213, %v264
    %vm267 = vcmp.eq.f32.partialorder %v213, 0.0
    %v268 = vand.u32 %v213, 2147483648
    %v269 = vsel %vm267, %v268, %v266
    %v270 = vrsqrt.pop %v216
    %v271 = vmul.f32 %v216, %v270
    %vm272 = vcmp.eq.f32.partialorder %v216, inf
    %v273 = vsel %vm272, %v216, %v271
    %vm274 = vcmp.eq.f32.partialorder %v216, 0.0
    %v275 = vand.u32 %v216, 2147483648
    %v276 = vsel %vm274, %v275, %v273
    %v277 = vrsqrt.pop %v219
    %v278 = vmul.f32 %v219, %v277
    %vm279 = vcmp.eq.f32.partialorder %v219, inf
    %v280 = vsel %vm279, %v219, %v278
    %vm281 = vcmp.eq.f32.partialorder %v219, 0.0
    %v282 = vand.u32 %v219, 2147483648
    %v283 = vsel %vm281, %v282, %v280
    %v284 = vrsqrt.pop %v222
    %v285 = vmul.f32 %v222, %v284
    %vm286 = vcmp.eq.f32.partialorder %v222, inf
    %v287 = vsel %vm286, %v222, %v285
    %vm288 = vcmp.eq.f32.partialorder %v222, 0.0
    %v289 = vand.u32 %v222, 2147483648
    %v290 = vsel %vm288, %v289, %v287
    %v291 = vrsqrt.pop %v225
    %v292 = vmul.f32 %v225, %v291
    %vm293 = vcmp.eq.f32.partialorder %v225, inf
    %v294 = vsel %vm293, %v225, %v292
    %vm295 = vcmp.eq.f32.partialorder %v225, 0.0
    %v296 = vand.u32 %v225, 2147483648
    %v297 = vsel %vm295, %v296, %v294
    %v298 = vrsqrt.pop %v228
    %v299 = vmul.f32 %v228, %v298
    %vm300 = vcmp.eq.f32.partialorder %v228, inf
    %v301 = vsel %vm300, %v228, %v299
    %vm302 = vcmp.eq.f32.partialorder %v228, 0.0
    %v303 = vand.u32 %v228, 2147483648
    %v304 = vsel %vm302, %v303, %v301
    %v305 = vrsqrt.pop %v231
    %v306 = vmul.f32 %v231, %v305
    %vm307 = vcmp.eq.f32.partialorder %v231, inf
    %v308 = vsel %vm307, %v231, %v306
    %vm309 = vcmp.eq.f32.partialorder %v231, 0.0
    %v310 = vand.u32 %v231, 2147483648
    %v311 = vsel %vm309, %v310, %v308
    %v312 = vrsqrt.pop %v234
    %v313 = vmul.f32 %v234, %v312
    %vm314 = vcmp.eq.f32.partialorder %v234, inf
    %v315 = vsel %vm314, %v234, %v313
    %vm316 = vcmp.eq.f32.partialorder %v234, 0.0
    %v317 = vand.u32 %v234, 2147483648
    %v318 = vsel %vm316, %v317, %v315
    %v319 = vrsqrt.pop %v237
    %v320 = vmul.f32 %v237, %v319
    %vm321 = vcmp.eq.f32.partialorder %v237, inf
    %v322 = vsel %vm321, %v237, %v320
    %vm323 = vcmp.eq.f32.partialorder %v237, 0.0
    %v324 = vand.u32 %v237, 2147483648
    %v325 = vsel %vm323, %v324, %v322
    %v326 = vrsqrt.pop %v240
    %v327 = vmul.f32 %v240, %v326
    %vm328 = vcmp.eq.f32.partialorder %v240, inf
    %v329 = vsel %vm328, %v240, %v327
    %vm330 = vcmp.eq.f32.partialorder %v240, 0.0
    %v331 = vand.u32 %v240, 2147483648
    %v332 = vsel %vm330, %v331, %v329
    %v333 = vrsqrt.pop %v243
    %v334 = vmul.f32 %v243, %v333
    %vm335 = vcmp.eq.f32.partialorder %v243, inf
    %v336 = vsel %vm335, %v243, %v334
    %vm337 = vcmp.eq.f32.partialorder %v243, 0.0
    %v338 = vand.u32 %v243, 2147483648
    %v339 = vsel %vm337, %v338, %v336
    %v340 = vrsqrt.pop %v246
    %v341 = vmul.f32 %v246, %v340
    %vm342 = vcmp.eq.f32.partialorder %v246, inf
    %v343 = vsel %vm342, %v246, %v341
    %vm344 = vcmp.eq.f32.partialorder %v246, 0.0
    %v345 = vand.u32 %v246, 2147483648
    %v346 = vsel %vm344, %v345, %v343
    %v347 = vrsqrt.pop %v249
    %v348 = vmul.f32 %v249, %v347
    %vm349 = vcmp.eq.f32.partialorder %v249, inf
    %v350 = vsel %vm349, %v249, %v348
    %vm351 = vcmp.eq.f32.partialorder %v249, 0.0
    %v352 = vand.u32 %v249, 2147483648
    %v353 = vsel %vm351, %v352, %v350
    %v354 = vrsqrt.pop %v252
    %v355 = vmul.f32 %v252, %v354
    %vm356 = vcmp.eq.f32.partialorder %v252, inf
    %v357 = vsel %vm356, %v252, %v355
    %vm358 = vcmp.eq.f32.partialorder %v252, 0.0
    %v359 = vand.u32 %v252, 2147483648
    %v360 = vsel %vm358, %v359, %v357
    %v361 = vrsqrt.pop %v255
    %v362 = vmul.f32 %v255, %v361
    %vm363 = vcmp.eq.f32.partialorder %v255, inf
    %v364 = vsel %vm363, %v255, %v362
    %vm365 = vcmp.eq.f32.partialorder %v255, 0.0
    %v366 = vand.u32 %v255, 2147483648
    %v367 = vsel %vm365, %v366, %v364
    %v368 = vsub.f32 0.0, %v262
    %v369 = vsub.f32 0.0, %v269
    %v370 = vsub.f32 0.0, %v276
    %v371 = vsub.f32 0.0, %v283
    %v372 = vsub.f32 0.0, %v290
    %v373 = vsub.f32 0.0, %v297
    %v374 = vsub.f32 0.0, %v304
    %v375 = vsub.f32 0.0, %v311
    %v376 = vsub.f32 0.0, %v318
    %v377 = vsub.f32 0.0, %v325
    %v378 = vsub.f32 0.0, %v332
    %v379 = vsub.f32 0.0, %v339
    %v380 = vsub.f32 0.0, %v346
    %v381 = vsub.f32 0.0, %v353
    %v382 = vsub.f32 0.0, %v360
    %v383 = vsub.f32 0.0, %v367
    %v384 = vmul.f32 %v368, 1.442695
    %v385 = vpow.pop %v384
    %v386 = vmul.f32 %v369, 1.442695
    %v387 = vpow.pop %v386
    %v388 = vmul.f32 %v370, 1.442695
    %v389 = vpow.pop %v388
    %v390 = vmul.f32 %v371, 1.442695
    %v391 = vpow.pop %v390
    %v392 = vmul.f32 %v372, 1.442695
    %v393 = vpow.pop %v392
    %v394 = vmul.f32 %v373, 1.442695
    %v395 = vpow.pop %v394
    %v396 = vmul.f32 %v374, 1.442695
    %v397 = vpow.pop %v396
    %v398 = vmul.f32 %v375, 1.442695
    %v399 = vpow.pop %v398
    %v400 = vmul.f32 %v376, 1.442695
    %v401 = vpow.pop %v400
    %v402 = vmul.f32 %v377, 1.442695
    %v403 = vpow.pop %v402
    %v404 = vmul.f32 %v378, 1.442695
    %v405 = vpow.pop %v404
    %v406 = vmul.f32 %v379, 1.442695
    %v407 = vpow.pop %v406
    %v408 = vmul.f32 %v380, 1.442695
    %v409 = vpow.pop %v408
    %v410 = vmul.f32 %v381, 1.442695
    %v411 = vpow.pop %v410
    %v412 = vmul.f32 %v382, 1.442695
    %v413 = vpow.pop %v412
    %v414 = vmul.f32 %v383, 1.442695
    %v415 = vpow.pop %v414
    %v416 = vmul.f32 %v385, 0.016666668
    %v417 = vmul.f32 %v387, 0.016666668
    %v418 = vmul.f32 %v389, 0.016666668
    %v419 = vmul.f32 %v391, 0.016666668
    %v420 = vmul.f32 %v393, 0.016666668
    %v421 = vmul.f32 %v395, 0.016666668
    %v422 = vmul.f32 %v397, 0.016666668
    %v423 = vmul.f32 %v399, 0.016666668
    %v424 = vmul.f32 %v401, 0.016666668
    %v425 = vmul.f32 %v403, 0.016666668
    %v426 = vmul.f32 %v405, 0.016666668
    %v427 = vmul.f32 %v407, 0.016666668
    %v428 = vmul.f32 %v409, 0.016666668
    %v429 = vmul.f32 %v411, 0.016666668
    %v430 = vmul.f32 %v413, 0.016666668
    %v431 = vmul.f32 %v415, 0.016666668
    %v432 = vadd.f32 %v262, 1.0
    %v433 = vadd.f32 %v269, 1.0
    %v434 = vadd.f32 %v276, 1.0
    %v435 = vadd.f32 %v283, 1.0
    %v436 = vadd.f32 %v290, 1.0
    %v437 = vadd.f32 %v297, 1.0
    %v438 = vadd.f32 %v304, 1.0
    %v439 = vadd.f32 %v311, 1.0
    %v440 = vadd.f32 %v318, 1.0
    %v441 = vadd.f32 %v325, 1.0
    %v442 = vadd.f32 %v332, 1.0
    %v443 = vadd.f32 %v339, 1.0
    %v444 = vadd.f32 %v346, 1.0
    %v445 = vadd.f32 %v353, 1.0
    %v446 = vadd.f32 %v360, 1.0
    %v447 = vadd.f32 %v367, 1.0
    %v448 = vmul.f32 %v416, %v432
    %v449 = vmul.f32 %v417, %v433
    %v450 = vmul.f32 %v418, %v434
    %v451 = vmul.f32 %v419, %v435
    %v452 = vmul.f32 %v420, %v436
    %v453 = vmul.f32 %v421, %v437
    %v454 = vmul.f32 %v422, %v438
    %v455 = vmul.f32 %v423, %v439
    %v456 = vmul.f32 %v424, %v440
    %v457 = vmul.f32 %v425, %v441
    %v458 = vmul.f32 %v426, %v442
    %v459 = vmul.f32 %v427, %v443
    %v460 = vmul.f32 %v428, %v444
    %v461 = vmul.f32 %v429, %v445
    %v462 = vmul.f32 %v430, %v446
    %v463 = vmul.f32 %v431, %v447
    %v464 = vlaneseq
    %v465 = vshrl.u32 %v464, 7
    %v466 = vsub.s32 0, %v465
    %v467 = vrot.slane %v18, %v466
    %v468 = vsub.f32 %v52, %v467
    %v469 = vmul.f32 %v468, 0.2236068
    %v471 = vsel %vm207, %v469, 0
    %vm473 = vcmask 1041408
    %v475 = vsel %vm473, %v21, 0
    %477 = vmatprep.subr.mxu0 0.0
    %478 = vmatpush1.msra.mxu0 0.0
    %479 = vmatprep.subr.mxu0 0.0
    %480 = vmatpush1.msra.mxu0 0.0
    %481 = vmatprep.subr.mxu0 0.0
    %482 = vmatpush1.msra.mxu0 0.0
    %483 = vmatprep.subr.mxu0 0.0
    %484 = vmatpush1.msra.mxu0 0.0
    %485 = vmatprep.subr.mxu0 0.0
    %486 = vmatpush1.msra.mxu0 0.0
    %487 = vmatprep.subr.mxu0 0.0
    %488 = vmatpush1.msra.mxu0 0.0
    %489 = vmatprep.subr.mxu0 0.0
    %490 = vmatpush1.msra.mxu0 0.0
    %491 = vmatprep.subr.mxu0 0.0
    %492 = vmatpush1.msra.mxu0 0.0
    %493 = vmatprep.subr.mxu0 0.0
    %494 = vmatpush1.msra.mxu0 0.0
    %495 = vmatprep.subr.mxu0 0.0
    %496 = vmatpush1.msra.mxu0 0.0
    %497 = vmatprep.subr.mxu0 0.0
    %498 = vmatpush1.msra.mxu0 0.0
    %499 = vmatprep.subr.mxu0 0.0
    %500 = vmatpush1.msra.mxu0 0.0
    %501 = vmatprep.subr.mxu0 0.0
    %502 = vmatpush1.msra.mxu0 0.0
    %503 = vmatprep.subr.mxu0 0.0
    %504 = vmatpush1.msra.mxu0 0.0
    %505 = vmatprep.subr.mxu0 0.0
    %506 = vmatpush1.msra.mxu0 %v475
    %507 = vmatprep.subr.mxu0 0.0
    %508 = vmatpush1.msra.mxu0 %v20
    %509 = vmatprep.subr.mxu0 0.0
    %510 = vmatpush2.msra.mxu0 0.0
    %511 = vmatprep.subr.mxu0 0.0
    %512 = vmatpush2.msra.mxu0 0.0
    %513 = vmatprep.subr.mxu0 0.0
    %514 = vmatpush2.msra.mxu0 0.0
    %515 = vmatprep.subr.mxu0 0.0
    %516 = vmatpush2.msra.mxu0 0.0
    %517 = vmatprep.subr.mxu0 0.0
    %518 = vmatpush2.msra.mxu0 0.0
    %519 = vmatprep.subr.mxu0 0.0
    %520 = vmatpush2.msra.mxu0 0.0
    %521 = vmatprep.subr.mxu0 0.0
    %522 = vmatpush2.msra.mxu0 0.0
    %523 = vmatprep.subr.mxu0 0.0
    %524 = vmatpush2.msra.mxu0 0.0
    %525 = vmatprep.subr.mxu0 0.0
    %526 = vmatpush2.msra.mxu0 0.0
    %527 = vmatprep.subr.mxu0 0.0
    %528 = vmatpush2.msra.mxu0 0.0
    %529 = vmatprep.subr.mxu0 0.0
    %530 = vmatpush2.msra.mxu0 0.0
    %531 = vmatprep.subr.mxu0 0.0
    %532 = vmatpush2.msra.mxu0 0.0
    %533 = vmatprep.subr.mxu0 0.0
    %534 = vmatpush2.msra.mxu0 0.0
    %535 = vmatprep.subr.mxu0 0.0
    %536 = vmatpush2.msra.mxu0 0.0
    %537 = vmatprep.subr.mxu0 0.0
    %538 = vmatpush2.msra.mxu0 0.0
    %539 = vmatprep.subr.mxu0 0.0
    %540 = vmatpush2.msra.mxu0 0.0
    %541 = vmatprep.mubr.f32.mxu0 0.0
    %542 = vmatmul.mubr.f32.gmra.mxu0 %v471
    %v543 = vpop.f32.mrf.mxu0
    %v544 = vadd.f32 0.0, %v543
    %v545 = vpop.f32.mrf.mxu0
    %546 = vdwg.mxu0
    %v548 = vcombine.high %v544, %v544
    %v550 = vunpack.c.l.s4 1966171168
    %v551 = vunpack.c.0.s8 %v550
    %v552 = vlaneseq
    %v553 = vshrl.u32 %v552, 7
    %v554 = vsub.s32 %v551, %v553
    %v555 = vrot.slane %v544, %v554
    %v557 = vunpack.c.l.s4 1966171168
    %v558 = vunpack.c.0.s8 %v557
    %v559 = vlaneseq
    %v560 = vshrl.u32 %v559, 7
    %v561 = vsub.s32 %v558, %v560
    %v562 = vrot.slane %v548, %v561
    %v563 = vcombine.high %v555, %v555
    %v564 = vcombine.high %v562, %v562
    %v566 = vunpack.c.l.s4 1966171168
    %v567 = vunpack.c.0.s8 %v566
    %v568 = vlaneseq
    %v569 = vshrl.u32 %v568, 7
    %v570 = vsub.s32 %v567, %v569
    %v571 = vrot.slane %v555, %v570
    %v573 = vunpack.c.l.s4 1966171168
    %v574 = vunpack.c.0.s8 %v573
    %v575 = vlaneseq
    %v576 = vshrl.u32 %v575, 7
    %v577 = vsub.s32 %v574, %v576
    %v578 = vrot.slane %v562, %v577
    %v580 = vunpack.c.l.s4 1966171168
    %v581 = vunpack.c.0.s8 %v580
    %v582 = vlaneseq
    %v583 = vshrl.u32 %v582, 7
    %v584 = vsub.s32 %v581, %v583
    %v585 = vrot.slane %v563, %v584
    %v587 = vunpack.c.l.s4 1966171168
    %v588 = vunpack.c.0.s8 %v587
    %v589 = vlaneseq
    %v590 = vshrl.u32 %v589, 7
    %v591 = vsub.s32 %v588, %v590
    %v592 = vrot.slane %v564, %v591
    %v593 = vcombine.high %v571, %v571
    %v594 = vcombine.high %v578, %v578
    %v595 = vcombine.high %v585, %v585
    %v596 = vcombine.high %v592, %v592
    %605 = vst [vmem:[#allocation2] sm:$0x1] %v571
    %606 = vst [vmem:[#allocation2 + $0x10] sm:$0x1] %v585
    %607 = vst [vmem:[#allocation2 + $0x20] sm:$0x1] %v593
    %608 = vst [vmem:[#allocation2 + $0x30] sm:$0x1] %v595
    %609 = vst [vmem:[#allocation2 + $0x40] sm:$0x1] %v578
    %610 = vst [vmem:[#allocation2 + $0x50] sm:$0x1] %v592
    %611 = vst [vmem:[#allocation2 + $0x60] sm:$0x1] %v594
    %612 = vst [vmem:[#allocation2 + $0x70] sm:$0x1] %v596
    %v613 = vlaneseq
    %v614 = vshrl.u32 %v613, 7
    %v615 = vsub.s32 1, %v614
    %v616 = vrot.slane %v18, %v615
    %v617 = vsub.f32 %v52, %v616
    %v618 = vmul.f32 %v617, 0.2236068
    %v620 = vsel %vm207, %v618, 0
    %v623 = vsel %vm473, %v23, 0
    %625 = vmatprep.subr.mxu0 0.0
    %626 = vmatpush1.msra.mxu0 0.0
    %627 = vmatprep.subr.mxu0 0.0
    %628 = vmatpush1.msra.mxu0 0.0
    %629 = vmatprep.subr.mxu0 0.0
    %630 = vmatpush1.msra.mxu0 0.0
    %631 = vmatprep.subr.mxu0 0.0
    %632 = vmatpush1.msra.mxu0 0.0
    %633 = vmatprep.subr.mxu0 0.0
    %634 = vmatpush1.msra.mxu0 0.0
    %635 = vmatprep.subr.mxu0 0.0
    %636 = vmatpush1.msra.mxu0 0.0
    %637 = vmatprep.subr.mxu0 0.0
    %638 = vmatpush1.msra.mxu0 0.0
    %639 = vmatprep.subr.mxu0 0.0
    %640 = vmatpush1.msra.mxu0 0.0
    %641 = vmatprep.subr.mxu0 0.0
    %642 = vmatpush1.msra.mxu0 0.0
    %643 = vmatprep.subr.mxu0 0.0
    %644 = vmatpush1.msra.mxu0 0.0
    %645 = vmatprep.subr.mxu0 0.0
    %646 = vmatpush1.msra.mxu0 0.0
    %647 = vmatprep.subr.mxu0 0.0
    %648 = vmatpush1.msra.mxu0 0.0
    %649 = vmatprep.subr.mxu0 0.0
    %650 = vmatpush1.msra.mxu0 0.0
    %651 = vmatprep.subr.mxu0 0.0
    %652 = vmatpush1.msra.mxu0 0.0
    %653 = vmatprep.subr.mxu0 0.0
    %654 = vmatpush1.msra.mxu0 %v623
    %655 = vmatprep.subr.mxu0 0.0
    %656 = vmatpush1.msra.mxu0 %v22
    %657 = vmatprep.subr.mxu0 0.0
    %658 = vmatpush2.msra.mxu0 0.0
    %659 = vmatprep.subr.mxu0 0.0
    %660 = vmatpush2.msra.mxu0 0.0
    %661 = vmatprep.subr.mxu0 0.0
    %662 = vmatpush2.msra.mxu0 0.0
    %663 = vmatprep.subr.mxu0 0.0
    %664 = vmatpush2.msra.mxu0 0.0
    %665 = vmatprep.subr.mxu0 0.0
    %666 = vmatpush2.msra.mxu0 0.0
    %667 = vmatprep.subr.mxu0 0.0
    %668 = vmatpush2.msra.mxu0 0.0
    %669 = vmatprep.subr.mxu0 0.0
    %670 = vmatpush2.msra.mxu0 0.0
    %671 = vmatprep.subr.mxu0 0.0
    %672 = vmatpush2.msra.mxu0 0.0
    %673 = vmatprep.subr.mxu0 0.0
    %674 = vmatpush2.msra.mxu0 0.0
    %675 = vmatprep.subr.mxu0 0.0
    %676 = vmatpush2.msra.mxu0 0.0
    %677 = vmatprep.subr.mxu0 0.0
    %678 = vmatpush2.msra.mxu0 0.0
    %679 = vmatprep.subr.mxu0 0.0
    %680 = vmatpush2.msra.mxu0 0.0
    %681 = vmatprep.subr.mxu0 0.0
    %682 = vmatpush2.msra.mxu0 0.0
    %683 = vmatprep.subr.mxu0 0.0
    %684 = vmatpush2.msra.mxu0 0.0
    %685 = vmatprep.subr.mxu0 0.0
    %686 = vmatpush2.msra.mxu0 0.0
    %687 = vmatprep.subr.mxu0 0.0
    %688 = vmatpush2.msra.mxu0 0.0
    %689 = vmatprep.mubr.f32.mxu0 0.0
    %690 = vmatmul.mubr.f32.gmra.mxu0 %v620
    %v691 = vpop.f32.mrf.mxu0
    %v692 = vadd.f32 0.0, %v691
    %v693 = vpop.f32.mrf.mxu0
    %694 = vdwg.mxu0
    %v696 = vcombine.high %v692, %v692
    %v698 = vunpack.c.l.s4 1966171168
    %v699 = vunpack.c.0.s8 %v698
    %v700 = vlaneseq
    %v701 = vshrl.u32 %v700, 7
    %v702 = vsub.s32 %v699, %v701
    %v703 = vrot.slane %v692, %v702
    %v705 = vunpack.c.l.s4 1966171168
    %v706 = vunpack.c.0.s8 %v705
    %v707 = vlaneseq
    %v708 = vshrl.u32 %v707, 7
    %v709 = vsub.s32 %v706, %v708
    %v710 = vrot.slane %v696, %v709
    %v711 = vcombine.high %v703, %v703
    %v712 = vcombine.high %v710, %v710
    %v714 = vunpack.c.l.s4 1966171168
    %v715 = vunpack.c.0.s8 %v714
    %v716 = vlaneseq
    %v717 = vshrl.u32 %v716, 7
    %v718 = vsub.s32 %v715, %v717
    %v719 = vrot.slane %v703, %v718
    %v721 = vunpack.c.l.s4 1966171168
    %v722 = vunpack.c.0.s8 %v721
    %v723 = vlaneseq
    %v724 = vshrl.u32 %v723, 7
    %v725 = vsub.s32 %v722, %v724
    %v726 = vrot.slane %v710, %v725
    %v728 = vunpack.c.l.s4 1966171168
    %v729 = vunpack.c.0.s8 %v728
    %v730 = vlaneseq
    %v731 = vshrl.u32 %v730, 7
    %v732 = vsub.s32 %v729, %v731
    %v733 = vrot.slane %v711, %v732
    %v735 = vunpack.c.l.s4 1966171168
    %v736 = vunpack.c.0.s8 %v735
    %v737 = vlaneseq
    %v738 = vshrl.u32 %v737, 7
    %v739 = vsub.s32 %v736, %v738
    %v740 = vrot.slane %v712, %v739
    %v741 = vcombine.high %v719, %v719
    %v742 = vcombine.high %v726, %v726
    %v743 = vcombine.high %v733, %v733
    %v744 = vcombine.high %v740, %v740
    %753 = vst [vmem:[#allocation2 + $0x1] sm:$0x1] %v719
    %754 = vst [vmem:[#allocation2 + $0x11] sm:$0x1] %v733
    %755 = vst [vmem:[#allocation2 + $0x21] sm:$0x1] %v741
    %756 = vst [vmem:[#allocation2 + $0x31] sm:$0x1] %v743
    %757 = vst [vmem:[#allocation2 + $0x41] sm:$0x1] %v726
    %758 = vst [vmem:[#allocation2 + $0x51] sm:$0x1] %v740
    %759 = vst [vmem:[#allocation2 + $0x61] sm:$0x1] %v742
    %760 = vst [vmem:[#allocation2 + $0x71] sm:$0x1] %v744
    %v761 = vlaneseq
    %v762 = vshrl.u32 %v761, 7
    %v763 = vsub.s32 2, %v762
    %v764 = vrot.slane %v18, %v763
    %v765 = vsub.f32 %v52, %v764
    %v766 = vmul.f32 %v765, 0.2236068
    %v768 = vsel %vm207, %v766, 0
    %v771 = vsel %vm473, %v25, 0
    %773 = vmatprep.subr.mxu0 0.0
    %774 = vmatpush1.msra.mxu0 0.0
    %775 = vmatprep.subr.mxu0 0.0
    %776 = vmatpush1.msra.mxu0 0.0
    %777 = vmatprep.subr.mxu0 0.0
    %778 = vmatpush1.msra.mxu0 0.0
    %779 = vmatprep.subr.mxu0 0.0
    %780 = vmatpush1.msra.mxu0 0.0
    %781 = vmatprep.subr.mxu0 0.0
    %782 = vmatpush1.msra.mxu0 0.0
    %783 = vmatprep.subr.mxu0 0.0
    %784 = vmatpush1.msra.mxu0 0.0
    %785 = vmatprep.subr.mxu0 0.0
    %786 = vmatpush1.msra.mxu0 0.0
    %787 = vmatprep.subr.mxu0 0.0
    %788 = vmatpush1.msra.mxu0 0.0
    %789 = vmatprep.subr.mxu0 0.0
    %790 = vmatpush1.msra.mxu0 0.0
    %791 = vmatprep.subr.mxu0 0.0
    %792 = vmatpush1.msra.mxu0 0.0
    %793 = vmatprep.subr.mxu0 0.0
    %794 = vmatpush1.msra.mxu0 0.0
    %795 = vmatprep.subr.mxu0 0.0
    %796 = vmatpush1.msra.mxu0 0.0
    %797 = vmatprep.subr.mxu0 0.0
    %798 = vmatpush1.msra.mxu0 0.0
    %799 = vmatprep.subr.mxu0 0.0
    %800 = vmatpush1.msra.mxu0 0.0
    %801 = vmatprep.subr.mxu0 0.0
    %802 = vmatpush1.msra.mxu0 %v771
    %803 = vmatprep.subr.mxu0 0.0
    %804 = vmatpush1.msra.mxu0 %v24
    %805 = vmatprep.subr.mxu0 0.0
    %806 = vmatpush2.msra.mxu0 0.0
    %807 = vmatprep.subr.mxu0 0.0
    %808 = vmatpush2.msra.mxu0 0.0
    %809 = vmatprep.subr.mxu0 0.0
    %810 = vmatpush2.msra.mxu0 0.0
    %811 = vmatprep.subr.mxu0 0.0
    %812 = vmatpush2.msra.mxu0 0.0
    %813 = vmatprep.subr.mxu0 0.0
    %814 = vmatpush2.msra.mxu0 0.0
    %815 = vmatprep.subr.mxu0 0.0
    %816 = vmatpush2.msra.mxu0 0.0
    %817 = vmatprep.subr.mxu0 0.0
    %818 = vmatpush2.msra.mxu0 0.0
    %819 = vmatprep.subr.mxu0 0.0
    %820 = vmatpush2.msra.mxu0 0.0
    %821 = vmatprep.subr.mxu0 0.0
    %822 = vmatpush2.msra.mxu0 0.0
    %823 = vmatprep.subr.mxu0 0.0
    %824 = vmatpush2.msra.mxu0 0.0
    %825 = vmatprep.subr.mxu0 0.0
    %826 = vmatpush2.msra.mxu0 0.0
    %827 = vmatprep.subr.mxu0 0.0
    %828 = vmatpush2.msra.mxu0 0.0
    %829 = vmatprep.subr.mxu0 0.0
    %830 = vmatpush2.msra.mxu0 0.0
    %831 = vmatprep.subr.mxu0 0.0
    %832 = vmatpush2.msra.mxu0 0.0
    %833 = vmatprep.subr.mxu0 0.0
    %834 = vmatpush2.msra.mxu0 0.0
    %835 = vmatprep.subr.mxu0 0.0
    %836 = vmatpush2.msra.mxu0 0.0
    %837 = vmatprep.mubr.f32.mxu0 0.0
    %838 = vmatmul.mubr.f32.gmra.mxu0 %v768
    %v839 = vpop.f32.mrf.mxu0
    %v840 = vadd.f32 0.0, %v839
    %v841 = vpop.f32.mrf.mxu0
    %842 = vdwg.mxu0
    %v844 = vcombine.high %v840, %v840
    %v846 = vunpack.c.l.s4 1966171168
    %v847 = vunpack.c.0.s8 %v846
    %v848 = vlaneseq
    %v849 = vshrl.u32 %v848, 7
    %v850 = vsub.s32 %v847, %v849
    %v851 = vrot.slane %v840, %v850
    %v853 = vunpack.c.l.s4 1966171168
    %v854 = vunpack.c.0.s8 %v853
    %v855 = vlaneseq
    %v856 = vshrl.u32 %v855, 7
    %v857 = vsub.s32 %v854, %v856
    %v858 = vrot.slane %v844, %v857
    %v859 = vcombine.high %v851, %v851
    %v860 = vcombine.high %v858, %v858
    %v862 = vunpack.c.l.s4 1966171168
    %v863 = vunpack.c.0.s8 %v862
    %v864 = vlaneseq
    %v865 = vshrl.u32 %v864, 7
    %v866 = vsub.s32 %v863, %v865
    %v867 = vrot.slane %v851, %v866
    %v869 = vunpack.c.l.s4 1966171168
    %v870 = vunpack.c.0.s8 %v869
    %v871 = vlaneseq
    %v872 = vshrl.u32 %v871, 7
    %v873 = vsub.s32 %v870, %v872
    %v874 = vrot.slane %v858, %v873
    %v876 = vunpack.c.l.s4 1966171168
    %v877 = vunpack.c.0.s8 %v876
    %v878 = vlaneseq
    %v879 = vshrl.u32 %v878, 7
    %v880 = vsub.s32 %v877, %v879
    %v881 = vrot.slane %v859, %v880
    %v883 = vunpack.c.l.s4 1966171168
    %v884 = vunpack.c.0.s8 %v883
    %v885 = vlaneseq
    %v886 = vshrl.u32 %v885, 7
    %v887 = vsub.s32 %v884, %v886
    %v888 = vrot.slane %v860, %v887
    %v889 = vcombine.high %v867, %v867
    %v890 = vcombine.high %v874, %v874
    %v891 = vcombine.high %v881, %v881
    %v892 = vcombine.high %v888, %v888
    %901 = vst [vmem:[#allocation2 + $0x2] sm:$0x1] %v867
    %902 = vst [vmem:[#allocation2 + $0x12] sm:$0x1] %v881
    %903 = vst [vmem:[#allocation2 + $0x22] sm:$0x1] %v889
    %904 = vst [vmem:[#allocation2 + $0x32] sm:$0x1] %v891
    %905 = vst [vmem:[#allocation2 + $0x42] sm:$0x1] %v874
    %906 = vst [vmem:[#allocation2 + $0x52] sm:$0x1] %v888
    %907 = vst [vmem:[#allocation2 + $0x62] sm:$0x1] %v890
    %908 = vst [vmem:[#allocation2 + $0x72] sm:$0x1] %v892
    %v909 = vlaneseq
    %v910 = vshrl.u32 %v909, 7
    %v911 = vsub.s32 3, %v910
    %v912 = vrot.slane %v18, %v911
    %v913 = vsub.f32 %v52, %v912
    %v914 = vmul.f32 %v913, 0.2236068
    %v916 = vsel %vm207, %v914, 0
    %v919 = vsel %vm473, %v27, 0
    %921 = vmatprep.subr.mxu0 0.0
    %922 = vmatpush1.msra.mxu0 0.0
    %923 = vmatprep.subr.mxu0 0.0
    %924 = vmatpush1.msra.mxu0 0.0
    %925 = vmatprep.subr.mxu0 0.0
    %926 = vmatpush1.msra.mxu0 0.0
    %927 = vmatprep.subr.mxu0 0.0
    %928 = vmatpush1.msra.mxu0 0.0
    %929 = vmatprep.subr.mxu0 0.0
    %930 = vmatpush1.msra.mxu0 0.0
    %931 = vmatprep.subr.mxu0 0.0
    %932 = vmatpush1.msra.mxu0 0.0
    %933 = vmatprep.subr.mxu0 0.0
    %934 = vmatpush1.msra.mxu0 0.0
    %935 = vmatprep.subr.mxu0 0.0
    %936 = vmatpush1.msra.mxu0 0.0
    %937 = vmatprep.subr.mxu0 0.0
    %938 = vmatpush1.msra.mxu0 0.0
    %939 = vmatprep.subr.mxu0 0.0
    %940 = vmatpush1.msra.mxu0 0.0
    %941 = vmatprep.subr.mxu0 0.0
    %942 = vmatpush1.msra.mxu0 0.0
    %943 = vmatprep.subr.mxu0 0.0
    %944 = vmatpush1.msra.mxu0 0.0
    %945 = vmatprep.subr.mxu0 0.0
    %946 = vmatpush1.msra.mxu0 0.0
    %947 = vmatprep.subr.mxu0 0.0
    %948 = vmatpush1.msra.mxu0 0.0
    %949 = vmatprep.subr.mxu0 0.0
    %950 = vmatpush1.msra.mxu0 %v919
    %951 = vmatprep.subr.mxu0 0.0
    %952 = vmatpush1.msra.mxu0 %v26
    %953 = vmatprep.subr.mxu0 0.0
    %954 = vmatpush2.msra.mxu0 0.0
    %955 = vmatprep.subr.mxu0 0.0
    %956 = vmatpush2.msra.mxu0 0.0
    %957 = vmatprep.subr.mxu0 0.0
    %958 = vmatpush2.msra.mxu0 0.0
    %959 = vmatprep.subr.mxu0 0.0
    %960 = vmatpush2.msra.mxu0 0.0
    %961 = vmatprep.subr.mxu0 0.0
    %962 = vmatpush2.msra.mxu0 0.0
    %963 = vmatprep.subr.mxu0 0.0
    %964 = vmatpush2.msra.mxu0 0.0
    %965 = vmatprep.subr.mxu0 0.0
    %966 = vmatpush2.msra.mxu0 0.0
    %967 = vmatprep.subr.mxu0 0.0
    %968 = vmatpush2.msra.mxu0 0.0
    %969 = vmatprep.subr.mxu0 0.0
    %970 = vmatpush2.msra.mxu0 0.0
    %971 = vmatprep.subr.mxu0 0.0
    %972 = vmatpush2.msra.mxu0 0.0
    %973 = vmatprep.subr.mxu0 0.0
    %974 = vmatpush2.msra.mxu0 0.0
    %975 = vmatprep.subr.mxu0 0.0
    %976 = vmatpush2.msra.mxu0 0.0
    %977 = vmatprep.subr.mxu0 0.0
    %978 = vmatpush2.msra.mxu0 0.0
    %979 = vmatprep.subr.mxu0 0.0
    %980 = vmatpush2.msra.mxu0 0.0
    %981 = vmatprep.subr.mxu0 0.0
    %982 = vmatpush2.msra.mxu0 0.0
    %983 = vmatprep.subr.mxu0 0.0
    %984 = vmatpush2.msra.mxu0 0.0
    %985 = vmatprep.mubr.f32.mxu0 0.0
    %986 = vmatmul.mubr.f32.gmra.mxu0 %v916
    %v987 = vpop.f32.mrf.mxu0
    %v988 = vadd.f32 0.0, %v987
    %v989 = vpop.f32.mrf.mxu0
    %990 = vdwg.mxu0
    %v992 = vcombine.high %v988, %v988
    %v994 = vunpack.c.l.s4 1966171168
    %v995 = vunpack.c.0.s8 %v994
    %v996 = vlaneseq
    %v997 = vshrl.u32 %v996, 7
    %v998 = vsub.s32 %v995, %v997
    %v999 = vrot.slane %v988, %v998
    %v1001 = vunpack.c.l.s4 1966171168
    %v1002 = vunpack.c.0.s8 %v1001
    %v1003 = vlaneseq
    %v1004 = vshrl.u32 %v1003, 7
    %v1005 = vsub.s32 %v1002, %v1004
    %v1006 = vrot.slane %v992, %v1005
    %v1007 = vcombine.high %v999, %v999
    %v1008 = vcombine.high %v1006, %v1006
    %v1010 = vunpack.c.l.s4 1966171168
    %v1011 = vunpack.c.0.s8 %v1010
    %v1012 = vlaneseq
    %v1013 = vshrl.u32 %v1012, 7
    %v1014 = vsub.s32 %v1011, %v1013
    %v1015 = vrot.slane %v999, %v1014
    %v1017 = vunpack.c.l.s4 1966171168
    %v1018 = vunpack.c.0.s8 %v1017
    %v1019 = vlaneseq
    %v1020 = vshrl.u32 %v1019, 7
    %v1021 = vsub.s32 %v1018, %v1020
    %v1022 = vrot.slane %v1006, %v1021
    %v1024 = vunpack.c.l.s4 1966171168
    %v1025 = vunpack.c.0.s8 %v1024
    %v1026 = vlaneseq
    %v1027 = vshrl.u32 %v1026, 7
    %v1028 = vsub.s32 %v1025, %v1027
    %v1029 = vrot.slane %v1007, %v1028
    %v1031 = vunpack.c.l.s4 1966171168
    %v1032 = vunpack.c.0.s8 %v1031
    %v1033 = vlaneseq
    %v1034 = vshrl.u32 %v1033, 7
    %v1035 = vsub.s32 %v1032, %v1034
    %v1036 = vrot.slane %v1008, %v1035
    %v1037 = vcombine.high %v1015, %v1015
    %v1038 = vcombine.high %v1022, %v1022
    %v1039 = vcombine.high %v1029, %v1029
    %v1040 = vcombine.high %v1036, %v1036
    %1049 = vst [vmem:[#allocation2 + $0x3] sm:$0x1] %v1015
    %1050 = vst [vmem:[#allocation2 + $0x13] sm:$0x1] %v1029
    %1051 = vst [vmem:[#allocation2 + $0x23] sm:$0x1] %v1037
    %1052 = vst [vmem:[#allocation2 + $0x33] sm:$0x1] %v1039
    %1053 = vst [vmem:[#allocation2 + $0x43] sm:$0x1] %v1022
    %1054 = vst [vmem:[#allocation2 + $0x53] sm:$0x1] %v1036
    %1055 = vst [vmem:[#allocation2 + $0x63] sm:$0x1] %v1038
    %1056 = vst [vmem:[#allocation2 + $0x73] sm:$0x1] %v1040
    %v1057 = vlaneseq
    %v1058 = vshrl.u32 %v1057, 7
    %v1059 = vsub.s32 4, %v1058
    %v1060 = vrot.slane %v18, %v1059
    %v1061 = vsub.f32 %v52, %v1060
    %v1062 = vmul.f32 %v1061, 0.2236068
    %v1064 = vsel %vm207, %v1062, 0
    %v1067 = vsel %vm473, %v29, 0
    %1069 = vmatprep.subr.mxu0 0.0
    %1070 = vmatpush1.msra.mxu0 0.0
    %1071 = vmatprep.subr.mxu0 0.0
    %1072 = vmatpush1.msra.mxu0 0.0
    %1073 = vmatprep.subr.mxu0 0.0
    %1074 = vmatpush1.msra.mxu0 0.0
    %1075 = vmatprep.subr.mxu0 0.0
    %1076 = vmatpush1.msra.mxu0 0.0
    %1077 = vmatprep.subr.mxu0 0.0
    %1078 = vmatpush1.msra.mxu0 0.0
    %1079 = vmatprep.subr.mxu0 0.0
    %1080 = vmatpush1.msra.mxu0 0.0
    %1081 = vmatprep.subr.mxu0 0.0
    %1082 = vmatpush1.msra.mxu0 0.0
    %1083 = vmatprep.subr.mxu0 0.0
    %1084 = vmatpush1.msra.mxu0 0.0
    %1085 = vmatprep.subr.mxu0 0.0
    %1086 = vmatpush1.msra.mxu0 0.0
    %1087 = vmatprep.subr.mxu0 0.0
    %1088 = vmatpush1.msra.mxu0 0.0
    %1089 = vmatprep.subr.mxu0 0.0
    %1090 = vmatpush1.msra.mxu0 0.0
    %1091 = vmatprep.subr.mxu0 0.0
    %1092 = vmatpush1.msra.mxu0 0.0
    %1093 = vmatprep.subr.mxu0 0.0
    %1094 = vmatpush1.msra.mxu0 0.0
    %1095 = vmatprep.subr.mxu0 0.0
    %1096 = vmatpush1.msra.mxu0 0.0
    %1097 = vmatprep.subr.mxu0 0.0
    %1098 = vmatpush1.msra.mxu0 %v1067
    %1099 = vmatprep.subr.mxu0 0.0
    %1100 = vmatpush1.msra.mxu0 %v28
    %1101 = vmatprep.subr.mxu0 0.0
    %1102 = vmatpush2.msra.mxu0 0.0
    %1103 = vmatprep.subr.mxu0 0.0
    %1104 = vmatpush2.msra.mxu0 0.0
    %1105 = vmatprep.subr.mxu0 0.0
    %1106 = vmatpush2.msra.mxu0 0.0
    %1107 = vmatprep.subr.mxu0 0.0
    %1108 = vmatpush2.msra.mxu0 0.0
    %1109 = vmatprep.subr.mxu0 0.0
    %1110 = vmatpush2.msra.mxu0 0.0
    %1111 = vmatprep.subr.mxu0 0.0
    %1112 = vmatpush2.msra.mxu0 0.0
    %1113 = vmatprep.subr.mxu0 0.0
    %1114 = vmatpush2.msra.mxu0 0.0
    %1115 = vmatprep.subr.mxu0 0.0
    %1116 = vmatpush2.msra.mxu0 0.0
    %1117 = vmatprep.subr.mxu0 0.0
    %1118 = vmatpush2.msra.mxu0 0.0
    %1119 = vmatprep.subr.mxu0 0.0
    %1120 = vmatpush2.msra.mxu0 0.0
    %1121 = vmatprep.subr.mxu0 0.0
    %1122 = vmatpush2.msra.mxu0 0.0
    %1123 = vmatprep.subr.mxu0 0.0
    %1124 = vmatpush2.msra.mxu0 0.0
    %1125 = vmatprep.subr.mxu0 0.0
    %1126 = vmatpush2.msra.mxu0 0.0
    %1127 = vmatprep.subr.mxu0 0.0
    %1128 = vmatpush2.msra.mxu0 0.0
    %1129 = vmatprep.subr.mxu0 0.0
    %1130 = vmatpush2.msra.mxu0 0.0
    %1131 = vmatprep.subr.mxu0 0.0
    %1132 = vmatpush2.msra.mxu0 0.0
    %1133 = vmatprep.mubr.f32.mxu0 0.0
    %1134 = vmatmul.mubr.f32.gmra.mxu0 %v1064
    %v1135 = vpop.f32.mrf.mxu0
    %v1136 = vadd.f32 0.0, %v1135
    %v1137 = vpop.f32.mrf.mxu0
    %1138 = vdwg.mxu0
    %v1140 = vcombine.high %v1136, %v1136
    %v1142 = vunpack.c.l.s4 1966171168
    %v1143 = vunpack.c.0.s8 %v1142
    %v1144 = vlaneseq
    %v1145 = vshrl.u32 %v1144, 7
    %v1146 = vsub.s32 %v1143, %v1145
    %v1147 = vrot.slane %v1136, %v1146
    %v1149 = vunpack.c.l.s4 1966171168
    %v1150 = vunpack.c.0.s8 %v1149
    %v1151 = vlaneseq
    %v1152 = vshrl.u32 %v1151, 7
    %v1153 = vsub.s32 %v1150, %v1152
    %v1154 = vrot.slane %v1140, %v1153
    %v1155 = vcombine.high %v1147, %v1147
    %v1156 = vcombine.high %v1154, %v1154
    %v1158 = vunpack.c.l.s4 1966171168
    %v1159 = vunpack.c.0.s8 %v1158
    %v1160 = vlaneseq
    %v1161 = vshrl.u32 %v1160, 7
    %v1162 = vsub.s32 %v1159, %v1161
    %v1163 = vrot.slane %v1147, %v1162
    %v1165 = vunpack.c.l.s4 1966171168
    %v1166 = vunpack.c.0.s8 %v1165
    %v1167 = vlaneseq
    %v1168 = vshrl.u32 %v1167, 7
    %v1169 = vsub.s32 %v1166, %v1168
    %v1170 = vrot.slane %v1154, %v1169
    %v1172 = vunpack.c.l.s4 1966171168
    %v1173 = vunpack.c.0.s8 %v1172
    %v1174 = vlaneseq
    %v1175 = vshrl.u32 %v1174, 7
    %v1176 = vsub.s32 %v1173, %v1175
    %v1177 = vrot.slane %v1155, %v1176
    %v1179 = vunpack.c.l.s4 1966171168
    %v1180 = vunpack.c.0.s8 %v1179
    %v1181 = vlaneseq
    %v1182 = vshrl.u32 %v1181, 7
    %v1183 = vsub.s32 %v1180, %v1182
    %v1184 = vrot.slane %v1156, %v1183
    %v1185 = vcombine.high %v1163, %v1163
    %v1186 = vcombine.high %v1170, %v1170
    %v1187 = vcombine.high %v1177, %v1177
    %v1188 = vcombine.high %v1184, %v1184
    %1197 = vst [vmem:[#allocation2 + $0x4] sm:$0x1] %v1163
    %1198 = vst [vmem:[#allocation2 + $0x14] sm:$0x1] %v1177
    %1199 = vst [vmem:[#allocation2 + $0x24] sm:$0x1] %v1185
    %1200 = vst [vmem:[#allocation2 + $0x34] sm:$0x1] %v1187
    %1201 = vst [vmem:[#allocation2 + $0x44] sm:$0x1] %v1170
    %1202 = vst [vmem:[#allocation2 + $0x54] sm:$0x1] %v1184
    %1203 = vst [vmem:[#allocation2 + $0x64] sm:$0x1] %v1186
    %1204 = vst [vmem:[#allocation2 + $0x74] sm:$0x1] %v1188
    %v1205 = vlaneseq
    %v1206 = vshrl.u32 %v1205, 7
    %v1207 = vsub.s32 5, %v1206
    %v1208 = vrot.slane %v18, %v1207
    %v1209 = vsub.f32 %v52, %v1208
    %v1210 = vmul.f32 %v1209, 0.2236068
    %v1212 = vsel %vm207, %v1210, 0
    %v1215 = vsel %vm473, %v31, 0
    %1217 = vmatprep.subr.mxu0 0.0
    %1218 = vmatpush1.msra.mxu0 0.0
    %1219 = vmatprep.subr.mxu0 0.0
    %1220 = vmatpush1.msra.mxu0 0.0
    %1221 = vmatprep.subr.mxu0 0.0
    %1222 = vmatpush1.msra.mxu0 0.0
    %1223 = vmatprep.subr.mxu0 0.0
    %1224 = vmatpush1.msra.mxu0 0.0
    %1225 = vmatprep.subr.mxu0 0.0
    %1226 = vmatpush1.msra.mxu0 0.0
    %1227 = vmatprep.subr.mxu0 0.0
    %1228 = vmatpush1.msra.mxu0 0.0
    %1229 = vmatprep.subr.mxu0 0.0
    %1230 = vmatpush1.msra.mxu0 0.0
    %1231 = vmatprep.subr.mxu0 0.0
    %1232 = vmatpush1.msra.mxu0 0.0
    %1233 = vmatprep.subr.mxu0 0.0
    %1234 = vmatpush1.msra.mxu0 0.0
    %1235 = vmatprep.subr.mxu0 0.0
    %1236 = vmatpush1.msra.mxu0 0.0
    %1237 = vmatprep.subr.mxu0 0.0
    %1238 = vmatpush1.msra.mxu0 0.0
    %1239 = vmatprep.subr.mxu0 0.0
    %1240 = vmatpush1.msra.mxu0 0.0
    %1241 = vmatprep.subr.mxu0 0.0
    %1242 = vmatpush1.msra.mxu0 0.0
    %1243 = vmatprep.subr.mxu0 0.0
    %1244 = vmatpush1.msra.mxu0 0.0
    %1245 = vmatprep.subr.mxu0 0.0
    %1246 = vmatpush1.msra.mxu0 %v1215
    %1247 = vmatprep.subr.mxu0 0.0
    %1248 = vmatpush1.msra.mxu0 %v30
    %1249 = vmatprep.subr.mxu0 0.0
    %1250 = vmatpush2.msra.mxu0 0.0
    %1251 = vmatprep.subr.mxu0 0.0
    %1252 = vmatpush2.msra.mxu0 0.0
    %1253 = vmatprep.subr.mxu0 0.0
    %1254 = vmatpush2.msra.mxu0 0.0
    %1255 = vmatprep.subr.mxu0 0.0
    %1256 = vmatpush2.msra.mxu0 0.0
    %1257 = vmatprep.subr.mxu0 0.0
    %1258 = vmatpush2.msra.mxu0 0.0
    %1259 = vmatprep.subr.mxu0 0.0
    %1260 = vmatpush2.msra.mxu0 0.0
    %1261 = vmatprep.subr.mxu0 0.0
    %1262 = vmatpush2.msra.mxu0 0.0
    %1263 = vmatprep.subr.mxu0 0.0
    %1264 = vmatpush2.msra.mxu0 0.0
    %1265 = vmatprep.subr.mxu0 0.0
    %1266 = vmatpush2.msra.mxu0 0.0
    %1267 = vmatprep.subr.mxu0 0.0
    %1268 = vmatpush2.msra.mxu0 0.0
    %1269 = vmatprep.subr.mxu0 0.0
    %1270 = vmatpush2.msra.mxu0 0.0
    %1271 = vmatprep.subr.mxu0 0.0
    %1272 = vmatpush2.msra.mxu0 0.0
    %1273 = vmatprep.subr.mxu0 0.0
    %1274 = vmatpush2.msra.mxu0 0.0
    %1275 = vmatprep.subr.mxu0 0.0
    %1276 = vmatpush2.msra.mxu0 0.0
    %1277 = vmatprep.subr.mxu0 0.0
    %1278 = vmatpush2.msra.mxu0 0.0
    %1279 = vmatprep.subr.mxu0 0.0
    %1280 = vmatpush2.msra.mxu0 0.0
    %1281 = vmatprep.mubr.f32.mxu0 0.0
    %1282 = vmatmul.mubr.f32.gmra.mxu0 %v1212
    %v1283 = vpop.f32.mrf.mxu0
    %v1284 = vadd.f32 0.0, %v1283
    %v1285 = vpop.f32.mrf.mxu0
    %1286 = vdwg.mxu0
    %v1288 = vcombine.high %v1284, %v1284
    %v1290 = vunpack.c.l.s4 1966171168
    %v1291 = vunpack.c.0.s8 %v1290
    %v1292 = vlaneseq
    %v1293 = vshrl.u32 %v1292, 7
    %v1294 = vsub.s32 %v1291, %v1293
    %v1295 = vrot.slane %v1284, %v1294
    %v1297 = vunpack.c.l.s4 1966171168
    %v1298 = vunpack.c.0.s8 %v1297
    %v1299 = vlaneseq
    %v1300 = vshrl.u32 %v1299, 7
    %v1301 = vsub.s32 %v1298, %v1300
    %v1302 = vrot.slane %v1288, %v1301
    %v1303 = vcombine.high %v1295, %v1295
    %v1304 = vcombine.high %v1302, %v1302
    %v1306 = vunpack.c.l.s4 1966171168
    %v1307 = vunpack.c.0.s8 %v1306
    %v1308 = vlaneseq
    %v1309 = vshrl.u32 %v1308, 7
    %v1310 = vsub.s32 %v1307, %v1309
    %v1311 = vrot.slane %v1295, %v1310
    %v1313 = vunpack.c.l.s4 1966171168
    %v1314 = vunpack.c.0.s8 %v1313
    %v1315 = vlaneseq
    %v1316 = vshrl.u32 %v1315, 7
    %v1317 = vsub.s32 %v1314, %v1316
    %v1318 = vrot.slane %v1302, %v1317
    %v1320 = vunpack.c.l.s4 1966171168
    %v1321 = vunpack.c.0.s8 %v1320
    %v1322 = vlaneseq
    %v1323 = vshrl.u32 %v1322, 7
    %v1324 = vsub.s32 %v1321, %v1323
    %v1325 = vrot.slane %v1303, %v1324
    %v1327 = vunpack.c.l.s4 1966171168
    %v1328 = vunpack.c.0.s8 %v1327
    %v1329 = vlaneseq
    %v1330 = vshrl.u32 %v1329, 7
    %v1331 = vsub.s32 %v1328, %v1330
    %v1332 = vrot.slane %v1304, %v1331
    %v1333 = vcombine.high %v1311, %v1311
    %v1334 = vcombine.high %v1318, %v1318
    %v1335 = vcombine.high %v1325, %v1325
    %v1336 = vcombine.high %v1332, %v1332
    %1345 = vst [vmem:[#allocation2 + $0x5] sm:$0x1] %v1311
    %1346 = vst [vmem:[#allocation2 + $0x15] sm:$0x1] %v1325
    %1347 = vst [vmem:[#allocation2 + $0x25] sm:$0x1] %v1333
    %1348 = vst [vmem:[#allocation2 + $0x35] sm:$0x1] %v1335
    %1349 = vst [vmem:[#allocation2 + $0x45] sm:$0x1] %v1318
    %1350 = vst [vmem:[#allocation2 + $0x55] sm:$0x1] %v1332
    %1351 = vst [vmem:[#allocation2 + $0x65] sm:$0x1] %v1334
    %1352 = vst [vmem:[#allocation2 + $0x75] sm:$0x1] %v1336
    %v1353 = vlaneseq
    %v1354 = vshrl.u32 %v1353, 7
    %v1355 = vsub.s32 6, %v1354
    %v1356 = vrot.slane %v18, %v1355
    %v1357 = vsub.f32 %v52, %v1356
    %v1358 = vmul.f32 %v1357, 0.2236068
    %v1360 = vsel %vm207, %v1358, 0
    %v1363 = vsel %vm473, %v33, 0
    %1365 = vmatprep.subr.mxu0 0.0
    %1366 = vmatpush1.msra.mxu0 0.0
    %1367 = vmatprep.subr.mxu0 0.0
    %1368 = vmatpush1.msra.mxu0 0.0
    %1369 = vmatprep.subr.mxu0 0.0
    %1370 = vmatpush1.msra.mxu0 0.0
    %1371 = vmatprep.subr.mxu0 0.0
    %1372 = vmatpush1.msra.mxu0 0.0
    %1373 = vmatprep.subr.mxu0 0.0
    %1374 = vmatpush1.msra.mxu0 0.0
    %1375 = vmatprep.subr.mxu0 0.0
    %1376 = vmatpush1.msra.mxu0 0.0
    %1377 = vmatprep.subr.mxu0 0.0
    %1378 = vmatpush1.msra.mxu0 0.0
    %1379 = vmatprep.subr.mxu0 0.0
    %1380 = vmatpush1.msra.mxu0 0.0
    %1381 = vmatprep.subr.mxu0 0.0
    %1382 = vmatpush1.msra.mxu0 0.0
    %1383 = vmatprep.subr.mxu0 0.0
    %1384 = vmatpush1.msra.mxu0 0.0
    %1385 = vmatprep.subr.mxu0 0.0
    %1386 = vmatpush1.msra.mxu0 0.0
    %1387 = vmatprep.subr.mxu0 0.0
    %1388 = vmatpush1.msra.mxu0 0.0
    %1389 = vmatprep.subr.mxu0 0.0
    %1390 = vmatpush1.msra.mxu0 0.0
    %1391 = vmatprep.subr.mxu0 0.0
    %1392 = vmatpush1.msra.mxu0 0.0
    %1393 = vmatprep.subr.mxu0 0.0
    %1394 = vmatpush1.msra.mxu0 %v1363
    %1395 = vmatprep.subr.mxu0 0.0
    %1396 = vmatpush1.msra.mxu0 %v32
    %1397 = vmatprep.subr.mxu0 0.0
    %1398 = vmatpush2.msra.mxu0 0.0
    %1399 = vmatprep.subr.mxu0 0.0
    %1400 = vmatpush2.msra.mxu0 0.0
    %1401 = vmatprep.subr.mxu0 0.0
    %1402 = vmatpush2.msra.mxu0 0.0
    %1403 = vmatprep.subr.mxu0 0.0
    %1404 = vmatpush2.msra.mxu0 0.0
    %1405 = vmatprep.subr.mxu0 0.0
    %1406 = vmatpush2.msra.mxu0 0.0
    %1407 = vmatprep.subr.mxu0 0.0
    %1408 = vmatpush2.msra.mxu0 0.0
    %1409 = vmatprep.subr.mxu0 0.0
    %1410 = vmatpush2.msra.mxu0 0.0
    %1411 = vmatprep.subr.mxu0 0.0
    %1412 = vmatpush2.msra.mxu0 0.0
    %1413 = vmatprep.subr.mxu0 0.0
    %1414 = vmatpush2.msra.mxu0 0.0
    %1415 = vmatprep.subr.mxu0 0.0
    %1416 = vmatpush2.msra.mxu0 0.0
    %1417 = vmatprep.subr.mxu0 0.0
    %1418 = vmatpush2.msra.mxu0 0.0
    %1419 = vmatprep.subr.mxu0 0.0
    %1420 = vmatpush2.msra.mxu0 0.0
    %1421 = vmatprep.subr.mxu0 0.0
    %1422 = vmatpush2.msra.mxu0 0.0
    %1423 = vmatprep.subr.mxu0 0.0
    %1424 = vmatpush2.msra.mxu0 0.0
    %1425 = vmatprep.subr.mxu0 0.0
    %1426 = vmatpush2.msra.mxu0 0.0
    %1427 = vmatprep.subr.mxu0 0.0
    %1428 = vmatpush2.msra.mxu0 0.0
    %1429 = vmatprep.mubr.f32.mxu0 0.0
    %1430 = vmatmul.mubr.f32.gmra.mxu0 %v1360
    %v1431 = vpop.f32.mrf.mxu0
    %v1432 = vadd.f32 0.0, %v1431
    %v1433 = vpop.f32.mrf.mxu0
    %1434 = vdwg.mxu0
    %v1436 = vcombine.high %v1432, %v1432
    %v1438 = vunpack.c.l.s4 1966171168
    %v1439 = vunpack.c.0.s8 %v1438
    %v1440 = vlaneseq
    %v1441 = vshrl.u32 %v1440, 7
    %v1442 = vsub.s32 %v1439, %v1441
    %v1443 = vrot.slane %v1432, %v1442
    %v1445 = vunpack.c.l.s4 1966171168
    %v1446 = vunpack.c.0.s8 %v1445
    %v1447 = vlaneseq
    %v1448 = vshrl.u32 %v1447, 7
    %v1449 = vsub.s32 %v1446, %v1448
    %v1450 = vrot.slane %v1436, %v1449
    %v1451 = vcombine.high %v1443, %v1443
    %v1452 = vcombine.high %v1450, %v1450
    %v1454 = vunpack.c.l.s4 1966171168
    %v1455 = vunpack.c.0.s8 %v1454
    %v1456 = vlaneseq
    %v1457 = vshrl.u32 %v1456, 7
    %v1458 = vsub.s32 %v1455, %v1457
    %v1459 = vrot.slane %v1443, %v1458
    %v1461 = vunpack.c.l.s4 1966171168
    %v1462 = vunpack.c.0.s8 %v1461
    %v1463 = vlaneseq
    %v1464 = vshrl.u32 %v1463, 7
    %v1465 = vsub.s32 %v1462, %v1464
    %v1466 = vrot.slane %v1450, %v1465
    %v1468 = vunpack.c.l.s4 1966171168
    %v1469 = vunpack.c.0.s8 %v1468
    %v1470 = vlaneseq
    %v1471 = vshrl.u32 %v1470, 7
    %v1472 = vsub.s32 %v1469, %v1471
    %v1473 = vrot.slane %v1451, %v1472
    %v1475 = vunpack.c.l.s4 1966171168
    %v1476 = vunpack.c.0.s8 %v1475
    %v1477 = vlaneseq
    %v1478 = vshrl.u32 %v1477, 7
    %v1479 = vsub.s32 %v1476, %v1478
    %v1480 = vrot.slane %v1452, %v1479
    %v1481 = vcombine.high %v1459, %v1459
    %v1482 = vcombine.high %v1466, %v1466
    %v1483 = vcombine.high %v1473, %v1473
    %v1484 = vcombine.high %v1480, %v1480
    %1493 = vst [vmem:[#allocation2 + $0x6] sm:$0x1] %v1459
    %1494 = vst [vmem:[#allocation2 + $0x16] sm:$0x1] %v1473
    %1495 = vst [vmem:[#allocation2 + $0x26] sm:$0x1] %v1481
    %1496 = vst [vmem:[#allocation2 + $0x36] sm:$0x1] %v1483
    %1497 = vst [vmem:[#allocation2 + $0x46] sm:$0x1] %v1466
    %1498 = vst [vmem:[#allocation2 + $0x56] sm:$0x1] %v1480
    %1499 = vst [vmem:[#allocation2 + $0x66] sm:$0x1] %v1482
    %1500 = vst [vmem:[#allocation2 + $0x76] sm:$0x1] %v1484
    %v1501 = vlaneseq
    %v1502 = vshrl.u32 %v1501, 7
    %v1503 = vsub.s32 7, %v1502
    %v1504 = vrot.slane %v18, %v1503
    %v1505 = vsub.f32 %v52, %v1504
    %v1506 = vmul.f32 %v1505, 0.2236068
    %v1508 = vsel %vm207, %v1506, 0
    %v1511 = vsel %vm473, %v35, 0
    %1513 = vmatprep.subr.mxu0 0.0
    %1514 = vmatpush1.msra.mxu0 0.0
    %1515 = vmatprep.subr.mxu0 0.0
    %1516 = vmatpush1.msra.mxu0 0.0
    %1517 = vmatprep.subr.mxu0 0.0
    %1518 = vmatpush1.msra.mxu0 0.0
    %1519 = vmatprep.subr.mxu0 0.0
    %1520 = vmatpush1.msra.mxu0 0.0
    %1521 = vmatprep.subr.mxu0 0.0
    %1522 = vmatpush1.msra.mxu0 0.0
    %1523 = vmatprep.subr.mxu0 0.0
    %1524 = vmatpush1.msra.mxu0 0.0
    %1525 = vmatprep.subr.mxu0 0.0
    %1526 = vmatpush1.msra.mxu0 0.0
    %1527 = vmatprep.subr.mxu0 0.0
    %1528 = vmatpush1.msra.mxu0 0.0
    %1529 = vmatprep.subr.mxu0 0.0
    %1530 = vmatpush1.msra.mxu0 0.0
    %1531 = vmatprep.subr.mxu0 0.0
    %1532 = vmatpush1.msra.mxu0 0.0
    %1533 = vmatprep.subr.mxu0 0.0
    %1534 = vmatpush1.msra.mxu0 0.0
    %1535 = vmatprep.subr.mxu0 0.0
    %1536 = vmatpush1.msra.mxu0 0.0
    %1537 = vmatprep.subr.mxu0 0.0
    %1538 = vmatpush1.msra.mxu0 0.0
    %1539 = vmatprep.subr.mxu0 0.0
    %1540 = vmatpush1.msra.mxu0 0.0
    %1541 = vmatprep.subr.mxu0 0.0
    %1542 = vmatpush1.msra.mxu0 %v1511
    %1543 = vmatprep.subr.mxu0 0.0
    %1544 = vmatpush1.msra.mxu0 %v34
    %1545 = vmatprep.subr.mxu0 0.0
    %1546 = vmatpush2.msra.mxu0 0.0
    %1547 = vmatprep.subr.mxu0 0.0
    %1548 = vmatpush2.msra.mxu0 0.0
    %1549 = vmatprep.subr.mxu0 0.0
    %1550 = vmatpush2.msra.mxu0 0.0
    %1551 = vmatprep.subr.mxu0 0.0
    %1552 = vmatpush2.msra.mxu0 0.0
    %1553 = vmatprep.subr.mxu0 0.0
    %1554 = vmatpush2.msra.mxu0 0.0
    %1555 = vmatprep.subr.mxu0 0.0
    %1556 = vmatpush2.msra.mxu0 0.0
    %1557 = vmatprep.subr.mxu0 0.0
    %1558 = vmatpush2.msra.mxu0 0.0
    %1559 = vmatprep.subr.mxu0 0.0
    %1560 = vmatpush2.msra.mxu0 0.0
    %1561 = vmatprep.subr.mxu0 0.0
    %1562 = vmatpush2.msra.mxu0 0.0
    %1563 = vmatprep.subr.mxu0 0.0
    %1564 = vmatpush2.msra.mxu0 0.0
    %1565 = vmatprep.subr.mxu0 0.0
    %1566 = vmatpush2.msra.mxu0 0.0
    %1567 = vmatprep.subr.mxu0 0.0
    %1568 = vmatpush2.msra.mxu0 0.0
    %1569 = vmatprep.subr.mxu0 0.0
    %1570 = vmatpush2.msra.mxu0 0.0
    %1571 = vmatprep.subr.mxu0 0.0
    %1572 = vmatpush2.msra.mxu0 0.0
    %1573 = vmatprep.subr.mxu0 0.0
    %1574 = vmatpush2.msra.mxu0 0.0
    %1575 = vmatprep.subr.mxu0 0.0
    %1576 = vmatpush2.msra.mxu0 0.0
    %1577 = vmatprep.mubr.f32.mxu0 0.0
    %1578 = vmatmul.mubr.f32.gmra.mxu0 %v1508
    %v1579 = vpop.f32.mrf.mxu0
    %v1580 = vadd.f32 0.0, %v1579
    %v1581 = vpop.f32.mrf.mxu0
    %1582 = vdwg.mxu0
    %v1584 = vcombine.high %v1580, %v1580
    %v1586 = vunpack.c.l.s4 1966171168
    %v1587 = vunpack.c.0.s8 %v1586
    %v1588 = vlaneseq
    %v1589 = vshrl.u32 %v1588, 7
    %v1590 = vsub.s32 %v1587, %v1589
    %v1591 = vrot.slane %v1580, %v1590
    %v1593 = vunpack.c.l.s4 1966171168
    %v1594 = vunpack.c.0.s8 %v1593
    %v1595 = vlaneseq
    %v1596 = vshrl.u32 %v1595, 7
    %v1597 = vsub.s32 %v1594, %v1596
    %v1598 = vrot.slane %v1584, %v1597
    %v1599 = vcombine.high %v1591, %v1591
    %v1600 = vcombine.high %v1598, %v1598
    %v1602 = vunpack.c.l.s4 1966171168
    %v1603 = vunpack.c.0.s8 %v1602
    %v1604 = vlaneseq
    %v1605 = vshrl.u32 %v1604, 7
    %v1606 = vsub.s32 %v1603, %v1605
    %v1607 = vrot.slane %v1591, %v1606
    %v1609 = vunpack.c.l.s4 1966171168
    %v1610 = vunpack.c.0.s8 %v1609
    %v1611 = vlaneseq
    %v1612 = vshrl.u32 %v1611, 7
    %v1613 = vsub.s32 %v1610, %v1612
    %v1614 = vrot.slane %v1598, %v1613
    %v1616 = vunpack.c.l.s4 1966171168
    %v1617 = vunpack.c.0.s8 %v1616
    %v1618 = vlaneseq
    %v1619 = vshrl.u32 %v1618, 7
    %v1620 = vsub.s32 %v1617, %v1619
    %v1621 = vrot.slane %v1599, %v1620
    %v1623 = vunpack.c.l.s4 1966171168
    %v1624 = vunpack.c.0.s8 %v1623
    %v1625 = vlaneseq
    %v1626 = vshrl.u32 %v1625, 7
    %v1627 = vsub.s32 %v1624, %v1626
    %v1628 = vrot.slane %v1600, %v1627
    %v1629 = vcombine.high %v1607, %v1607
    %v1630 = vcombine.high %v1614, %v1614
    %v1631 = vcombine.high %v1621, %v1621
    %v1632 = vcombine.high %v1628, %v1628
    %1641 = vst [vmem:[#allocation2 + $0x7] sm:$0x1] %v1607
    %1642 = vst [vmem:[#allocation2 + $0x17] sm:$0x1] %v1621
    %1643 = vst [vmem:[#allocation2 + $0x27] sm:$0x1] %v1629
    %1644 = vst [vmem:[#allocation2 + $0x37] sm:$0x1] %v1631
    %1645 = vst [vmem:[#allocation2 + $0x47] sm:$0x1] %v1614
    %1646 = vst [vmem:[#allocation2 + $0x57] sm:$0x1] %v1628
    %1647 = vst [vmem:[#allocation2 + $0x67] sm:$0x1] %v1630
    %1648 = vst [vmem:[#allocation2 + $0x77] sm:$0x1] %v1632
    %v1649 = vlaneseq
    %v1650 = vshrl.u32 %v1649, 7
    %v1651 = vsub.s32 0, %v1650
    %v1652 = vrot.slane %v19, %v1651
    %v1653 = vsub.f32 %v52, %v1652
    %v1654 = vmul.f32 %v1653, 0.2236068
    %v1656 = vsel %vm207, %v1654, 0
    %v1659 = vsel %vm473, %v37, 0
    %1661 = vmatprep.subr.mxu0 0.0
    %1662 = vmatpush1.msra.mxu0 0.0
    %1663 = vmatprep.subr.mxu0 0.0
    %1664 = vmatpush1.msra.mxu0 0.0
    %1665 = vmatprep.subr.mxu0 0.0
    %1666 = vmatpush1.msra.mxu0 0.0
    %1667 = vmatprep.subr.mxu0 0.0
    %1668 = vmatpush1.msra.mxu0 0.0
    %1669 = vmatprep.subr.mxu0 0.0
    %1670 = vmatpush1.msra.mxu0 0.0
    %1671 = vmatprep.subr.mxu0 0.0
    %1672 = vmatpush1.msra.mxu0 0.0
    %1673 = vmatprep.subr.mxu0 0.0
    %1674 = vmatpush1.msra.mxu0 0.0
    %1675 = vmatprep.subr.mxu0 0.0
    %1676 = vmatpush1.msra.mxu0 0.0
    %1677 = vmatprep.subr.mxu0 0.0
    %1678 = vmatpush1.msra.mxu0 0.0
    %1679 = vmatprep.subr.mxu0 0.0
    %1680 = vmatpush1.msra.mxu0 0.0
    %1681 = vmatprep.subr.mxu0 0.0
    %1682 = vmatpush1.msra.mxu0 0.0
    %1683 = vmatprep.subr.mxu0 0.0
    %1684 = vmatpush1.msra.mxu0 0.0
    %1685 = vmatprep.subr.mxu0 0.0
    %1686 = vmatpush1.msra.mxu0 0.0
    %1687 = vmatprep.subr.mxu0 0.0
    %1688 = vmatpush1.msra.mxu0 0.0
    %1689 = vmatprep.subr.mxu0 0.0
    %1690 = vmatpush1.msra.mxu0 %v1659
    %1691 = vmatprep.subr.mxu0 0.0
    %1692 = vmatpush1.msra.mxu0 %v36
    %1693 = vmatprep.subr.mxu0 0.0
    %1694 = vmatpush2.msra.mxu0 0.0
    %1695 = vmatprep.subr.mxu0 0.0
    %1696 = vmatpush2.msra.mxu0 0.0
    %1697 = vmatprep.subr.mxu0 0.0
    %1698 = vmatpush2.msra.mxu0 0.0
    %1699 = vmatprep.subr.mxu0 0.0
    %1700 = vmatpush2.msra.mxu0 0.0
    %1701 = vmatprep.subr.mxu0 0.0
    %1702 = vmatpush2.msra.mxu0 0.0
    %1703 = vmatprep.subr.mxu0 0.0
    %1704 = vmatpush2.msra.mxu0 0.0
    %1705 = vmatprep.subr.mxu0 0.0
    %1706 = vmatpush2.msra.mxu0 0.0
    %1707 = vmatprep.subr.mxu0 0.0
    %1708 = vmatpush2.msra.mxu0 0.0
    %1709 = vmatprep.subr.mxu0 0.0
    %1710 = vmatpush2.msra.mxu0 0.0
    %1711 = vmatprep.subr.mxu0 0.0
    %1712 = vmatpush2.msra.mxu0 0.0
    %1713 = vmatprep.subr.mxu0 0.0
    %1714 = vmatpush2.msra.mxu0 0.0
    %1715 = vmatprep.subr.mxu0 0.0
    %1716 = vmatpush2.msra.mxu0 0.0
    %1717 = vmatprep.subr.mxu0 0.0
    %1718 = vmatpush2.msra.mxu0 0.0
    %1719 = vmatprep.subr.mxu0 0.0
    %1720 = vmatpush2.msra.mxu0 0.0
    %1721 = vmatprep.subr.mxu0 0.0
    %1722 = vmatpush2.msra.mxu0 0.0
    %1723 = vmatprep.subr.mxu0 0.0
    %1724 = vmatpush2.msra.mxu0 0.0
    %1725 = vmatprep.mubr.f32.mxu0 0.0
    %1726 = vmatmul.mubr.f32.gmra.mxu0 %v1656
    %v1727 = vpop.f32.mrf.mxu0
    %v1728 = vadd.f32 0.0, %v1727
    %v1729 = vpop.f32.mrf.mxu0
    %1730 = vdwg.mxu0
    %v1732 = vcombine.high %v1728, %v1728
    %v1734 = vunpack.c.l.s4 1966171168
    %v1735 = vunpack.c.0.s8 %v1734
    %v1736 = vlaneseq
    %v1737 = vshrl.u32 %v1736, 7
    %v1738 = vsub.s32 %v1735, %v1737
    %v1739 = vrot.slane %v1728, %v1738
    %v1741 = vunpack.c.l.s4 1966171168
    %v1742 = vunpack.c.0.s8 %v1741
    %v1743 = vlaneseq
    %v1744 = vshrl.u32 %v1743, 7
    %v1745 = vsub.s32 %v1742, %v1744
    %v1746 = vrot.slane %v1732, %v1745
    %v1747 = vcombine.high %v1739, %v1739
    %v1748 = vcombine.high %v1746, %v1746
    %v1750 = vunpack.c.l.s4 1966171168
    %v1751 = vunpack.c.0.s8 %v1750
    %v1752 = vlaneseq
    %v1753 = vshrl.u32 %v1752, 7
    %v1754 = vsub.s32 %v1751, %v1753
    %v1755 = vrot.slane %v1739, %v1754
    %v1757 = vunpack.c.l.s4 1966171168
    %v1758 = vunpack.c.0.s8 %v1757
    %v1759 = vlaneseq
    %v1760 = vshrl.u32 %v1759, 7
    %v1761 = vsub.s32 %v1758, %v1760
    %v1762 = vrot.slane %v1746, %v1761
    %v1764 = vunpack.c.l.s4 1966171168
    %v1765 = vunpack.c.0.s8 %v1764
    %v1766 = vlaneseq
    %v1767 = vshrl.u32 %v1766, 7
    %v1768 = vsub.s32 %v1765, %v1767
    %v1769 = vrot.slane %v1747, %v1768
    %v1771 = vunpack.c.l.s4 1966171168
    %v1772 = vunpack.c.0.s8 %v1771
    %v1773 = vlaneseq
    %v1774 = vshrl.u32 %v1773, 7
    %v1775 = vsub.s32 %v1772, %v1774
    %v1776 = vrot.slane %v1748, %v1775
    %v1777 = vcombine.high %v1755, %v1755
    %v1778 = vcombine.high %v1762, %v1762
    %v1779 = vcombine.high %v1769, %v1769
    %v1780 = vcombine.high %v1776, %v1776
    %1789 = vst [vmem:[#allocation2 + $0x8] sm:$0x1] %v1755
    %1790 = vst [vmem:[#allocation2 + $0x18] sm:$0x1] %v1769
    %1791 = vst [vmem:[#allocation2 + $0x28] sm:$0x1] %v1777
    %1792 = vst [vmem:[#allocation2 + $0x38] sm:$0x1] %v1779
    %1793 = vst [vmem:[#allocation2 + $0x48] sm:$0x1] %v1762
    %1794 = vst [vmem:[#allocation2 + $0x58] sm:$0x1] %v1776
    %1795 = vst [vmem:[#allocation2 + $0x68] sm:$0x1] %v1778
    %1796 = vst [vmem:[#allocation2 + $0x78] sm:$0x1] %v1780
    %v1797 = vlaneseq
    %v1798 = vshrl.u32 %v1797, 7
    %v1799 = vsub.s32 1, %v1798
    %v1800 = vrot.slane %v19, %v1799
    %v1801 = vsub.f32 %v52, %v1800
    %v1802 = vmul.f32 %v1801, 0.2236068
    %v1804 = vsel %vm207, %v1802, 0
    %v1807 = vsel %vm473, %v39, 0
    %1809 = vmatprep.subr.mxu0 0.0
    %1810 = vmatpush1.msra.mxu0 0.0
    %1811 = vmatprep.subr.mxu0 0.0
    %1812 = vmatpush1.msra.mxu0 0.0
    %1813 = vmatprep.subr.mxu0 0.0
    %1814 = vmatpush1.msra.mxu0 0.0
    %1815 = vmatprep.subr.mxu0 0.0
    %1816 = vmatpush1.msra.mxu0 0.0
    %1817 = vmatprep.subr.mxu0 0.0
    %1818 = vmatpush1.msra.mxu0 0.0
    %1819 = vmatprep.subr.mxu0 0.0
    %1820 = vmatpush1.msra.mxu0 0.0
    %1821 = vmatprep.subr.mxu0 0.0
    %1822 = vmatpush1.msra.mxu0 0.0
    %1823 = vmatprep.subr.mxu0 0.0
    %1824 = vmatpush1.msra.mxu0 0.0
    %1825 = vmatprep.subr.mxu0 0.0
    %1826 = vmatpush1.msra.mxu0 0.0
    %1827 = vmatprep.subr.mxu0 0.0
    %1828 = vmatpush1.msra.mxu0 0.0
    %1829 = vmatprep.subr.mxu0 0.0
    %1830 = vmatpush1.msra.mxu0 0.0
    %1831 = vmatprep.subr.mxu0 0.0
    %1832 = vmatpush1.msra.mxu0 0.0
    %1833 = vmatprep.subr.mxu0 0.0
    %1834 = vmatpush1.msra.mxu0 0.0
    %1835 = vmatprep.subr.mxu0 0.0
    %1836 = vmatpush1.msra.mxu0 0.0
    %1837 = vmatprep.subr.mxu0 0.0
    %1838 = vmatpush1.msra.mxu0 %v1807
    %1839 = vmatprep.subr.mxu0 0.0
    %1840 = vmatpush1.msra.mxu0 %v38
    %1841 = vmatprep.subr.mxu0 0.0
    %1842 = vmatpush2.msra.mxu0 0.0
    %1843 = vmatprep.subr.mxu0 0.0
    %1844 = vmatpush2.msra.mxu0 0.0
    %1845 = vmatprep.subr.mxu0 0.0
    %1846 = vmatpush2.msra.mxu0 0.0
    %1847 = vmatprep.subr.mxu0 0.0
    %1848 = vmatpush2.msra.mxu0 0.0
    %1849 = vmatprep.subr.mxu0 0.0
    %1850 = vmatpush2.msra.mxu0 0.0
    %1851 = vmatprep.subr.mxu0 0.0
    %1852 = vmatpush2.msra.mxu0 0.0
    %1853 = vmatprep.subr.mxu0 0.0
    %1854 = vmatpush2.msra.mxu0 0.0
    %1855 = vmatprep.subr.mxu0 0.0
    %1856 = vmatpush2.msra.mxu0 0.0
    %1857 = vmatprep.subr.mxu0 0.0
    %1858 = vmatpush2.msra.mxu0 0.0
    %1859 = vmatprep.subr.mxu0 0.0
    %1860 = vmatpush2.msra.mxu0 0.0
    %1861 = vmatprep.subr.mxu0 0.0
    %1862 = vmatpush2.msra.mxu0 0.0
    %1863 = vmatprep.subr.mxu0 0.0
    %1864 = vmatpush2.msra.mxu0 0.0
    %1865 = vmatprep.subr.mxu0 0.0
    %1866 = vmatpush2.msra.mxu0 0.0
    %1867 = vmatprep.subr.mxu0 0.0
    %1868 = vmatpush2.msra.mxu0 0.0
    %1869 = vmatprep.subr.mxu0 0.0
    %1870 = vmatpush2.msra.mxu0 0.0
    %1871 = vmatprep.subr.mxu0 0.0
    %1872 = vmatpush2.msra.mxu0 0.0
    %1873 = vmatprep.mubr.f32.mxu0 0.0
    %1874 = vmatmul.mubr.f32.gmra.mxu0 %v1804
    %v1875 = vpop.f32.mrf.mxu0
    %v1876 = vadd.f32 0.0, %v1875
    %v1877 = vpop.f32.mrf.mxu0
    %1878 = vdwg.mxu0
    %v1880 = vcombine.high %v1876, %v1876
    %v1882 = vunpack.c.l.s4 1966171168
    %v1883 = vunpack.c.0.s8 %v1882
    %v1884 = vlaneseq
    %v1885 = vshrl.u32 %v1884, 7
    %v1886 = vsub.s32 %v1883, %v1885
    %v1887 = vrot.slane %v1876, %v1886
    %v1889 = vunpack.c.l.s4 1966171168
    %v1890 = vunpack.c.0.s8 %v1889
    %v1891 = vlaneseq
    %v1892 = vshrl.u32 %v1891, 7
    %v1893 = vsub.s32 %v1890, %v1892
    %v1894 = vrot.slane %v1880, %v1893
    %v1895 = vcombine.high %v1887, %v1887
    %v1896 = vcombine.high %v1894, %v1894
    %v1898 = vunpack.c.l.s4 1966171168
    %v1899 = vunpack.c.0.s8 %v1898
    %v1900 = vlaneseq
    %v1901 = vshrl.u32 %v1900, 7
    %v1902 = vsub.s32 %v1899, %v1901
    %v1903 = vrot.slane %v1887, %v1902
    %v1905 = vunpack.c.l.s4 1966171168
    %v1906 = vunpack.c.0.s8 %v1905
    %v1907 = vlaneseq
    %v1908 = vshrl.u32 %v1907, 7
    %v1909 = vsub.s32 %v1906, %v1908
    %v1910 = vrot.slane %v1894, %v1909
    %v1912 = vunpack.c.l.s4 1966171168
    %v1913 = vunpack.c.0.s8 %v1912
    %v1914 = vlaneseq
    %v1915 = vshrl.u32 %v1914, 7
    %v1916 = vsub.s32 %v1913, %v1915
    %v1917 = vrot.slane %v1895, %v1916
    %v1919 = vunpack.c.l.s4 1966171168
    %v1920 = vunpack.c.0.s8 %v1919
    %v1921 = vlaneseq
    %v1922 = vshrl.u32 %v1921, 7
    %v1923 = vsub.s32 %v1920, %v1922
    %v1924 = vrot.slane %v1896, %v1923
    %v1925 = vcombine.high %v1903, %v1903
    %v1926 = vcombine.high %v1910, %v1910
    %v1927 = vcombine.high %v1917, %v1917
    %v1928 = vcombine.high %v1924, %v1924
    %1937 = vst [vmem:[#allocation2 + $0x9] sm:$0x1] %v1903
    %1938 = vst [vmem:[#allocation2 + $0x19] sm:$0x1] %v1917
    %1939 = vst [vmem:[#allocation2 + $0x29] sm:$0x1] %v1925
    %1940 = vst [vmem:[#allocation2 + $0x39] sm:$0x1] %v1927
    %1941 = vst [vmem:[#allocation2 + $0x49] sm:$0x1] %v1910
    %1942 = vst [vmem:[#allocation2 + $0x59] sm:$0x1] %v1924
    %1943 = vst [vmem:[#allocation2 + $0x69] sm:$0x1] %v1926
    %1944 = vst [vmem:[#allocation2 + $0x79] sm:$0x1] %v1928
    %v1945 = vlaneseq
    %v1946 = vshrl.u32 %v1945, 7
    %v1947 = vsub.s32 2, %v1946
    %v1948 = vrot.slane %v19, %v1947
    %v1949 = vsub.f32 %v52, %v1948
    %v1950 = vmul.f32 %v1949, 0.2236068
    %v1952 = vsel %vm207, %v1950, 0
    %v1955 = vsel %vm473, %v41, 0
    %1957 = vmatprep.subr.mxu0 0.0
    %1958 = vmatpush1.msra.mxu0 0.0
    %1959 = vmatprep.subr.mxu0 0.0
    %1960 = vmatpush1.msra.mxu0 0.0
    %1961 = vmatprep.subr.mxu0 0.0
    %1962 = vmatpush1.msra.mxu0 0.0
    %1963 = vmatprep.subr.mxu0 0.0
    %1964 = vmatpush1.msra.mxu0 0.0
    %1965 = vmatprep.subr.mxu0 0.0
    %1966 = vmatpush1.msra.mxu0 0.0
    %1967 = vmatprep.subr.mxu0 0.0
    %1968 = vmatpush1.msra.mxu0 0.0
    %1969 = vmatprep.subr.mxu0 0.0
    %1970 = vmatpush1.msra.mxu0 0.0
    %1971 = vmatprep.subr.mxu0 0.0
    %1972 = vmatpush1.msra.mxu0 0.0
    %1973 = vmatprep.subr.mxu0 0.0
    %1974 = vmatpush1.msra.mxu0 0.0
    %1975 = vmatprep.subr.mxu0 0.0
    %1976 = vmatpush1.msra.mxu0 0.0
    %1977 = vmatprep.subr.mxu0 0.0
    %1978 = vmatpush1.msra.mxu0 0.0
    %1979 = vmatprep.subr.mxu0 0.0
    %1980 = vmatpush1.msra.mxu0 0.0
    %1981 = vmatprep.subr.mxu0 0.0
    %1982 = vmatpush1.msra.mxu0 0.0
    %1983 = vmatprep.subr.mxu0 0.0
    %1984 = vmatpush1.msra.mxu0 0.0
    %1985 = vmatprep.subr.mxu0 0.0
    %1986 = vmatpush1.msra.mxu0 %v1955
    %1987 = vmatprep.subr.mxu0 0.0
    %1988 = vmatpush1.msra.mxu0 %v40
    %1989 = vmatprep.subr.mxu0 0.0
    %1990 = vmatpush2.msra.mxu0 0.0
    %1991 = vmatprep.subr.mxu0 0.0
    %1992 = vmatpush2.msra.mxu0 0.0
    %1993 = vmatprep.subr.mxu0 0.0
    %1994 = vmatpush2.msra.mxu0 0.0
    %1995 = vmatprep.subr.mxu0 0.0
    %1996 = vmatpush2.msra.mxu0 0.0
    %1997 = vmatprep.subr.mxu0 0.0
    %1998 = vmatpush2.msra.mxu0 0.0
    %1999 = vmatprep.subr.mxu0 0.0
    %2000 = vmatpush2.msra.mxu0 0.0
    %2001 = vmatprep.subr.mxu0 0.0
    %2002 = vmatpush2.msra.mxu0 0.0
    %2003 = vmatprep.subr.mxu0 0.0
    %2004 = vmatpush2.msra.mxu0 0.0
    %2005 = vmatprep.subr.mxu0 0.0
    %2006 = vmatpush2.msra.mxu0 0.0
    %2007 = vmatprep.subr.mxu0 0.0
    %2008 = vmatpush2.msra.mxu0 0.0
    %2009 = vmatprep.subr.mxu0 0.0
    %2010 = vmatpush2.msra.mxu0 0.0
    %2011 = vmatprep.subr.mxu0 0.0
    %2012 = vmatpush2.msra.mxu0 0.0
    %2013 = vmatprep.subr.mxu0 0.0
    %2014 = vmatpush2.msra.mxu0 0.0
    %2015 = vmatprep.subr.mxu0 0.0
    %2016 = vmatpush2.msra.mxu0 0.0
    %2017 = vmatprep.subr.mxu0 0.0
    %2018 = vmatpush2.msra.mxu0 0.0
    %2019 = vmatprep.subr.mxu0 0.0
    %2020 = vmatpush2.msra.mxu0 0.0
    %2021 = vmatprep.mubr.f32.mxu0 0.0
    %2022 = vmatmul.mubr.f32.gmra.mxu0 %v1952
    %v2023 = vpop.f32.mrf.mxu0
    %v2024 = vadd.f32 0.0, %v2023
    %v2025 = vpop.f32.mrf.mxu0
    %2026 = vdwg.mxu0
    %v2028 = vcombine.high %v2024, %v2024
    %v2030 = vunpack.c.l.s4 1966171168
    %v2031 = vunpack.c.0.s8 %v2030
    %v2032 = vlaneseq
    %v2033 = vshrl.u32 %v2032, 7
    %v2034 = vsub.s32 %v2031, %v2033
    %v2035 = vrot.slane %v2024, %v2034
    %v2037 = vunpack.c.l.s4 1966171168
    %v2038 = vunpack.c.0.s8 %v2037
    %v2039 = vlaneseq
    %v2040 = vshrl.u32 %v2039, 7
    %v2041 = vsub.s32 %v2038, %v2040
    %v2042 = vrot.slane %v2028, %v2041
    %v2043 = vcombine.high %v2035, %v2035
    %v2044 = vcombine.high %v2042, %v2042
    %v2046 = vunpack.c.l.s4 1966171168
    %v2047 = vunpack.c.0.s8 %v2046
    %v2048 = vlaneseq
    %v2049 = vshrl.u32 %v2048, 7
    %v2050 = vsub.s32 %v2047, %v2049
    %v2051 = vrot.slane %v2035, %v2050
    %v2053 = vunpack.c.l.s4 1966171168
    %v2054 = vunpack.c.0.s8 %v2053
    %v2055 = vlaneseq
    %v2056 = vshrl.u32 %v2055, 7
    %v2057 = vsub.s32 %v2054, %v2056
    %v2058 = vrot.slane %v2042, %v2057
    %v2060 = vunpack.c.l.s4 1966171168
    %v2061 = vunpack.c.0.s8 %v2060
    %v2062 = vlaneseq
    %v2063 = vshrl.u32 %v2062, 7
    %v2064 = vsub.s32 %v2061, %v2063
    %v2065 = vrot.slane %v2043, %v2064
    %v2067 = vunpack.c.l.s4 1966171168
    %v2068 = vunpack.c.0.s8 %v2067
    %v2069 = vlaneseq
    %v2070 = vshrl.u32 %v2069, 7
    %v2071 = vsub.s32 %v2068, %v2070
    %v2072 = vrot.slane %v2044, %v2071
    %v2073 = vcombine.high %v2051, %v2051
    %v2074 = vcombine.high %v2058, %v2058
    %v2075 = vcombine.high %v2065, %v2065
    %v2076 = vcombine.high %v2072, %v2072
    %2085 = vst [vmem:[#allocation2 + $0xa] sm:$0x1] %v2051
    %2086 = vst [vmem:[#allocation2 + $0x1a] sm:$0x1] %v2065
    %2087 = vst [vmem:[#allocation2 + $0x2a] sm:$0x1] %v2073
    %2088 = vst [vmem:[#allocation2 + $0x3a] sm:$0x1] %v2075
    %2089 = vst [vmem:[#allocation2 + $0x4a] sm:$0x1] %v2058
    %2090 = vst [vmem:[#allocation2 + $0x5a] sm:$0x1] %v2072
    %2091 = vst [vmem:[#allocation2 + $0x6a] sm:$0x1] %v2074
    %2092 = vst [vmem:[#allocation2 + $0x7a] sm:$0x1] %v2076
    %v2093 = vlaneseq
    %v2094 = vshrl.u32 %v2093, 7
    %v2095 = vsub.s32 3, %v2094
    %v2096 = vrot.slane %v19, %v2095
    %v2097 = vsub.f32 %v52, %v2096
    %v2098 = vmul.f32 %v2097, 0.2236068
    %v2100 = vsel %vm207, %v2098, 0
    %v2103 = vsel %vm473, %v43, 0
    %2105 = vmatprep.subr.mxu0 0.0
    %2106 = vmatpush1.msra.mxu0 0.0
    %2107 = vmatprep.subr.mxu0 0.0
    %2108 = vmatpush1.msra.mxu0 0.0
    %2109 = vmatprep.subr.mxu0 0.0
    %2110 = vmatpush1.msra.mxu0 0.0
    %2111 = vmatprep.subr.mxu0 0.0
    %2112 = vmatpush1.msra.mxu0 0.0
    %2113 = vmatprep.subr.mxu0 0.0
    %2114 = vmatpush1.msra.mxu0 0.0
    %2115 = vmatprep.subr.mxu0 0.0
    %2116 = vmatpush1.msra.mxu0 0.0
    %2117 = vmatprep.subr.mxu0 0.0
    %2118 = vmatpush1.msra.mxu0 0.0
    %2119 = vmatprep.subr.mxu0 0.0
    %2120 = vmatpush1.msra.mxu0 0.0
    %2121 = vmatprep.subr.mxu0 0.0
    %2122 = vmatpush1.msra.mxu0 0.0
    %2123 = vmatprep.subr.mxu0 0.0
    %2124 = vmatpush1.msra.mxu0 0.0
    %2125 = vmatprep.subr.mxu0 0.0
    %2126 = vmatpush1.msra.mxu0 0.0
    %2127 = vmatprep.subr.mxu0 0.0
    %2128 = vmatpush1.msra.mxu0 0.0
    %2129 = vmatprep.subr.mxu0 0.0
    %2130 = vmatpush1.msra.mxu0 0.0
    %2131 = vmatprep.subr.mxu0 0.0
    %2132 = vmatpush1.msra.mxu0 0.0
    %2133 = vmatprep.subr.mxu0 0.0
    %2134 = vmatpush1.msra.mxu0 %v2103
    %2135 = vmatprep.subr.mxu0 0.0
    %2136 = vmatpush1.msra.mxu0 %v42
    %2137 = vmatprep.subr.mxu0 0.0
    %2138 = vmatpush2.msra.mxu0 0.0
    %2139 = vmatprep.subr.mxu0 0.0
    %2140 = vmatpush2.msra.mxu0 0.0
    %2141 = vmatprep.subr.mxu0 0.0
    %2142 = vmatpush2.msra.mxu0 0.0
    %2143 = vmatprep.subr.mxu0 0.0
    %2144 = vmatpush2.msra.mxu0 0.0
    %2145 = vmatprep.subr.mxu0 0.0
    %2146 = vmatpush2.msra.mxu0 0.0
    %2147 = vmatprep.subr.mxu0 0.0
    %2148 = vmatpush2.msra.mxu0 0.0
    %2149 = vmatprep.subr.mxu0 0.0
    %2150 = vmatpush2.msra.mxu0 0.0
    %2151 = vmatprep.subr.mxu0 0.0
    %2152 = vmatpush2.msra.mxu0 0.0
    %2153 = vmatprep.subr.mxu0 0.0
    %2154 = vmatpush2.msra.mxu0 0.0
    %2155 = vmatprep.subr.mxu0 0.0
    %2156 = vmatpush2.msra.mxu0 0.0
    %2157 = vmatprep.subr.mxu0 0.0
    %2158 = vmatpush2.msra.mxu0 0.0
    %2159 = vmatprep.subr.mxu0 0.0
    %2160 = vmatpush2.msra.mxu0 0.0
    %2161 = vmatprep.subr.mxu0 0.0
    %2162 = vmatpush2.msra.mxu0 0.0
    %2163 = vmatprep.subr.mxu0 0.0
    %2164 = vmatpush2.msra.mxu0 0.0
    %2165 = vmatprep.subr.mxu0 0.0
    %2166 = vmatpush2.msra.mxu0 0.0
    %2167 = vmatprep.subr.mxu0 0.0
    %2168 = vmatpush2.msra.mxu0 0.0
    %2169 = vmatprep.mubr.f32.mxu0 0.0
    %2170 = vmatmul.mubr.f32.gmra.mxu0 %v2100
    %v2171 = vpop.f32.mrf.mxu0
    %v2172 = vadd.f32 0.0, %v2171
    %v2173 = vpop.f32.mrf.mxu0
    %2174 = vdwg.mxu0
    %v2176 = vcombine.high %v2172, %v2172
    %v2178 = vunpack.c.l.s4 1966171168
    %v2179 = vunpack.c.0.s8 %v2178
    %v2180 = vlaneseq
    %v2181 = vshrl.u32 %v2180, 7
    %v2182 = vsub.s32 %v2179, %v2181
    %v2183 = vrot.slane %v2172, %v2182
    %v2185 = vunpack.c.l.s4 1966171168
    %v2186 = vunpack.c.0.s8 %v2185
    %v2187 = vlaneseq
    %v2188 = vshrl.u32 %v2187, 7
    %v2189 = vsub.s32 %v2186, %v2188
    %v2190 = vrot.slane %v2176, %v2189
    %v2191 = vcombine.high %v2183, %v2183
    %v2192 = vcombine.high %v2190, %v2190
    %v2194 = vunpack.c.l.s4 1966171168
    %v2195 = vunpack.c.0.s8 %v2194
    %v2196 = vlaneseq
    %v2197 = vshrl.u32 %v2196, 7
    %v2198 = vsub.s32 %v2195, %v2197
    %v2199 = vrot.slane %v2183, %v2198
    %v2201 = vunpack.c.l.s4 1966171168
    %v2202 = vunpack.c.0.s8 %v2201
    %v2203 = vlaneseq
    %v2204 = vshrl.u32 %v2203, 7
    %v2205 = vsub.s32 %v2202, %v2204
    %v2206 = vrot.slane %v2190, %v2205
    %v2208 = vunpack.c.l.s4 1966171168
    %v2209 = vunpack.c.0.s8 %v2208
    %v2210 = vlaneseq
    %v2211 = vshrl.u32 %v2210, 7
    %v2212 = vsub.s32 %v2209, %v2211
    %v2213 = vrot.slane %v2191, %v2212
    %v2215 = vunpack.c.l.s4 1966171168
    %v2216 = vunpack.c.0.s8 %v2215
    %v2217 = vlaneseq
    %v2218 = vshrl.u32 %v2217, 7
    %v2219 = vsub.s32 %v2216, %v2218
    %v2220 = vrot.slane %v2192, %v2219
    %v2221 = vcombine.high %v2199, %v2199
    %v2222 = vcombine.high %v2206, %v2206
    %v2223 = vcombine.high %v2213, %v2213
    %v2224 = vcombine.high %v2220, %v2220
    %2233 = vst [vmem:[#allocation2 + $0xb] sm:$0x1] %v2199
    %2234 = vst [vmem:[#allocation2 + $0x1b] sm:$0x1] %v2213
    %2235 = vst [vmem:[#allocation2 + $0x2b] sm:$0x1] %v2221
    %2236 = vst [vmem:[#allocation2 + $0x3b] sm:$0x1] %v2223
    %2237 = vst [vmem:[#allocation2 + $0x4b] sm:$0x1] %v2206
    %2238 = vst [vmem:[#allocation2 + $0x5b] sm:$0x1] %v2220
    %2239 = vst [vmem:[#allocation2 + $0x6b] sm:$0x1] %v2222
    %2240 = vst [vmem:[#allocation2 + $0x7b] sm:$0x1] %v2224
    %v2241 = vlaneseq
    %v2242 = vshrl.u32 %v2241, 7
    %v2243 = vsub.s32 4, %v2242
    %v2244 = vrot.slane %v19, %v2243
    %v2245 = vsub.f32 %v52, %v2244
    %v2246 = vmul.f32 %v2245, 0.2236068
    %v2248 = vsel %vm207, %v2246, 0
    %v2251 = vsel %vm473, %v45, 0
    %2253 = vmatprep.subr.mxu0 0.0
    %2254 = vmatpush1.msra.mxu0 0.0
    %2255 = vmatprep.subr.mxu0 0.0
    %2256 = vmatpush1.msra.mxu0 0.0
    %2257 = vmatprep.subr.mxu0 0.0
    %2258 = vmatpush1.msra.mxu0 0.0
    %2259 = vmatprep.subr.mxu0 0.0
    %2260 = vmatpush1.msra.mxu0 0.0
    %2261 = vmatprep.subr.mxu0 0.0
    %2262 = vmatpush1.msra.mxu0 0.0
    %2263 = vmatprep.subr.mxu0 0.0
    %2264 = vmatpush1.msra.mxu0 0.0
    %2265 = vmatprep.subr.mxu0 0.0
    %2266 = vmatpush1.msra.mxu0 0.0
    %2267 = vmatprep.subr.mxu0 0.0
    %2268 = vmatpush1.msra.mxu0 0.0
    %2269 = vmatprep.subr.mxu0 0.0
    %2270 = vmatpush1.msra.mxu0 0.0
    %2271 = vmatprep.subr.mxu0 0.0
    %2272 = vmatpush1.msra.mxu0 0.0
    %2273 = vmatprep.subr.mxu0 0.0
    %2274 = vmatpush1.msra.mxu0 0.0
    %2275 = vmatprep.subr.mxu0 0.0
    %2276 = vmatpush1.msra.mxu0 0.0
    %2277 = vmatprep.subr.mxu0 0.0
    %2278 = vmatpush1.msra.mxu0 0.0
    %2279 = vmatprep.subr.mxu0 0.0
    %2280 = vmatpush1.msra.mxu0 0.0
    %2281 = vmatprep.subr.mxu0 0.0
    %2282 = vmatpush1.msra.mxu0 %v2251
    %2283 = vmatprep.subr.mxu0 0.0
    %2284 = vmatpush1.msra.mxu0 %v44
    %2285 = vmatprep.subr.mxu0 0.0
    %2286 = vmatpush2.msra.mxu0 0.0
    %2287 = vmatprep.subr.mxu0 0.0
    %2288 = vmatpush2.msra.mxu0 0.0
    %2289 = vmatprep.subr.mxu0 0.0
    %2290 = vmatpush2.msra.mxu0 0.0
    %2291 = vmatprep.subr.mxu0 0.0
    %2292 = vmatpush2.msra.mxu0 0.0
    %2293 = vmatprep.subr.mxu0 0.0
    %2294 = vmatpush2.msra.mxu0 0.0
    %2295 = vmatprep.subr.mxu0 0.0
    %2296 = vmatpush2.msra.mxu0 0.0
    %2297 = vmatprep.subr.mxu0 0.0
    %2298 = vmatpush2.msra.mxu0 0.0
    %2299 = vmatprep.subr.mxu0 0.0
    %2300 = vmatpush2.msra.mxu0 0.0
    %2301 = vmatprep.subr.mxu0 0.0
    %2302 = vmatpush2.msra.mxu0 0.0
    %2303 = vmatprep.subr.mxu0 0.0
    %2304 = vmatpush2.msra.mxu0 0.0
    %2305 = vmatprep.subr.mxu0 0.0
    %2306 = vmatpush2.msra.mxu0 0.0
    %2307 = vmatprep.subr.mxu0 0.0
    %2308 = vmatpush2.msra.mxu0 0.0
    %2309 = vmatprep.subr.mxu0 0.0
    %2310 = vmatpush2.msra.mxu0 0.0
    %2311 = vmatprep.subr.mxu0 0.0
    %2312 = vmatpush2.msra.mxu0 0.0
    %2313 = vmatprep.subr.mxu0 0.0
    %2314 = vmatpush2.msra.mxu0 0.0
    %2315 = vmatprep.subr.mxu0 0.0
    %2316 = vmatpush2.msra.mxu0 0.0
    %2317 = vmatprep.mubr.f32.mxu0 0.0
    %2318 = vmatmul.mubr.f32.gmra.mxu0 %v2248
    %v2319 = vpop.f32.mrf.mxu0
    %v2320 = vadd.f32 0.0, %v2319
    %v2321 = vpop.f32.mrf.mxu0
    %2322 = vdwg.mxu0
    %v2324 = vcombine.high %v2320, %v2320
    %v2326 = vunpack.c.l.s4 1966171168
    %v2327 = vunpack.c.0.s8 %v2326
    %v2328 = vlaneseq
    %v2329 = vshrl.u32 %v2328, 7
    %v2330 = vsub.s32 %v2327, %v2329
    %v2331 = vrot.slane %v2320, %v2330
    %v2333 = vunpack.c.l.s4 1966171168
    %v2334 = vunpack.c.0.s8 %v2333
    %v2335 = vlaneseq
    %v2336 = vshrl.u32 %v2335, 7
    %v2337 = vsub.s32 %v2334, %v2336
    %v2338 = vrot.slane %v2324, %v2337
    %v2339 = vcombine.high %v2331, %v2331
    %v2340 = vcombine.high %v2338, %v2338
    %v2342 = vunpack.c.l.s4 1966171168
    %v2343 = vunpack.c.0.s8 %v2342
    %v2344 = vlaneseq
    %v2345 = vshrl.u32 %v2344, 7
    %v2346 = vsub.s32 %v2343, %v2345
    %v2347 = vrot.slane %v2331, %v2346
    %v2349 = vunpack.c.l.s4 1966171168
    %v2350 = vunpack.c.0.s8 %v2349
    %v2351 = vlaneseq
    %v2352 = vshrl.u32 %v2351, 7
    %v2353 = vsub.s32 %v2350, %v2352
    %v2354 = vrot.slane %v2338, %v2353
    %v2356 = vunpack.c.l.s4 1966171168
    %v2357 = vunpack.c.0.s8 %v2356
    %v2358 = vlaneseq
    %v2359 = vshrl.u32 %v2358, 7
    %v2360 = vsub.s32 %v2357, %v2359
    %v2361 = vrot.slane %v2339, %v2360
    %v2363 = vunpack.c.l.s4 1966171168
    %v2364 = vunpack.c.0.s8 %v2363
    %v2365 = vlaneseq
    %v2366 = vshrl.u32 %v2365, 7
    %v2367 = vsub.s32 %v2364, %v2366
    %v2368 = vrot.slane %v2340, %v2367
    %v2369 = vcombine.high %v2347, %v2347
    %v2370 = vcombine.high %v2354, %v2354
    %v2371 = vcombine.high %v2361, %v2361
    %v2372 = vcombine.high %v2368, %v2368
    %2381 = vst [vmem:[#allocation2 + $0xc] sm:$0x1] %v2347
    %2382 = vst [vmem:[#allocation2 + $0x1c] sm:$0x1] %v2361
    %2383 = vst [vmem:[#allocation2 + $0x2c] sm:$0x1] %v2369
    %2384 = vst [vmem:[#allocation2 + $0x3c] sm:$0x1] %v2371
    %2385 = vst [vmem:[#allocation2 + $0x4c] sm:$0x1] %v2354
    %2386 = vst [vmem:[#allocation2 + $0x5c] sm:$0x1] %v2368
    %2387 = vst [vmem:[#allocation2 + $0x6c] sm:$0x1] %v2370
    %2388 = vst [vmem:[#allocation2 + $0x7c] sm:$0x1] %v2372
    %v2389 = vlaneseq
    %v2390 = vshrl.u32 %v2389, 7
    %v2391 = vsub.s32 5, %v2390
    %v2392 = vrot.slane %v19, %v2391
    %v2393 = vsub.f32 %v52, %v2392
    %v2394 = vmul.f32 %v2393, 0.2236068
    %v2396 = vsel %vm207, %v2394, 0
    %v2399 = vsel %vm473, %v47, 0
    %2401 = vmatprep.subr.mxu0 0.0
    %2402 = vmatpush1.msra.mxu0 0.0
    %2403 = vmatprep.subr.mxu0 0.0
    %2404 = vmatpush1.msra.mxu0 0.0
    %2405 = vmatprep.subr.mxu0 0.0
    %2406 = vmatpush1.msra.mxu0 0.0
    %2407 = vmatprep.subr.mxu0 0.0
    %2408 = vmatpush1.msra.mxu0 0.0
    %2409 = vmatprep.subr.mxu0 0.0
    %2410 = vmatpush1.msra.mxu0 0.0
    %2411 = vmatprep.subr.mxu0 0.0
    %2412 = vmatpush1.msra.mxu0 0.0
    %2413 = vmatprep.subr.mxu0 0.0
    %2414 = vmatpush1.msra.mxu0 0.0
    %2415 = vmatprep.subr.mxu0 0.0
    %2416 = vmatpush1.msra.mxu0 0.0
    %2417 = vmatprep.subr.mxu0 0.0
    %2418 = vmatpush1.msra.mxu0 0.0
    %2419 = vmatprep.subr.mxu0 0.0
    %2420 = vmatpush1.msra.mxu0 0.0
    %2421 = vmatprep.subr.mxu0 0.0
    %2422 = vmatpush1.msra.mxu0 0.0
    %2423 = vmatprep.subr.mxu0 0.0
    %2424 = vmatpush1.msra.mxu0 0.0
    %2425 = vmatprep.subr.mxu0 0.0
    %2426 = vmatpush1.msra.mxu0 0.0
    %2427 = vmatprep.subr.mxu0 0.0
    %2428 = vmatpush1.msra.mxu0 0.0
    %2429 = vmatprep.subr.mxu0 0.0
    %2430 = vmatpush1.msra.mxu0 %v2399
    %2431 = vmatprep.subr.mxu0 0.0
    %2432 = vmatpush1.msra.mxu0 %v46
    %2433 = vmatprep.subr.mxu0 0.0
    %2434 = vmatpush2.msra.mxu0 0.0
    %2435 = vmatprep.subr.mxu0 0.0
    %2436 = vmatpush2.msra.mxu0 0.0
    %2437 = vmatprep.subr.mxu0 0.0
    %2438 = vmatpush2.msra.mxu0 0.0
    %2439 = vmatprep.subr.mxu0 0.0
    %2440 = vmatpush2.msra.mxu0 0.0
    %2441 = vmatprep.subr.mxu0 0.0
    %2442 = vmatpush2.msra.mxu0 0.0
    %2443 = vmatprep.subr.mxu0 0.0
    %2444 = vmatpush2.msra.mxu0 0.0
    %2445 = vmatprep.subr.mxu0 0.0
    %2446 = vmatpush2.msra.mxu0 0.0
    %2447 = vmatprep.subr.mxu0 0.0
    %2448 = vmatpush2.msra.mxu0 0.0
    %2449 = vmatprep.subr.mxu0 0.0
    %2450 = vmatpush2.msra.mxu0 0.0
    %2451 = vmatprep.subr.mxu0 0.0
    %2452 = vmatpush2.msra.mxu0 0.0
    %2453 = vmatprep.subr.mxu0 0.0
    %2454 = vmatpush2.msra.mxu0 0.0
    %2455 = vmatprep.subr.mxu0 0.0
    %2456 = vmatpush2.msra.mxu0 0.0
    %2457 = vmatprep.subr.mxu0 0.0
    %2458 = vmatpush2.msra.mxu0 0.0
    %2459 = vmatprep.subr.mxu0 0.0
    %2460 = vmatpush2.msra.mxu0 0.0
    %2461 = vmatprep.subr.mxu0 0.0
    %2462 = vmatpush2.msra.mxu0 0.0
    %2463 = vmatprep.subr.mxu0 0.0
    %2464 = vmatpush2.msra.mxu0 0.0
    %2465 = vmatprep.mubr.f32.mxu0 0.0
    %2466 = vmatmul.mubr.f32.gmra.mxu0 %v2396
    %v2467 = vpop.f32.mrf.mxu0
    %v2468 = vadd.f32 0.0, %v2467
    %v2469 = vpop.f32.mrf.mxu0
    %2470 = vdwg.mxu0
    %v2472 = vcombine.high %v2468, %v2468
    %v2474 = vunpack.c.l.s4 1966171168
    %v2475 = vunpack.c.0.s8 %v2474
    %v2476 = vlaneseq
    %v2477 = vshrl.u32 %v2476, 7
    %v2478 = vsub.s32 %v2475, %v2477
    %v2479 = vrot.slane %v2468, %v2478
    %v2481 = vunpack.c.l.s4 1966171168
    %v2482 = vunpack.c.0.s8 %v2481
    %v2483 = vlaneseq
    %v2484 = vshrl.u32 %v2483, 7
    %v2485 = vsub.s32 %v2482, %v2484
    %v2486 = vrot.slane %v2472, %v2485
    %v2487 = vcombine.high %v2479, %v2479
    %v2488 = vcombine.high %v2486, %v2486
    %v2490 = vunpack.c.l.s4 1966171168
    %v2491 = vunpack.c.0.s8 %v2490
    %v2492 = vlaneseq
    %v2493 = vshrl.u32 %v2492, 7
    %v2494 = vsub.s32 %v2491, %v2493
    %v2495 = vrot.slane %v2479, %v2494
    %v2497 = vunpack.c.l.s4 1966171168
    %v2498 = vunpack.c.0.s8 %v2497
    %v2499 = vlaneseq
    %v2500 = vshrl.u32 %v2499, 7
    %v2501 = vsub.s32 %v2498, %v2500
    %v2502 = vrot.slane %v2486, %v2501
    %v2504 = vunpack.c.l.s4 1966171168
    %v2505 = vunpack.c.0.s8 %v2504
    %v2506 = vlaneseq
    %v2507 = vshrl.u32 %v2506, 7
    %v2508 = vsub.s32 %v2505, %v2507
    %v2509 = vrot.slane %v2487, %v2508
    %v2511 = vunpack.c.l.s4 1966171168
    %v2512 = vunpack.c.0.s8 %v2511
    %v2513 = vlaneseq
    %v2514 = vshrl.u32 %v2513, 7
    %v2515 = vsub.s32 %v2512, %v2514
    %v2516 = vrot.slane %v2488, %v2515
    %v2517 = vcombine.high %v2495, %v2495
    %v2518 = vcombine.high %v2502, %v2502
    %v2519 = vcombine.high %v2509, %v2509
    %v2520 = vcombine.high %v2516, %v2516
    %2529 = vst [vmem:[#allocation2 + $0xd] sm:$0x1] %v2495
    %2530 = vst [vmem:[#allocation2 + $0x1d] sm:$0x1] %v2509
    %2531 = vst [vmem:[#allocation2 + $0x2d] sm:$0x1] %v2517
    %2532 = vst [vmem:[#allocation2 + $0x3d] sm:$0x1] %v2519
    %2533 = vst [vmem:[#allocation2 + $0x4d] sm:$0x1] %v2502
    %2534 = vst [vmem:[#allocation2 + $0x5d] sm:$0x1] %v2516
    %2535 = vst [vmem:[#allocation2 + $0x6d] sm:$0x1] %v2518
    %2536 = vst [vmem:[#allocation2 + $0x7d] sm:$0x1] %v2520
    %v2537 = vlaneseq
    %v2538 = vshrl.u32 %v2537, 7
    %v2539 = vsub.s32 6, %v2538
    %v2540 = vrot.slane %v19, %v2539
    %v2541 = vsub.f32 %v52, %v2540
    %v2542 = vmul.f32 %v2541, 0.2236068
    %v2544 = vsel %vm207, %v2542, 0
    %v2547 = vsel %vm473, %v49, 0
    %2549 = vmatprep.subr.mxu0 0.0
    %2550 = vmatpush1.msra.mxu0 0.0
    %2551 = vmatprep.subr.mxu0 0.0
    %2552 = vmatpush1.msra.mxu0 0.0
    %2553 = vmatprep.subr.mxu0 0.0
    %2554 = vmatpush1.msra.mxu0 0.0
    %2555 = vmatprep.subr.mxu0 0.0
    %2556 = vmatpush1.msra.mxu0 0.0
    %2557 = vmatprep.subr.mxu0 0.0
    %2558 = vmatpush1.msra.mxu0 0.0
    %2559 = vmatprep.subr.mxu0 0.0
    %2560 = vmatpush1.msra.mxu0 0.0
    %2561 = vmatprep.subr.mxu0 0.0
    %2562 = vmatpush1.msra.mxu0 0.0
    %2563 = vmatprep.subr.mxu0 0.0
    %2564 = vmatpush1.msra.mxu0 0.0
    %2565 = vmatprep.subr.mxu0 0.0
    %2566 = vmatpush1.msra.mxu0 0.0
    %2567 = vmatprep.subr.mxu0 0.0
    %2568 = vmatpush1.msra.mxu0 0.0
    %2569 = vmatprep.subr.mxu0 0.0
    %2570 = vmatpush1.msra.mxu0 0.0
    %2571 = vmatprep.subr.mxu0 0.0
    %2572 = vmatpush1.msra.mxu0 0.0
    %2573 = vmatprep.subr.mxu0 0.0
    %2574 = vmatpush1.msra.mxu0 0.0
    %2575 = vmatprep.subr.mxu0 0.0
    %2576 = vmatpush1.msra.mxu0 0.0
    %2577 = vmatprep.subr.mxu0 0.0
    %2578 = vmatpush1.msra.mxu0 %v2547
    %2579 = vmatprep.subr.mxu0 0.0
    %2580 = vmatpush1.msra.mxu0 %v48
    %2581 = vmatprep.subr.mxu0 0.0
    %2582 = vmatpush2.msra.mxu0 0.0
    %2583 = vmatprep.subr.mxu0 0.0
    %2584 = vmatpush2.msra.mxu0 0.0
    %2585 = vmatprep.subr.mxu0 0.0
    %2586 = vmatpush2.msra.mxu0 0.0
    %2587 = vmatprep.subr.mxu0 0.0
    %2588 = vmatpush2.msra.mxu0 0.0
    %2589 = vmatprep.subr.mxu0 0.0
    %2590 = vmatpush2.msra.mxu0 0.0
    %2591 = vmatprep.subr.mxu0 0.0
    %2592 = vmatpush2.msra.mxu0 0.0
    %2593 = vmatprep.subr.mxu0 0.0
    %2594 = vmatpush2.msra.mxu0 0.0
    %2595 = vmatprep.subr.mxu0 0.0
    %2596 = vmatpush2.msra.mxu0 0.0
    %2597 = vmatprep.subr.mxu0 0.0
    %2598 = vmatpush2.msra.mxu0 0.0
    %2599 = vmatprep.subr.mxu0 0.0
    %2600 = vmatpush2.msra.mxu0 0.0
    %2601 = vmatprep.subr.mxu0 0.0
    %2602 = vmatpush2.msra.mxu0 0.0
    %2603 = vmatprep.subr.mxu0 0.0
    %2604 = vmatpush2.msra.mxu0 0.0
    %2605 = vmatprep.subr.mxu0 0.0
    %2606 = vmatpush2.msra.mxu0 0.0
    %2607 = vmatprep.subr.mxu0 0.0
    %2608 = vmatpush2.msra.mxu0 0.0
    %2609 = vmatprep.subr.mxu0 0.0
    %2610 = vmatpush2.msra.mxu0 0.0
    %2611 = vmatprep.subr.mxu0 0.0
    %2612 = vmatpush2.msra.mxu0 0.0
    %2613 = vmatprep.mubr.f32.mxu0 0.0
    %2614 = vmatmul.mubr.f32.gmra.mxu0 %v2544
    %v2615 = vpop.f32.mrf.mxu0
    %v2616 = vadd.f32 0.0, %v2615
    %v2617 = vpop.f32.mrf.mxu0
    %2618 = vdwg.mxu0
    %v2620 = vcombine.high %v2616, %v2616
    %v2622 = vunpack.c.l.s4 1966171168
    %v2623 = vunpack.c.0.s8 %v2622
    %v2624 = vlaneseq
    %v2625 = vshrl.u32 %v2624, 7
    %v2626 = vsub.s32 %v2623, %v2625
    %v2627 = vrot.slane %v2616, %v2626
    %v2629 = vunpack.c.l.s4 1966171168
    %v2630 = vunpack.c.0.s8 %v2629
    %v2631 = vlaneseq
    %v2632 = vshrl.u32 %v2631, 7
    %v2633 = vsub.s32 %v2630, %v2632
    %v2634 = vrot.slane %v2620, %v2633
    %v2635 = vcombine.high %v2627, %v2627
    %v2636 = vcombine.high %v2634, %v2634
    %v2638 = vunpack.c.l.s4 1966171168
    %v2639 = vunpack.c.0.s8 %v2638
    %v2640 = vlaneseq
    %v2641 = vshrl.u32 %v2640, 7
    %v2642 = vsub.s32 %v2639, %v2641
    %v2643 = vrot.slane %v2627, %v2642
    %v2645 = vunpack.c.l.s4 1966171168
    %v2646 = vunpack.c.0.s8 %v2645
    %v2647 = vlaneseq
    %v2648 = vshrl.u32 %v2647, 7
    %v2649 = vsub.s32 %v2646, %v2648
    %v2650 = vrot.slane %v2634, %v2649
    %v2652 = vunpack.c.l.s4 1966171168
    %v2653 = vunpack.c.0.s8 %v2652
    %v2654 = vlaneseq
    %v2655 = vshrl.u32 %v2654, 7
    %v2656 = vsub.s32 %v2653, %v2655
    %v2657 = vrot.slane %v2635, %v2656
    %v2659 = vunpack.c.l.s4 1966171168
    %v2660 = vunpack.c.0.s8 %v2659
    %v2661 = vlaneseq
    %v2662 = vshrl.u32 %v2661, 7
    %v2663 = vsub.s32 %v2660, %v2662
    %v2664 = vrot.slane %v2636, %v2663
    %v2665 = vcombine.high %v2643, %v2643
    %v2666 = vcombine.high %v2650, %v2650
    %v2667 = vcombine.high %v2657, %v2657
    %v2668 = vcombine.high %v2664, %v2664
    %2677 = vst [vmem:[#allocation2 + $0xe] sm:$0x1] %v2643
    %2678 = vst [vmem:[#allocation2 + $0x1e] sm:$0x1] %v2657
    %2679 = vst [vmem:[#allocation2 + $0x2e] sm:$0x1] %v2665
    %2680 = vst [vmem:[#allocation2 + $0x3e] sm:$0x1] %v2667
    %2681 = vst [vmem:[#allocation2 + $0x4e] sm:$0x1] %v2650
    %2682 = vst [vmem:[#allocation2 + $0x5e] sm:$0x1] %v2664
    %2683 = vst [vmem:[#allocation2 + $0x6e] sm:$0x1] %v2666
    %2684 = vst [vmem:[#allocation2 + $0x7e] sm:$0x1] %v2668
    %v2685 = vlaneseq
    %v2686 = vshrl.u32 %v2685, 7
    %v2687 = vsub.s32 7, %v2686
    %v2688 = vrot.slane %v19, %v2687
    %v2689 = vsub.f32 %v52, %v2688
    %v2690 = vmul.f32 %v2689, 0.2236068
    %v2692 = vsel %vm207, %v2690, 0
    %v2695 = vsel %vm473, %v51, 0
    %2697 = vmatprep.subr.mxu0 0.0
    %2698 = vmatpush1.msra.mxu0 0.0
    %2699 = vmatprep.subr.mxu0 0.0
    %2700 = vmatpush1.msra.mxu0 0.0
    %2701 = vmatprep.subr.mxu0 0.0
    %2702 = vmatpush1.msra.mxu0 0.0
    %2703 = vmatprep.subr.mxu0 0.0
    %2704 = vmatpush1.msra.mxu0 0.0
    %2705 = vmatprep.subr.mxu0 0.0
    %2706 = vmatpush1.msra.mxu0 0.0
    %2707 = vmatprep.subr.mxu0 0.0
    %2708 = vmatpush1.msra.mxu0 0.0
    %2709 = vmatprep.subr.mxu0 0.0
    %2710 = vmatpush1.msra.mxu0 0.0
    %2711 = vmatprep.subr.mxu0 0.0
    %2712 = vmatpush1.msra.mxu0 0.0
    %2713 = vmatprep.subr.mxu0 0.0
    %2714 = vmatpush1.msra.mxu0 0.0
    %2715 = vmatprep.subr.mxu0 0.0
    %2716 = vmatpush1.msra.mxu0 0.0
    %2717 = vmatprep.subr.mxu0 0.0
    %2718 = vmatpush1.msra.mxu0 0.0
    %2719 = vmatprep.subr.mxu0 0.0
    %2720 = vmatpush1.msra.mxu0 0.0
    %2721 = vmatprep.subr.mxu0 0.0
    %2722 = vmatpush1.msra.mxu0 0.0
    %2723 = vmatprep.subr.mxu0 0.0
    %2724 = vmatpush1.msra.mxu0 0.0
    %2725 = vmatprep.subr.mxu0 0.0
    %2726 = vmatpush1.msra.mxu0 %v2695
    %2727 = vmatprep.subr.mxu0 0.0
    %2728 = vmatpush1.msra.mxu0 %v50
    %2729 = vmatprep.subr.mxu0 0.0
    %2730 = vmatpush2.msra.mxu0 0.0
    %2731 = vmatprep.subr.mxu0 0.0
    %2732 = vmatpush2.msra.mxu0 0.0
    %2733 = vmatprep.subr.mxu0 0.0
    %2734 = vmatpush2.msra.mxu0 0.0
    %2735 = vmatprep.subr.mxu0 0.0
    %2736 = vmatpush2.msra.mxu0 0.0
    %2737 = vmatprep.subr.mxu0 0.0
    %2738 = vmatpush2.msra.mxu0 0.0
    %2739 = vmatprep.subr.mxu0 0.0
    %2740 = vmatpush2.msra.mxu0 0.0
    %2741 = vmatprep.subr.mxu0 0.0
    %2742 = vmatpush2.msra.mxu0 0.0
    %2743 = vmatprep.subr.mxu0 0.0
    %2744 = vmatpush2.msra.mxu0 0.0
    %2745 = vmatprep.subr.mxu0 0.0
    %2746 = vmatpush2.msra.mxu0 0.0
    %2747 = vmatprep.subr.mxu0 0.0
    %2748 = vmatpush2.msra.mxu0 0.0
    %2749 = vmatprep.subr.mxu0 0.0
    %2750 = vmatpush2.msra.mxu0 0.0
    %2751 = vmatprep.subr.mxu0 0.0
    %2752 = vmatpush2.msra.mxu0 0.0
    %2753 = vmatprep.subr.mxu0 0.0
    %2754 = vmatpush2.msra.mxu0 0.0
    %2755 = vmatprep.subr.mxu0 0.0
    %2756 = vmatpush2.msra.mxu0 0.0
    %2757 = vmatprep.subr.mxu0 0.0
    %2758 = vmatpush2.msra.mxu0 0.0
    %2759 = vmatprep.subr.mxu0 0.0
    %2760 = vmatpush2.msra.mxu0 0.0
    %2761 = vmatprep.mubr.f32.mxu0 0.0
    %2762 = vmatmul.mubr.f32.gmra.mxu0 %v2692
    %v2763 = vpop.f32.mrf.mxu0
    %v2764 = vadd.f32 0.0, %v2763
    %v2765 = vpop.f32.mrf.mxu0
    %2766 = vdwg.mxu0
    %v2768 = vcombine.high %v2764, %v2764
    %v2770 = vunpack.c.l.s4 1966171168
    %v2771 = vunpack.c.0.s8 %v2770
    %v2772 = vlaneseq
    %v2773 = vshrl.u32 %v2772, 7
    %v2774 = vsub.s32 %v2771, %v2773
    %v2775 = vrot.slane %v2764, %v2774
    %v2777 = vunpack.c.l.s4 1966171168
    %v2778 = vunpack.c.0.s8 %v2777
    %v2779 = vlaneseq
    %v2780 = vshrl.u32 %v2779, 7
    %v2781 = vsub.s32 %v2778, %v2780
    %v2782 = vrot.slane %v2768, %v2781
    %v2783 = vcombine.high %v2775, %v2775
    %v2784 = vcombine.high %v2782, %v2782
    %v2786 = vunpack.c.l.s4 1966171168
    %v2787 = vunpack.c.0.s8 %v2786
    %v2788 = vlaneseq
    %v2789 = vshrl.u32 %v2788, 7
    %v2790 = vsub.s32 %v2787, %v2789
    %v2791 = vrot.slane %v2775, %v2790
    %v2793 = vunpack.c.l.s4 1966171168
    %v2794 = vunpack.c.0.s8 %v2793
    %v2795 = vlaneseq
    %v2796 = vshrl.u32 %v2795, 7
    %v2797 = vsub.s32 %v2794, %v2796
    %v2798 = vrot.slane %v2782, %v2797
    %v2800 = vunpack.c.l.s4 1966171168
    %v2801 = vunpack.c.0.s8 %v2800
    %v2802 = vlaneseq
    %v2803 = vshrl.u32 %v2802, 7
    %v2804 = vsub.s32 %v2801, %v2803
    %v2805 = vrot.slane %v2783, %v2804
    %v2807 = vunpack.c.l.s4 1966171168
    %v2808 = vunpack.c.0.s8 %v2807
    %v2809 = vlaneseq
    %v2810 = vshrl.u32 %v2809, 7
    %v2811 = vsub.s32 %v2808, %v2810
    %v2812 = vrot.slane %v2784, %v2811
    %v2813 = vcombine.high %v2791, %v2791
    %v2814 = vcombine.high %v2798, %v2798
    %v2815 = vcombine.high %v2805, %v2805
    %v2816 = vcombine.high %v2812, %v2812
    %2825 = vst [vmem:[#allocation2 + $0xf] sm:$0x1] %v2791
    %2826 = vst [vmem:[#allocation2 + $0x1f] sm:$0x1] %v2805
    %2827 = vst [vmem:[#allocation2 + $0x2f] sm:$0x1] %v2813
    %2828 = vst [vmem:[#allocation2 + $0x3f] sm:$0x1] %v2815
    %2829 = vst [vmem:[#allocation2 + $0x4f] sm:$0x1] %v2798
    %2830 = vst [vmem:[#allocation2 + $0x5f] sm:$0x1] %v2812
    %2831 = vst [vmem:[#allocation2 + $0x6f] sm:$0x1] %v2814
    %2832 = vst [vmem:[#allocation2 + $0x7f] sm:$0x1] %v2816
    %v2834 = vsel %vm207, %v53, 0
    %v2837 = vsel %vm207, %v54, 0
    %v2840 = vsel %vm207, %v175, 0
    %v2843 = vsel %vm207, %v176, 0
    %2845 = vmatprep.subr.mxu0 0.0
    %2846 = vmatpush1.xpose.msra.mxu0 0.0
    %2847 = vmatprep.subr.mxu0 0.0
    %2848 = vmatpush1.xpose.msra.mxu0 0.0
    %2849 = vmatprep.subr.mxu0 0.0
    %2850 = vmatpush1.xpose.msra.mxu0 0.0
    %2851 = vmatprep.subr.mxu0 0.0
    %2852 = vmatpush1.xpose.msra.mxu0 0.0
    %2853 = vmatprep.subr.mxu0 0.0
    %2854 = vmatpush1.xpose.msra.mxu0 0.0
    %2855 = vmatprep.subr.mxu0 0.0
    %2856 = vmatpush1.xpose.msra.mxu0 0.0
    %2857 = vmatprep.subr.mxu0 0.0
    %2858 = vmatpush1.xpose.msra.mxu0 0.0
    %2859 = vmatprep.subr.mxu0 0.0
    %2860 = vmatpush1.xpose.msra.mxu0 0.0
    %2861 = vmatprep.subr.mxu0 0.0
    %2862 = vmatpush1.xpose.msra.mxu0 0.0
    %2863 = vmatprep.subr.mxu0 0.0
    %2864 = vmatpush1.xpose.msra.mxu0 0.0
    %2865 = vmatprep.subr.mxu0 0.0
    %2866 = vmatpush1.xpose.msra.mxu0 0.0
    %2867 = vmatprep.subr.mxu0 0.0
    %2868 = vmatpush1.xpose.msra.mxu0 0.0
    %2869 = vmatprep.subr.mxu0 0.0
    %2870 = vmatpush1.xpose.msra.mxu0 0.0
    %2871 = vmatprep.subr.mxu0 0.0
    %2872 = vmatpush1.xpose.msra.mxu0 0.0
    %2873 = vmatprep.subr.mxu0 0.0
    %2874 = vmatpush1.xpose.msra.mxu0 %v2843
    %2875 = vmatprep.subr.mxu0 0.0
    %2876 = vmatpush1.xpose.msra.mxu0 %v2840
    %2877 = vmatprep.subr.mxu0 0.0
    %2878 = vmatpush2.xpose.msra.mxu0 0.0
    %2879 = vmatprep.subr.mxu0 0.0
    %2880 = vmatpush2.xpose.msra.mxu0 0.0
    %2881 = vmatprep.subr.mxu0 0.0
    %2882 = vmatpush2.xpose.msra.mxu0 0.0
    %2883 = vmatprep.subr.mxu0 0.0
    %2884 = vmatpush2.xpose.msra.mxu0 0.0
    %2885 = vmatprep.subr.mxu0 0.0
    %2886 = vmatpush2.xpose.msra.mxu0 0.0
    %2887 = vmatprep.subr.mxu0 0.0
    %2888 = vmatpush2.xpose.msra.mxu0 0.0
    %2889 = vmatprep.subr.mxu0 0.0
    %2890 = vmatpush2.xpose.msra.mxu0 0.0
    %2891 = vmatprep.subr.mxu0 0.0
    %2892 = vmatpush2.xpose.msra.mxu0 0.0
    %2893 = vmatprep.subr.mxu0 0.0
    %2894 = vmatpush2.xpose.msra.mxu0 0.0
    %2895 = vmatprep.subr.mxu0 0.0
    %2896 = vmatpush2.xpose.msra.mxu0 0.0
    %2897 = vmatprep.subr.mxu0 0.0
    %2898 = vmatpush2.xpose.msra.mxu0 0.0
    %2899 = vmatprep.subr.mxu0 0.0
    %2900 = vmatpush2.xpose.msra.mxu0 0.0
    %2901 = vmatprep.subr.mxu0 0.0
    %2902 = vmatpush2.xpose.msra.mxu0 0.0
    %2903 = vmatprep.subr.mxu0 0.0
    %2904 = vmatpush2.xpose.msra.mxu0 0.0
    %2905 = vmatprep.subr.mxu0 0.0
    %2906 = vmatpush2.xpose.msra.mxu0 0.0
    %2907 = vmatprep.subr.mxu0 0.0
    %2908 = vmatpush2.xpose.msra.mxu0 0.0
    %2909 = vmatprep.mubr.f32.mxu0 0.0
    %2910 = vmatmul.mubr.f32.gmra.mxu0 %v2834
    %v2911 = vpop.f32.mrf.mxu0
    %v2912 = vadd.f32 0.0, %v2911
    %v2913 = vpop.f32.mrf.mxu0
    %2914 = vmatprep.mubr.f32.mxu0 0.0
    %2915 = vmatmul.mubr.f32.gmra.mxu0 %v2837
    %v2916 = vpop.f32.mrf.mxu0
    %v2917 = vadd.f32 0.0, %v2916
    %v2918 = vpop.f32.mrf.mxu0
    %2919 = vdwg.mxu0
    %v2921 = vsel %vm207, %v55, 0
    %v2924 = vsel %vm207, %v56, 0
    %v2927 = vsel %vm207, %v177, 0
    %v2930 = vsel %vm207, %v178, 0
    %2932 = vmatprep.subr.mxu0 0.0
    %2933 = vmatpush1.xpose.msra.mxu0 0.0
    %2934 = vmatprep.subr.mxu0 0.0
    %2935 = vmatpush1.xpose.msra.mxu0 0.0
    %2936 = vmatprep.subr.mxu0 0.0
    %2937 = vmatpush1.xpose.msra.mxu0 0.0
    %2938 = vmatprep.subr.mxu0 0.0
    %2939 = vmatpush1.xpose.msra.mxu0 0.0
    %2940 = vmatprep.subr.mxu0 0.0
    %2941 = vmatpush1.xpose.msra.mxu0 0.0
    %2942 = vmatprep.subr.mxu0 0.0
    %2943 = vmatpush1.xpose.msra.mxu0 0.0
    %2944 = vmatprep.subr.mxu0 0.0
    %2945 = vmatpush1.xpose.msra.mxu0 0.0
    %2946 = vmatprep.subr.mxu0 0.0
    %2947 = vmatpush1.xpose.msra.mxu0 0.0
    %2948 = vmatprep.subr.mxu0 0.0
    %2949 = vmatpush1.xpose.msra.mxu0 0.0
    %2950 = vmatprep.subr.mxu0 0.0
    %2951 = vmatpush1.xpose.msra.mxu0 0.0
    %2952 = vmatprep.subr.mxu0 0.0
    %2953 = vmatpush1.xpose.msra.mxu0 0.0
    %2954 = vmatprep.subr.mxu0 0.0
    %2955 = vmatpush1.xpose.msra.mxu0 0.0
    %2956 = vmatprep.subr.mxu0 0.0
    %2957 = vmatpush1.xpose.msra.mxu0 0.0
    %2958 = vmatprep.subr.mxu0 0.0
    %2959 = vmatpush1.xpose.msra.mxu0 0.0
    %2960 = vmatprep.subr.mxu0 0.0
    %2961 = vmatpush1.xpose.msra.mxu0 %v2930
    %2962 = vmatprep.subr.mxu0 0.0
    %2963 = vmatpush1.xpose.msra.mxu0 %v2927
    %2964 = vmatprep.subr.mxu0 0.0
    %2965 = vmatpush2.xpose.msra.mxu0 0.0
    %2966 = vmatprep.subr.mxu0 0.0
    %2967 = vmatpush2.xpose.msra.mxu0 0.0
    %2968 = vmatprep.subr.mxu0 0.0
    %2969 = vmatpush2.xpose.msra.mxu0 0.0
    %2970 = vmatprep.subr.mxu0 0.0
    %2971 = vmatpush2.xpose.msra.mxu0 0.0
    %2972 = vmatprep.subr.mxu0 0.0
    %2973 = vmatpush2.xpose.msra.mxu0 0.0
    %2974 = vmatprep.subr.mxu0 0.0
    %2975 = vmatpush2.xpose.msra.mxu0 0.0
    %2976 = vmatprep.subr.mxu0 0.0
    %2977 = vmatpush2.xpose.msra.mxu0 0.0
    %2978 = vmatprep.subr.mxu0 0.0
    %2979 = vmatpush2.xpose.msra.mxu0 0.0
    %2980 = vmatprep.subr.mxu0 0.0
    %2981 = vmatpush2.xpose.msra.mxu0 0.0
    %2982 = vmatprep.subr.mxu0 0.0
    %2983 = vmatpush2.xpose.msra.mxu0 0.0
    %2984 = vmatprep.subr.mxu0 0.0
    %2985 = vmatpush2.xpose.msra.mxu0 0.0
    %2986 = vmatprep.subr.mxu0 0.0
    %2987 = vmatpush2.xpose.msra.mxu0 0.0
    %2988 = vmatprep.subr.mxu0 0.0
    %2989 = vmatpush2.xpose.msra.mxu0 0.0
    %2990 = vmatprep.subr.mxu0 0.0
    %2991 = vmatpush2.xpose.msra.mxu0 0.0
    %2992 = vmatprep.subr.mxu0 0.0
    %2993 = vmatpush2.xpose.msra.mxu0 0.0
    %2994 = vmatprep.subr.mxu0 0.0
    %2995 = vmatpush2.xpose.msra.mxu0 0.0
    %2996 = vmatprep.mubr.f32.mxu0 0.0
    %2997 = vmatmul.mubr.f32.gmra.mxu0 %v2921
    %v2998 = vpop.f32.mrf.mxu0
    %v2999 = vadd.f32 0.0, %v2998
    %v3000 = vpop.f32.mrf.mxu0
    %3001 = vmatprep.mubr.f32.mxu0 0.0
    %3002 = vmatmul.mubr.f32.gmra.mxu0 %v2924
    %v3003 = vpop.f32.mrf.mxu0
    %v3004 = vadd.f32 0.0, %v3003
    %v3005 = vpop.f32.mrf.mxu0
    %3006 = vdwg.mxu0
    %v3008 = vsel %vm207, %v57, 0
    %v3011 = vsel %vm207, %v58, 0
    %v3014 = vsel %vm207, %v179, 0
    %v3017 = vsel %vm207, %v180, 0
    %3019 = vmatprep.subr.mxu0 0.0
    %3020 = vmatpush1.xpose.msra.mxu0 0.0
    %3021 = vmatprep.subr.mxu0 0.0
    %3022 = vmatpush1.xpose.msra.mxu0 0.0
    %3023 = vmatprep.subr.mxu0 0.0
    %3024 = vmatpush1.xpose.msra.mxu0 0.0
    %3025 = vmatprep.subr.mxu0 0.0
    %3026 = vmatpush1.xpose.msra.mxu0 0.0
    %3027 = vmatprep.subr.mxu0 0.0
    %3028 = vmatpush1.xpose.msra.mxu0 0.0
    %3029 = vmatprep.subr.mxu0 0.0
    %3030 = vmatpush1.xpose.msra.mxu0 0.0
    %3031 = vmatprep.subr.mxu0 0.0
    %3032 = vmatpush1.xpose.msra.mxu0 0.0
    %3033 = vmatprep.subr.mxu0 0.0
    %3034 = vmatpush1.xpose.msra.mxu0 0.0
    %3035 = vmatprep.subr.mxu0 0.0
    %3036 = vmatpush1.xpose.msra.mxu0 0.0
    %3037 = vmatprep.subr.mxu0 0.0
    %3038 = vmatpush1.xpose.msra.mxu0 0.0
    %3039 = vmatprep.subr.mxu0 0.0
    %3040 = vmatpush1.xpose.msra.mxu0 0.0
    %3041 = vmatprep.subr.mxu0 0.0
    %3042 = vmatpush1.xpose.msra.mxu0 0.0
    %3043 = vmatprep.subr.mxu0 0.0
    %3044 = vmatpush1.xpose.msra.mxu0 0.0
    %3045 = vmatprep.subr.mxu0 0.0
    %3046 = vmatpush1.xpose.msra.mxu0 0.0
    %3047 = vmatprep.subr.mxu0 0.0
    %3048 = vmatpush1.xpose.msra.mxu0 %v3017
    %3049 = vmatprep.subr.mxu0 0.0
    %3050 = vmatpush1.xpose.msra.mxu0 %v3014
    %3051 = vmatprep.subr.mxu0 0.0
    %3052 = vmatpush2.xpose.msra.mxu0 0.0
    %3053 = vmatprep.subr.mxu0 0.0
    %3054 = vmatpush2.xpose.msra.mxu0 0.0
    %3055 = vmatprep.subr.mxu0 0.0
    %3056 = vmatpush2.xpose.msra.mxu0 0.0
    %3057 = vmatprep.subr.mxu0 0.0
    %3058 = vmatpush2.xpose.msra.mxu0 0.0
    %3059 = vmatprep.subr.mxu0 0.0
    %3060 = vmatpush2.xpose.msra.mxu0 0.0
    %3061 = vmatprep.subr.mxu0 0.0
    %3062 = vmatpush2.xpose.msra.mxu0 0.0
    %3063 = vmatprep.subr.mxu0 0.0
    %3064 = vmatpush2.xpose.msra.mxu0 0.0
    %3065 = vmatprep.subr.mxu0 0.0
    %3066 = vmatpush2.xpose.msra.mxu0 0.0
    %3067 = vmatprep.subr.mxu0 0.0
    %3068 = vmatpush2.xpose.msra.mxu0 0.0
    %3069 = vmatprep.subr.mxu0 0.0
    %3070 = vmatpush2.xpose.msra.mxu0 0.0
    %3071 = vmatprep.subr.mxu0 0.0
    %3072 = vmatpush2.xpose.msra.mxu0 0.0
    %3073 = vmatprep.subr.mxu0 0.0
    %3074 = vmatpush2.xpose.msra.mxu0 0.0
    %3075 = vmatprep.subr.mxu0 0.0
    %3076 = vmatpush2.xpose.msra.mxu0 0.0
    %3077 = vmatprep.subr.mxu0 0.0
    %3078 = vmatpush2.xpose.msra.mxu0 0.0
    %3079 = vmatprep.subr.mxu0 0.0
    %3080 = vmatpush2.xpose.msra.mxu0 0.0
    %3081 = vmatprep.subr.mxu0 0.0
    %3082 = vmatpush2.xpose.msra.mxu0 0.0
    %3083 = vmatprep.mubr.f32.mxu0 0.0
    %3084 = vmatmul.mubr.f32.gmra.mxu0 %v3008
    %v3085 = vpop.f32.mrf.mxu0
    %v3086 = vadd.f32 0.0, %v3085
    %v3087 = vpop.f32.mrf.mxu0
    %3088 = vmatprep.mubr.f32.mxu0 0.0
    %3089 = vmatmul.mubr.f32.gmra.mxu0 %v3011
    %v3090 = vpop.f32.mrf.mxu0
    %v3091 = vadd.f32 0.0, %v3090
    %v3092 = vpop.f32.mrf.mxu0
    %3093 = vdwg.mxu0
    %v3095 = vsel %vm207, %v59, 0
    %v3098 = vsel %vm207, %v60, 0
    %v3101 = vsel %vm207, %v181, 0
    %v3104 = vsel %vm207, %v182, 0
    %3106 = vmatprep.subr.mxu0 0.0
    %3107 = vmatpush1.xpose.msra.mxu0 0.0
    %3108 = vmatprep.subr.mxu0 0.0
    %3109 = vmatpush1.xpose.msra.mxu0 0.0
    %3110 = vmatprep.subr.mxu0 0.0
    %3111 = vmatpush1.xpose.msra.mxu0 0.0
    %3112 = vmatprep.subr.mxu0 0.0
    %3113 = vmatpush1.xpose.msra.mxu0 0.0
    %3114 = vmatprep.subr.mxu0 0.0
    %3115 = vmatpush1.xpose.msra.mxu0 0.0
    %3116 = vmatprep.subr.mxu0 0.0
    %3117 = vmatpush1.xpose.msra.mxu0 0.0
    %3118 = vmatprep.subr.mxu0 0.0
    %3119 = vmatpush1.xpose.msra.mxu0 0.0
    %3120 = vmatprep.subr.mxu0 0.0
    %3121 = vmatpush1.xpose.msra.mxu0 0.0
    %3122 = vmatprep.subr.mxu0 0.0
    %3123 = vmatpush1.xpose.msra.mxu0 0.0
    %3124 = vmatprep.subr.mxu0 0.0
    %3125 = vmatpush1.xpose.msra.mxu0 0.0
    %3126 = vmatprep.subr.mxu0 0.0
    %3127 = vmatpush1.xpose.msra.mxu0 0.0
    %3128 = vmatprep.subr.mxu0 0.0
    %3129 = vmatpush1.xpose.msra.mxu0 0.0
    %3130 = vmatprep.subr.mxu0 0.0
    %3131 = vmatpush1.xpose.msra.mxu0 0.0
    %3132 = vmatprep.subr.mxu0 0.0
    %3133 = vmatpush1.xpose.msra.mxu0 0.0
    %3134 = vmatprep.subr.mxu0 0.0
    %3135 = vmatpush1.xpose.msra.mxu0 %v3104
    %3136 = vmatprep.subr.mxu0 0.0
    %3137 = vmatpush1.xpose.msra.mxu0 %v3101
    %3138 = vmatprep.subr.mxu0 0.0
    %3139 = vmatpush2.xpose.msra.mxu0 0.0
    %3140 = vmatprep.subr.mxu0 0.0
    %3141 = vmatpush2.xpose.msra.mxu0 0.0
    %3142 = vmatprep.subr.mxu0 0.0
    %3143 = vmatpush2.xpose.msra.mxu0 0.0
    %3144 = vmatprep.subr.mxu0 0.0
    %3145 = vmatpush2.xpose.msra.mxu0 0.0
    %3146 = vmatprep.subr.mxu0 0.0
    %3147 = vmatpush2.xpose.msra.mxu0 0.0
    %3148 = vmatprep.subr.mxu0 0.0
    %3149 = vmatpush2.xpose.msra.mxu0 0.0
    %3150 = vmatprep.subr.mxu0 0.0
    %3151 = vmatpush2.xpose.msra.mxu0 0.0
    %3152 = vmatprep.subr.mxu0 0.0
    %3153 = vmatpush2.xpose.msra.mxu0 0.0
    %3154 = vmatprep.subr.mxu0 0.0
    %3155 = vmatpush2.xpose.msra.mxu0 0.0
    %3156 = vmatprep.subr.mxu0 0.0
    %3157 = vmatpush2.xpose.msra.mxu0 0.0
    %3158 = vmatprep.subr.mxu0 0.0
    %3159 = vmatpush2.xpose.msra.mxu0 0.0
    %3160 = vmatprep.subr.mxu0 0.0
    %3161 = vmatpush2.xpose.msra.mxu0 0.0
    %3162 = vmatprep.subr.mxu0 0.0
    %3163 = vmatpush2.xpose.msra.mxu0 0.0
    %3164 = vmatprep.subr.mxu0 0.0
    %3165 = vmatpush2.xpose.msra.mxu0 0.0
    %3166 = vmatprep.subr.mxu0 0.0
    %3167 = vmatpush2.xpose.msra.mxu0 0.0
    %3168 = vmatprep.subr.mxu0 0.0
    %3169 = vmatpush2.xpose.msra.mxu0 0.0
    %3170 = vmatprep.mubr.f32.mxu0 0.0
    %3171 = vmatmul.mubr.f32.gmra.mxu0 %v3095
    %v3172 = vpop.f32.mrf.mxu0
    %v3173 = vadd.f32 0.0, %v3172
    %v3174 = vpop.f32.mrf.mxu0
    %3175 = vmatprep.mubr.f32.mxu0 0.0
    %3176 = vmatmul.mubr.f32.gmra.mxu0 %v3098
    %v3177 = vpop.f32.mrf.mxu0
    %v3178 = vadd.f32 0.0, %v3177
    %v3179 = vpop.f32.mrf.mxu0
    %3180 = vdwg.mxu0
    %v3182 = vsel %vm207, %v61, 0
    %v3185 = vsel %vm207, %v62, 0
    %v3188 = vsel %vm207, %v183, 0
    %v3191 = vsel %vm207, %v184, 0
    %3193 = vmatprep.subr.mxu0 0.0
    %3194 = vmatpush1.xpose.msra.mxu0 0.0
    %3195 = vmatprep.subr.mxu0 0.0
    %3196 = vmatpush1.xpose.msra.mxu0 0.0
    %3197 = vmatprep.subr.mxu0 0.0
    %3198 = vmatpush1.xpose.msra.mxu0 0.0
    %3199 = vmatprep.subr.mxu0 0.0
    %3200 = vmatpush1.xpose.msra.mxu0 0.0
    %3201 = vmatprep.subr.mxu0 0.0
    %3202 = vmatpush1.xpose.msra.mxu0 0.0
    %3203 = vmatprep.subr.mxu0 0.0
    %3204 = vmatpush1.xpose.msra.mxu0 0.0
    %3205 = vmatprep.subr.mxu0 0.0
    %3206 = vmatpush1.xpose.msra.mxu0 0.0
    %3207 = vmatprep.subr.mxu0 0.0
    %3208 = vmatpush1.xpose.msra.mxu0 0.0
    %3209 = vmatprep.subr.mxu0 0.0
    %3210 = vmatpush1.xpose.msra.mxu0 0.0
    %3211 = vmatprep.subr.mxu0 0.0
    %3212 = vmatpush1.xpose.msra.mxu0 0.0
    %3213 = vmatprep.subr.mxu0 0.0
    %3214 = vmatpush1.xpose.msra.mxu0 0.0
    %3215 = vmatprep.subr.mxu0 0.0
    %3216 = vmatpush1.xpose.msra.mxu0 0.0
    %3217 = vmatprep.subr.mxu0 0.0
    %3218 = vmatpush1.xpose.msra.mxu0 0.0
    %3219 = vmatprep.subr.mxu0 0.0
    %3220 = vmatpush1.xpose.msra.mxu0 0.0
    %3221 = vmatprep.subr.mxu0 0.0
    %3222 = vmatpush1.xpose.msra.mxu0 %v3191
    %3223 = vmatprep.subr.mxu0 0.0
    %3224 = vmatpush1.xpose.msra.mxu0 %v3188
    %3225 = vmatprep.subr.mxu0 0.0
    %3226 = vmatpush2.xpose.msra.mxu0 0.0
    %3227 = vmatprep.subr.mxu0 0.0
    %3228 = vmatpush2.xpose.msra.mxu0 0.0
    %3229 = vmatprep.subr.mxu0 0.0
    %3230 = vmatpush2.xpose.msra.mxu0 0.0
    %3231 = vmatprep.subr.mxu0 0.0
    %3232 = vmatpush2.xpose.msra.mxu0 0.0
    %3233 = vmatprep.subr.mxu0 0.0
    %3234 = vmatpush2.xpose.msra.mxu0 0.0
    %3235 = vmatprep.subr.mxu0 0.0
    %3236 = vmatpush2.xpose.msra.mxu0 0.0
    %3237 = vmatprep.subr.mxu0 0.0
    %3238 = vmatpush2.xpose.msra.mxu0 0.0
    %3239 = vmatprep.subr.mxu0 0.0
    %3240 = vmatpush2.xpose.msra.mxu0 0.0
    %3241 = vmatprep.subr.mxu0 0.0
    %3242 = vmatpush2.xpose.msra.mxu0 0.0
    %3243 = vmatprep.subr.mxu0 0.0
    %3244 = vmatpush2.xpose.msra.mxu0 0.0
    %3245 = vmatprep.subr.mxu0 0.0
    %3246 = vmatpush2.xpose.msra.mxu0 0.0
    %3247 = vmatprep.subr.mxu0 0.0
    %3248 = vmatpush2.xpose.msra.mxu0 0.0
    %3249 = vmatprep.subr.mxu0 0.0
    %3250 = vmatpush2.xpose.msra.mxu0 0.0
    %3251 = vmatprep.subr.mxu0 0.0
    %3252 = vmatpush2.xpose.msra.mxu0 0.0
    %3253 = vmatprep.subr.mxu0 0.0
    %3254 = vmatpush2.xpose.msra.mxu0 0.0
    %3255 = vmatprep.subr.mxu0 0.0
    %3256 = vmatpush2.xpose.msra.mxu0 0.0
    %3257 = vmatprep.mubr.f32.mxu0 0.0
    %3258 = vmatmul.mubr.f32.gmra.mxu0 %v3182
    %v3259 = vpop.f32.mrf.mxu0
    %v3260 = vadd.f32 0.0, %v3259
    %v3261 = vpop.f32.mrf.mxu0
    %3262 = vmatprep.mubr.f32.mxu0 0.0
    %3263 = vmatmul.mubr.f32.gmra.mxu0 %v3185
    %v3264 = vpop.f32.mrf.mxu0
    %v3265 = vadd.f32 0.0, %v3264
    %v3266 = vpop.f32.mrf.mxu0
    %3267 = vdwg.mxu0
    %v3269 = vsel %vm207, %v63, 0
    %v3272 = vsel %vm207, %v64, 0
    %v3275 = vsel %vm207, %v185, 0
    %v3278 = vsel %vm207, %v186, 0
    %3280 = vmatprep.subr.mxu0 0.0
    %3281 = vmatpush1.xpose.msra.mxu0 0.0
    %3282 = vmatprep.subr.mxu0 0.0
    %3283 = vmatpush1.xpose.msra.mxu0 0.0
    %3284 = vmatprep.subr.mxu0 0.0
    %3285 = vmatpush1.xpose.msra.mxu0 0.0
    %3286 = vmatprep.subr.mxu0 0.0
    %3287 = vmatpush1.xpose.msra.mxu0 0.0
    %3288 = vmatprep.subr.mxu0 0.0
    %3289 = vmatpush1.xpose.msra.mxu0 0.0
    %3290 = vmatprep.subr.mxu0 0.0
    %3291 = vmatpush1.xpose.msra.mxu0 0.0
    %3292 = vmatprep.subr.mxu0 0.0
    %3293 = vmatpush1.xpose.msra.mxu0 0.0
    %3294 = vmatprep.subr.mxu0 0.0
    %3295 = vmatpush1.xpose.msra.mxu0 0.0
    %3296 = vmatprep.subr.mxu0 0.0
    %3297 = vmatpush1.xpose.msra.mxu0 0.0
    %3298 = vmatprep.subr.mxu0 0.0
    %3299 = vmatpush1.xpose.msra.mxu0 0.0
    %3300 = vmatprep.subr.mxu0 0.0
    %3301 = vmatpush1.xpose.msra.mxu0 0.0
    %3302 = vmatprep.subr.mxu0 0.0
    %3303 = vmatpush1.xpose.msra.mxu0 0.0
    %3304 = vmatprep.subr.mxu0 0.0
    %3305 = vmatpush1.xpose.msra.mxu0 0.0
    %3306 = vmatprep.subr.mxu0 0.0
    %3307 = vmatpush1.xpose.msra.mxu0 0.0
    %3308 = vmatprep.subr.mxu0 0.0
    %3309 = vmatpush1.xpose.msra.mxu0 %v3278
    %3310 = vmatprep.subr.mxu0 0.0
    %3311 = vmatpush1.xpose.msra.mxu0 %v3275
    %3312 = vmatprep.subr.mxu0 0.0
    %3313 = vmatpush2.xpose.msra.mxu0 0.0
    %3314 = vmatprep.subr.mxu0 0.0
    %3315 = vmatpush2.xpose.msra.mxu0 0.0
    %3316 = vmatprep.subr.mxu0 0.0
    %3317 = vmatpush2.xpose.msra.mxu0 0.0
    %3318 = vmatprep.subr.mxu0 0.0
    %3319 = vmatpush2.xpose.msra.mxu0 0.0
    %3320 = vmatprep.subr.mxu0 0.0
    %3321 = vmatpush2.xpose.msra.mxu0 0.0
    %3322 = vmatprep.subr.mxu0 0.0
    %3323 = vmatpush2.xpose.msra.mxu0 0.0
    %3324 = vmatprep.subr.mxu0 0.0
    %3325 = vmatpush2.xpose.msra.mxu0 0.0
    %3326 = vmatprep.subr.mxu0 0.0
    %3327 = vmatpush2.xpose.msra.mxu0 0.0
    %3328 = vmatprep.subr.mxu0 0.0
    %3329 = vmatpush2.xpose.msra.mxu0 0.0
    %3330 = vmatprep.subr.mxu0 0.0
    %3331 = vmatpush2.xpose.msra.mxu0 0.0
    %3332 = vmatprep.subr.mxu0 0.0
    %3333 = vmatpush2.xpose.msra.mxu0 0.0
    %3334 = vmatprep.subr.mxu0 0.0
    %3335 = vmatpush2.xpose.msra.mxu0 0.0
    %3336 = vmatprep.subr.mxu0 0.0
    %3337 = vmatpush2.xpose.msra.mxu0 0.0
    %3338 = vmatprep.subr.mxu0 0.0
    %3339 = vmatpush2.xpose.msra.mxu0 0.0
    %3340 = vmatprep.subr.mxu0 0.0
    %3341 = vmatpush2.xpose.msra.mxu0 0.0
    %3342 = vmatprep.subr.mxu0 0.0
    %3343 = vmatpush2.xpose.msra.mxu0 0.0
    %3344 = vmatprep.mubr.f32.mxu0 0.0
    %3345 = vmatmul.mubr.f32.gmra.mxu0 %v3269
    %v3346 = vpop.f32.mrf.mxu0
    %v3347 = vadd.f32 0.0, %v3346
    %v3348 = vpop.f32.mrf.mxu0
    %3349 = vmatprep.mubr.f32.mxu0 0.0
    %3350 = vmatmul.mubr.f32.gmra.mxu0 %v3272
    %v3351 = vpop.f32.mrf.mxu0
    %v3352 = vadd.f32 0.0, %v3351
    %v3353 = vpop.f32.mrf.mxu0
    %3354 = vdwg.mxu0
    %v3356 = vsel %vm207, %v65, 0
    %v3359 = vsel %vm207, %v66, 0
    %v3362 = vsel %vm207, %v187, 0
    %v3365 = vsel %vm207, %v188, 0
    %3367 = vmatprep.subr.mxu0 0.0
    %3368 = vmatpush1.xpose.msra.mxu0 0.0
    %3369 = vmatprep.subr.mxu0 0.0
    %3370 = vmatpush1.xpose.msra.mxu0 0.0
    %3371 = vmatprep.subr.mxu0 0.0
    %3372 = vmatpush1.xpose.msra.mxu0 0.0
    %3373 = vmatprep.subr.mxu0 0.0
    %3374 = vmatpush1.xpose.msra.mxu0 0.0
    %3375 = vmatprep.subr.mxu0 0.0
    %3376 = vmatpush1.xpose.msra.mxu0 0.0
    %3377 = vmatprep.subr.mxu0 0.0
    %3378 = vmatpush1.xpose.msra.mxu0 0.0
    %3379 = vmatprep.subr.mxu0 0.0
    %3380 = vmatpush1.xpose.msra.mxu0 0.0
    %3381 = vmatprep.subr.mxu0 0.0
    %3382 = vmatpush1.xpose.msra.mxu0 0.0
    %3383 = vmatprep.subr.mxu0 0.0
    %3384 = vmatpush1.xpose.msra.mxu0 0.0
    %3385 = vmatprep.subr.mxu0 0.0
    %3386 = vmatpush1.xpose.msra.mxu0 0.0
    %3387 = vmatprep.subr.mxu0 0.0
    %3388 = vmatpush1.xpose.msra.mxu0 0.0
    %3389 = vmatprep.subr.mxu0 0.0
    %3390 = vmatpush1.xpose.msra.mxu0 0.0
    %3391 = vmatprep.subr.mxu0 0.0
    %3392 = vmatpush1.xpose.msra.mxu0 0.0
    %3393 = vmatprep.subr.mxu0 0.0
    %3394 = vmatpush1.xpose.msra.mxu0 0.0
    %3395 = vmatprep.subr.mxu0 0.0
    %3396 = vmatpush1.xpose.msra.mxu0 %v3365
    %3397 = vmatprep.subr.mxu0 0.0
    %3398 = vmatpush1.xpose.msra.mxu0 %v3362
    %3399 = vmatprep.subr.mxu0 0.0
    %3400 = vmatpush2.xpose.msra.mxu0 0.0
    %3401 = vmatprep.subr.mxu0 0.0
    %3402 = vmatpush2.xpose.msra.mxu0 0.0
    %3403 = vmatprep.subr.mxu0 0.0
    %3404 = vmatpush2.xpose.msra.mxu0 0.0
    %3405 = vmatprep.subr.mxu0 0.0
    %3406 = vmatpush2.xpose.msra.mxu0 0.0
    %3407 = vmatprep.subr.mxu0 0.0
    %3408 = vmatpush2.xpose.msra.mxu0 0.0
    %3409 = vmatprep.subr.mxu0 0.0
    %3410 = vmatpush2.xpose.msra.mxu0 0.0
    %3411 = vmatprep.subr.mxu0 0.0
    %3412 = vmatpush2.xpose.msra.mxu0 0.0
    %3413 = vmatprep.subr.mxu0 0.0
    %3414 = vmatpush2.xpose.msra.mxu0 0.0
    %3415 = vmatprep.subr.mxu0 0.0
    %3416 = vmatpush2.xpose.msra.mxu0 0.0
    %3417 = vmatprep.subr.mxu0 0.0
    %3418 = vmatpush2.xpose.msra.mxu0 0.0
    %3419 = vmatprep.subr.mxu0 0.0
    %3420 = vmatpush2.xpose.msra.mxu0 0.0
    %3421 = vmatprep.subr.mxu0 0.0
    %3422 = vmatpush2.xpose.msra.mxu0 0.0
    %3423 = vmatprep.subr.mxu0 0.0
    %3424 = vmatpush2.xpose.msra.mxu0 0.0
    %3425 = vmatprep.subr.mxu0 0.0
    %3426 = vmatpush2.xpose.msra.mxu0 0.0
    %3427 = vmatprep.subr.mxu0 0.0
    %3428 = vmatpush2.xpose.msra.mxu0 0.0
    %3429 = vmatprep.subr.mxu0 0.0
    %3430 = vmatpush2.xpose.msra.mxu0 0.0
    %3431 = vmatprep.mubr.f32.mxu0 0.0
    %3432 = vmatmul.mubr.f32.gmra.mxu0 %v3356
    %v3433 = vpop.f32.mrf.mxu0
    %v3434 = vadd.f32 0.0, %v3433
    %v3435 = vpop.f32.mrf.mxu0
    %3436 = vmatprep.mubr.f32.mxu0 0.0
    %3437 = vmatmul.mubr.f32.gmra.mxu0 %v3359
    %v3438 = vpop.f32.mrf.mxu0
    %v3439 = vadd.f32 0.0, %v3438
    %v3440 = vpop.f32.mrf.mxu0
    %3441 = vdwg.mxu0
    %v3443 = vsel %vm207, %v67, 0
    %v3446 = vsel %vm207, %v68, 0
    %v3449 = vsel %vm207, %v189, 0
    %v3452 = vsel %vm207, %v190, 0
    %3454 = vmatprep.subr.mxu0 0.0
    %3455 = vmatpush1.xpose.msra.mxu0 0.0
    %3456 = vmatprep.subr.mxu0 0.0
    %3457 = vmatpush1.xpose.msra.mxu0 0.0
    %3458 = vmatprep.subr.mxu0 0.0
    %3459 = vmatpush1.xpose.msra.mxu0 0.0
    %3460 = vmatprep.subr.mxu0 0.0
    %3461 = vmatpush1.xpose.msra.mxu0 0.0
    %3462 = vmatprep.subr.mxu0 0.0
    %3463 = vmatpush1.xpose.msra.mxu0 0.0
    %3464 = vmatprep.subr.mxu0 0.0
    %3465 = vmatpush1.xpose.msra.mxu0 0.0
    %3466 = vmatprep.subr.mxu0 0.0
    %3467 = vmatpush1.xpose.msra.mxu0 0.0
    %3468 = vmatprep.subr.mxu0 0.0
    %3469 = vmatpush1.xpose.msra.mxu0 0.0
    %3470 = vmatprep.subr.mxu0 0.0
    %3471 = vmatpush1.xpose.msra.mxu0 0.0
    %3472 = vmatprep.subr.mxu0 0.0
    %3473 = vmatpush1.xpose.msra.mxu0 0.0
    %3474 = vmatprep.subr.mxu0 0.0
    %3475 = vmatpush1.xpose.msra.mxu0 0.0
    %3476 = vmatprep.subr.mxu0 0.0
    %3477 = vmatpush1.xpose.msra.mxu0 0.0
    %3478 = vmatprep.subr.mxu0 0.0
    %3479 = vmatpush1.xpose.msra.mxu0 0.0
    %3480 = vmatprep.subr.mxu0 0.0
    %3481 = vmatpush1.xpose.msra.mxu0 0.0
    %3482 = vmatprep.subr.mxu0 0.0
    %3483 = vmatpush1.xpose.msra.mxu0 %v3452
    %3484 = vmatprep.subr.mxu0 0.0
    %3485 = vmatpush1.xpose.msra.mxu0 %v3449
    %3486 = vmatprep.subr.mxu0 0.0
    %3487 = vmatpush2.xpose.msra.mxu0 0.0
    %3488 = vmatprep.subr.mxu0 0.0
    %3489 = vmatpush2.xpose.msra.mxu0 0.0
    %3490 = vmatprep.subr.mxu0 0.0
    %3491 = vmatpush2.xpose.msra.mxu0 0.0
    %3492 = vmatprep.subr.mxu0 0.0
    %3493 = vmatpush2.xpose.msra.mxu0 0.0
    %3494 = vmatprep.subr.mxu0 0.0
    %3495 = vmatpush2.xpose.msra.mxu0 0.0
    %3496 = vmatprep.subr.mxu0 0.0
    %3497 = vmatpush2.xpose.msra.mxu0 0.0
    %3498 = vmatprep.subr.mxu0 0.0
    %3499 = vmatpush2.xpose.msra.mxu0 0.0
    %3500 = vmatprep.subr.mxu0 0.0
    %3501 = vmatpush2.xpose.msra.mxu0 0.0
    %3502 = vmatprep.subr.mxu0 0.0
    %3503 = vmatpush2.xpose.msra.mxu0 0.0
    %3504 = vmatprep.subr.mxu0 0.0
    %3505 = vmatpush2.xpose.msra.mxu0 0.0
    %3506 = vmatprep.subr.mxu0 0.0
    %3507 = vmatpush2.xpose.msra.mxu0 0.0
    %3508 = vmatprep.subr.mxu0 0.0
    %3509 = vmatpush2.xpose.msra.mxu0 0.0
    %3510 = vmatprep.subr.mxu0 0.0
    %3511 = vmatpush2.xpose.msra.mxu0 0.0
    %3512 = vmatprep.subr.mxu0 0.0
    %3513 = vmatpush2.xpose.msra.mxu0 0.0
    %3514 = vmatprep.subr.mxu0 0.0
    %3515 = vmatpush2.xpose.msra.mxu0 0.0
    %3516 = vmatprep.subr.mxu0 0.0
    %3517 = vmatpush2.xpose.msra.mxu0 0.0
    %3518 = vmatprep.mubr.f32.mxu0 0.0
    %3519 = vmatmul.mubr.f32.gmra.mxu0 %v3443
    %v3520 = vpop.f32.mrf.mxu0
    %v3521 = vadd.f32 0.0, %v3520
    %v3522 = vpop.f32.mrf.mxu0
    %3523 = vmatprep.mubr.f32.mxu0 0.0
    %3524 = vmatmul.mubr.f32.gmra.mxu0 %v3446
    %v3525 = vpop.f32.mrf.mxu0
    %v3526 = vadd.f32 0.0, %v3525
    %v3527 = vpop.f32.mrf.mxu0
    %3528 = vdwg.mxu0
    %v3545 = vlaneseq
    %v3546 = vand.u32 %v3545, 127
    %v3547 = vlaneseq
    %v3548 = vshrl.u32 %v3547, 7
    %v3549 = vsub.s32 %v3546, %v3548
    %v3550 = vrot.slane %v416, %v3549
    %v3551 = vadd.s32 %v3546, 4294967288
    %v3552 = vlaneseq
    %v3553 = vshrl.u32 %v3552, 7
    %v3554 = vsub.s32 %v3551, %v3553
    %v3555 = vrot.slane %v417, %v3554
    %vm3556 = vcmask 130112
    %v3557 = vsel %vm3556, %v3555, %v3550
    %v3558 = vlaneseq
    %v3559 = vshrl.u32 %v3558, 7
    %v3560 = vsub.s32 %v3546, %v3559
    %v3561 = vrot.slane %v418, %v3560
    %v3562 = vlaneseq
    %v3563 = vshrl.u32 %v3562, 7
    %v3564 = vsub.s32 %v3551, %v3563
    %v3565 = vrot.slane %v419, %v3564
    %v3566 = vsel %vm3556, %v3565, %v3561
    %v3567 = vlaneseq
    %v3568 = vshrl.u32 %v3567, 7
    %v3569 = vsub.s32 %v3546, %v3568
    %v3570 = vrot.slane %v420, %v3569
    %v3571 = vlaneseq
    %v3572 = vshrl.u32 %v3571, 7
    %v3573 = vsub.s32 %v3551, %v3572
    %v3574 = vrot.slane %v421, %v3573
    %v3575 = vsel %vm3556, %v3574, %v3570
    %v3576 = vlaneseq
    %v3577 = vshrl.u32 %v3576, 7
    %v3578 = vsub.s32 %v3546, %v3577
    %v3579 = vrot.slane %v422, %v3578
    %v3580 = vlaneseq
    %v3581 = vshrl.u32 %v3580, 7
    %v3582 = vsub.s32 %v3551, %v3581
    %v3583 = vrot.slane %v423, %v3582
    %v3584 = vsel %vm3556, %v3583, %v3579
    %v3585 = vlaneseq
    %v3586 = vshrl.u32 %v3585, 7
    %v3587 = vsub.s32 %v3546, %v3586
    %v3588 = vrot.slane %v424, %v3587
    %v3589 = vlaneseq
    %v3590 = vshrl.u32 %v3589, 7
    %v3591 = vsub.s32 %v3551, %v3590
    %v3592 = vrot.slane %v425, %v3591
    %v3593 = vsel %vm3556, %v3592, %v3588
    %v3594 = vlaneseq
    %v3595 = vshrl.u32 %v3594, 7
    %v3596 = vsub.s32 %v3546, %v3595
    %v3597 = vrot.slane %v426, %v3596
    %v3598 = vlaneseq
    %v3599 = vshrl.u32 %v3598, 7
    %v3600 = vsub.s32 %v3551, %v3599
    %v3601 = vrot.slane %v427, %v3600
    %v3602 = vsel %vm3556, %v3601, %v3597
    %v3603 = vlaneseq
    %v3604 = vshrl.u32 %v3603, 7
    %v3605 = vsub.s32 %v3546, %v3604
    %v3606 = vrot.slane %v428, %v3605
    %v3607 = vlaneseq
    %v3608 = vshrl.u32 %v3607, 7
    %v3609 = vsub.s32 %v3551, %v3608
    %v3610 = vrot.slane %v429, %v3609
    %v3611 = vsel %vm3556, %v3610, %v3606
    %v3612 = vlaneseq
    %v3613 = vshrl.u32 %v3612, 7
    %v3614 = vsub.s32 %v3546, %v3613
    %v3615 = vrot.slane %v430, %v3614
    %v3616 = vlaneseq
    %v3617 = vshrl.u32 %v3616, 7
    %v3618 = vsub.s32 %v3551, %v3617
    %v3619 = vrot.slane %v431, %v3618
    %v3620 = vsel %vm3556, %v3619, %v3615
    %vm3621 = vcmask 1041409
    %vm3622 = vcmask 1042434
    %v3623 = vsel %vm3622, %v3557, %v3557
    %vm3624 = vcmask 1043459
    %v3625 = vsel %vm3624, %v3557, %v3623
    %vm3626 = vcmask 1044484
    %v3627 = vsel %vm3626, %v3557, %v3625
    %vm3628 = vcmask 1045509
    %v3629 = vsel %vm3628, %v3557, %v3627
    %vm3630 = vcmask 1046534
    %v3631 = vsel %vm3630, %v3557, %v3629
    %vm3632 = vcmask 1047559
    %v3633 = vsel %vm3632, %v3557, %v3631
    %v3634 = vsel %vm3622, %v3566, %v3566
    %v3635 = vsel %vm3624, %v3566, %v3634
    %v3636 = vsel %vm3626, %v3566, %v3635
    %v3637 = vsel %vm3628, %v3566, %v3636
    %v3638 = vsel %vm3630, %v3566, %v3637
    %v3639 = vsel %vm3632, %v3566, %v3638
    %v3640 = vsel %vm3622, %v3575, %v3575
    %v3641 = vsel %vm3624, %v3575, %v3640
    %v3642 = vsel %vm3626, %v3575, %v3641
    %v3643 = vsel %vm3628, %v3575, %v3642
    %v3644 = vsel %vm3630, %v3575, %v3643
    %v3645 = vsel %vm3632, %v3575, %v3644
    %v3646 = vsel %vm3622, %v3584, %v3584
    %v3647 = vsel %vm3624, %v3584, %v3646
    %v3648 = vsel %vm3626, %v3584, %v3647
    %v3649 = vsel %vm3628, %v3584, %v3648
    %v3650 = vsel %vm3630, %v3584, %v3649
    %v3651 = vsel %vm3632, %v3584, %v3650
    %v3652 = vsel %vm3622, %v3593, %v3593
    %v3653 = vsel %vm3624, %v3593, %v3652
    %v3654 = vsel %vm3626, %v3593, %v3653
    %v3655 = vsel %vm3628, %v3593, %v3654
    %v3656 = vsel %vm3630, %v3593, %v3655
    %v3657 = vsel %vm3632, %v3593, %v3656
    %v3658 = vsel %vm3622, %v3602, %v3602
    %v3659 = vsel %vm3624, %v3602, %v3658
    %v3660 = vsel %vm3626, %v3602, %v3659
    %v3661 = vsel %vm3628, %v3602, %v3660
    %v3662 = vsel %vm3630, %v3602, %v3661
    %v3663 = vsel %vm3632, %v3602, %v3662
    %v3664 = vsel %vm3622, %v3611, %v3611
    %v3665 = vsel %vm3624, %v3611, %v3664
    %v3666 = vsel %vm3626, %v3611, %v3665
    %v3667 = vsel %vm3628, %v3611, %v3666
    %v3668 = vsel %vm3630, %v3611, %v3667
    %v3669 = vsel %vm3632, %v3611, %v3668
    %v3670 = vsel %vm3622, %v3620, %v3620
    %v3671 = vsel %vm3624, %v3620, %v3670
    %v3672 = vsel %vm3626, %v3620, %v3671
    %v3673 = vsel %vm3628, %v3620, %v3672
    %v3674 = vsel %vm3630, %v3620, %v3673
    %v3675 = vsel %vm3632, %v3620, %v3674
    %v3684 = vmul.f32 %v2912, %v3633
    %v3685 = vmul.f32 %v2917, %v3633
    %v3686 = vmul.f32 %v2999, %v3639
    %v3687 = vmul.f32 %v3004, %v3639
    %v3688 = vmul.f32 %v3086, %v3645
    %v3689 = vmul.f32 %v3091, %v3645
    %v3690 = vmul.f32 %v3173, %v3651
    %v3691 = vmul.f32 %v3178, %v3651
    %v3692 = vmul.f32 %v3260, %v3657
    %v3693 = vmul.f32 %v3265, %v3657
    %v3694 = vmul.f32 %v3347, %v3663
    %v3695 = vmul.f32 %v3352, %v3663
    %v3696 = vmul.f32 %v3434, %v3669
    %v3697 = vmul.f32 %v3439, %v3669
    %v3698 = vmul.f32 %v3521, %v3675
    %v3699 = vmul.f32 %v3526, %v3675
    %v3700 = vld [vmem:[#allocation2] sm:$0xff]
    %v3701 = vld [vmem:[#allocation2 + $0x8] sm:$0xff]
    %v3702 = vld [vmem:[#allocation2 + $0x10] sm:$0xff]
    %v3703 = vld [vmem:[#allocation2 + $0x18] sm:$0xff]
    %v3704 = vld [vmem:[#allocation2 + $0x20] sm:$0xff]
    %v3705 = vld [vmem:[#allocation2 + $0x28] sm:$0xff]
    %v3706 = vld [vmem:[#allocation2 + $0x30] sm:$0xff]
    %v3707 = vld [vmem:[#allocation2 + $0x38] sm:$0xff]
    %v3708 = vld [vmem:[#allocation2 + $0x40] sm:$0xff]
    %v3709 = vld [vmem:[#allocation2 + $0x48] sm:$0xff]
    %v3710 = vld [vmem:[#allocation2 + $0x50] sm:$0xff]
    %v3711 = vld [vmem:[#allocation2 + $0x58] sm:$0xff]
    %v3712 = vld [vmem:[#allocation2 + $0x60] sm:$0xff]
    %v3713 = vld [vmem:[#allocation2 + $0x68] sm:$0xff]
    %v3714 = vld [vmem:[#allocation2 + $0x70] sm:$0xff]
    %v3715 = vld [vmem:[#allocation2 + $0x78] sm:$0xff]
    %vm3716 = vcmask 130048
    %v3718 = vsel %vm3716, %v3684, 0
    %v3721 = vsel %vm3716, %v3685, 0
    %3723 = vmatprep.subr.mxu0 0.0
    %3724 = vmatpush1.msra.mxu0 0.0
    %3725 = vmatprep.subr.mxu0 0.0
    %3726 = vmatpush1.msra.mxu0 0.0
    %3727 = vmatprep.subr.mxu0 0.0
    %3728 = vmatpush1.msra.mxu0 0.0
    %3729 = vmatprep.subr.mxu0 0.0
    %3730 = vmatpush1.msra.mxu0 0.0
    %3731 = vmatprep.subr.mxu0 0.0
    %3732 = vmatpush1.msra.mxu0 0.0
    %3733 = vmatprep.subr.mxu0 0.0
    %3734 = vmatpush1.msra.mxu0 0.0
    %3735 = vmatprep.subr.mxu0 0.0
    %3736 = vmatpush1.msra.mxu0 0.0
    %3737 = vmatprep.subr.mxu0 0.0
    %3738 = vmatpush1.msra.mxu0 0.0
    %3739 = vmatprep.subr.mxu0 0.0
    %3740 = vmatpush1.msra.mxu0 0.0
    %3741 = vmatprep.subr.mxu0 0.0
    %3742 = vmatpush1.msra.mxu0 0.0
    %3743 = vmatprep.subr.mxu0 0.0
    %3744 = vmatpush1.msra.mxu0 0.0
    %3745 = vmatprep.subr.mxu0 0.0
    %3746 = vmatpush1.msra.mxu0 0.0
    %3747 = vmatprep.subr.mxu0 0.0
    %3748 = vmatpush1.msra.mxu0 0.0
    %3749 = vmatprep.subr.mxu0 0.0
    %3750 = vmatpush1.msra.mxu0 0.0
    %3751 = vmatprep.subr.mxu0 0.0
    %3752 = vmatpush1.msra.mxu0 %v3701
    %3753 = vmatprep.subr.mxu0 0.0
    %3754 = vmatpush1.msra.mxu0 %v3700
    %3755 = vmatprep.subr.mxu0 0.0
    %3756 = vmatpush2.msra.mxu0 0.0
    %3757 = vmatprep.subr.mxu0 0.0
    %3758 = vmatpush2.msra.mxu0 0.0
    %3759 = vmatprep.subr.mxu0 0.0
    %3760 = vmatpush2.msra.mxu0 0.0
    %3761 = vmatprep.subr.mxu0 0.0
    %3762 = vmatpush2.msra.mxu0 0.0
    %3763 = vmatprep.subr.mxu0 0.0
    %3764 = vmatpush2.msra.mxu0 0.0
    %3765 = vmatprep.subr.mxu0 0.0
    %3766 = vmatpush2.msra.mxu0 0.0
    %3767 = vmatprep.subr.mxu0 0.0
    %3768 = vmatpush2.msra.mxu0 0.0
    %3769 = vmatprep.subr.mxu0 0.0
    %3770 = vmatpush2.msra.mxu0 0.0
    %3771 = vmatprep.subr.mxu0 0.0
    %3772 = vmatpush2.msra.mxu0 0.0
    %3773 = vmatprep.subr.mxu0 0.0
    %3774 = vmatpush2.msra.mxu0 0.0
    %3775 = vmatprep.subr.mxu0 0.0
    %3776 = vmatpush2.msra.mxu0 0.0
    %3777 = vmatprep.subr.mxu0 0.0
    %3778 = vmatpush2.msra.mxu0 0.0
    %3779 = vmatprep.subr.mxu0 0.0
    %3780 = vmatpush2.msra.mxu0 0.0
    %3781 = vmatprep.subr.mxu0 0.0
    %3782 = vmatpush2.msra.mxu0 0.0
    %3783 = vmatprep.subr.mxu0 0.0
    %3784 = vmatpush2.msra.mxu0 0.0
    %3785 = vmatprep.subr.mxu0 0.0
    %3786 = vmatpush2.msra.mxu0 0.0
    %3787 = vmatprep.mubr.f32.mxu0 0.0
    %3788 = vmatmul.mubr.f32.gmra.mxu0 %v3718
    %v3789 = vpop.f32.mrf.mxu0
    %v3790 = vadd.f32 0.0, %v3789
    %v3791 = vpop.f32.mrf.mxu0
    %3792 = vmatprep.mubr.f32.mxu0 0.0
    %3793 = vmatmul.mubr.f32.gmra.mxu0 %v3721
    %v3794 = vpop.f32.mrf.mxu0
    %v3795 = vadd.f32 0.0, %v3794
    %v3796 = vpop.f32.mrf.mxu0
    %3797 = vdwg.mxu0
    %v3799 = vsel %vm3716, %v3686, 0
    %v3802 = vsel %vm3716, %v3687, 0
    %3804 = vmatprep.subr.mxu0 0.0
    %3805 = vmatpush1.msra.mxu0 0.0
    %3806 = vmatprep.subr.mxu0 0.0
    %3807 = vmatpush1.msra.mxu0 0.0
    %3808 = vmatprep.subr.mxu0 0.0
    %3809 = vmatpush1.msra.mxu0 0.0
    %3810 = vmatprep.subr.mxu0 0.0
    %3811 = vmatpush1.msra.mxu0 0.0
    %3812 = vmatprep.subr.mxu0 0.0
    %3813 = vmatpush1.msra.mxu0 0.0
    %3814 = vmatprep.subr.mxu0 0.0
    %3815 = vmatpush1.msra.mxu0 0.0
    %3816 = vmatprep.subr.mxu0 0.0
    %3817 = vmatpush1.msra.mxu0 0.0
    %3818 = vmatprep.subr.mxu0 0.0
    %3819 = vmatpush1.msra.mxu0 0.0
    %3820 = vmatprep.subr.mxu0 0.0
    %3821 = vmatpush1.msra.mxu0 0.0
    %3822 = vmatprep.subr.mxu0 0.0
    %3823 = vmatpush1.msra.mxu0 0.0
    %3824 = vmatprep.subr.mxu0 0.0
    %3825 = vmatpush1.msra.mxu0 0.0
    %3826 = vmatprep.subr.mxu0 0.0
    %3827 = vmatpush1.msra.mxu0 0.0
    %3828 = vmatprep.subr.mxu0 0.0
    %3829 = vmatpush1.msra.mxu0 0.0
    %3830 = vmatprep.subr.mxu0 0.0
    %3831 = vmatpush1.msra.mxu0 0.0
    %3832 = vmatprep.subr.mxu0 0.0
    %3833 = vmatpush1.msra.mxu0 %v3703
    %3834 = vmatprep.subr.mxu0 0.0
    %3835 = vmatpush1.msra.mxu0 %v3702
    %3836 = vmatprep.subr.mxu0 0.0
    %3837 = vmatpush2.msra.mxu0 0.0
    %3838 = vmatprep.subr.mxu0 0.0
    %3839 = vmatpush2.msra.mxu0 0.0
    %3840 = vmatprep.subr.mxu0 0.0
    %3841 = vmatpush2.msra.mxu0 0.0
    %3842 = vmatprep.subr.mxu0 0.0
    %3843 = vmatpush2.msra.mxu0 0.0
    %3844 = vmatprep.subr.mxu0 0.0
    %3845 = vmatpush2.msra.mxu0 0.0
    %3846 = vmatprep.subr.mxu0 0.0
    %3847 = vmatpush2.msra.mxu0 0.0
    %3848 = vmatprep.subr.mxu0 0.0
    %3849 = vmatpush2.msra.mxu0 0.0
    %3850 = vmatprep.subr.mxu0 0.0
    %3851 = vmatpush2.msra.mxu0 0.0
    %3852 = vmatprep.subr.mxu0 0.0
    %3853 = vmatpush2.msra.mxu0 0.0
    %3854 = vmatprep.subr.mxu0 0.0
    %3855 = vmatpush2.msra.mxu0 0.0
    %3856 = vmatprep.subr.mxu0 0.0
    %3857 = vmatpush2.msra.mxu0 0.0
    %3858 = vmatprep.subr.mxu0 0.0
    %3859 = vmatpush2.msra.mxu0 0.0
    %3860 = vmatprep.subr.mxu0 0.0
    %3861 = vmatpush2.msra.mxu0 0.0
    %3862 = vmatprep.subr.mxu0 0.0
    %3863 = vmatpush2.msra.mxu0 0.0
    %3864 = vmatprep.subr.mxu0 0.0
    %3865 = vmatpush2.msra.mxu0 0.0
    %3866 = vmatprep.subr.mxu0 0.0
    %3867 = vmatpush2.msra.mxu0 0.0
    %3868 = vmatprep.mubr.f32.mxu0 0.0
    %3869 = vmatmul.mubr.f32.gmra.mxu0 %v3799
    %v3870 = vpop.f32.mrf.mxu0
    %v3871 = vadd.f32 0.0, %v3870
    %v3872 = vpop.f32.mrf.mxu0
    %3873 = vmatprep.mubr.f32.mxu0 0.0
    %3874 = vmatmul.mubr.f32.gmra.mxu0 %v3802
    %v3875 = vpop.f32.mrf.mxu0
    %v3876 = vadd.f32 0.0, %v3875
    %v3877 = vpop.f32.mrf.mxu0
    %3878 = vdwg.mxu0
    %v3880 = vsel %vm3716, %v3688, 0
    %v3883 = vsel %vm3716, %v3689, 0
    %3885 = vmatprep.subr.mxu0 0.0
    %3886 = vmatpush1.msra.mxu0 0.0
    %3887 = vmatprep.subr.mxu0 0.0
    %3888 = vmatpush1.msra.mxu0 0.0
    %3889 = vmatprep.subr.mxu0 0.0
    %3890 = vmatpush1.msra.mxu0 0.0
    %3891 = vmatprep.subr.mxu0 0.0
    %3892 = vmatpush1.msra.mxu0 0.0
    %3893 = vmatprep.subr.mxu0 0.0
    %3894 = vmatpush1.msra.mxu0 0.0
    %3895 = vmatprep.subr.mxu0 0.0
    %3896 = vmatpush1.msra.mxu0 0.0
    %3897 = vmatprep.subr.mxu0 0.0
    %3898 = vmatpush1.msra.mxu0 0.0
    %3899 = vmatprep.subr.mxu0 0.0
    %3900 = vmatpush1.msra.mxu0 0.0
    %3901 = vmatprep.subr.mxu0 0.0
    %3902 = vmatpush1.msra.mxu0 0.0
    %3903 = vmatprep.subr.mxu0 0.0
    %3904 = vmatpush1.msra.mxu0 0.0
    %3905 = vmatprep.subr.mxu0 0.0
    %3906 = vmatpush1.msra.mxu0 0.0
    %3907 = vmatprep.subr.mxu0 0.0
    %3908 = vmatpush1.msra.mxu0 0.0
    %3909 = vmatprep.subr.mxu0 0.0
    %3910 = vmatpush1.msra.mxu0 0.0
    %3911 = vmatprep.subr.mxu0 0.0
    %3912 = vmatpush1.msra.mxu0 0.0
    %3913 = vmatprep.subr.mxu0 0.0
    %3914 = vmatpush1.msra.mxu0 %v3705
    %3915 = vmatprep.subr.mxu0 0.0
    %3916 = vmatpush1.msra.mxu0 %v3704
    %3917 = vmatprep.subr.mxu0 0.0
    %3918 = vmatpush2.msra.mxu0 0.0
    %3919 = vmatprep.subr.mxu0 0.0
    %3920 = vmatpush2.msra.mxu0 0.0
    %3921 = vmatprep.subr.mxu0 0.0
    %3922 = vmatpush2.msra.mxu0 0.0
    %3923 = vmatprep.subr.mxu0 0.0
    %3924 = vmatpush2.msra.mxu0 0.0
    %3925 = vmatprep.subr.mxu0 0.0
    %3926 = vmatpush2.msra.mxu0 0.0
    %3927 = vmatprep.subr.mxu0 0.0
    %3928 = vmatpush2.msra.mxu0 0.0
    %3929 = vmatprep.subr.mxu0 0.0
    %3930 = vmatpush2.msra.mxu0 0.0
    %3931 = vmatprep.subr.mxu0 0.0
    %3932 = vmatpush2.msra.mxu0 0.0
    %3933 = vmatprep.subr.mxu0 0.0
    %3934 = vmatpush2.msra.mxu0 0.0
    %3935 = vmatprep.subr.mxu0 0.0
    %3936 = vmatpush2.msra.mxu0 0.0
    %3937 = vmatprep.subr.mxu0 0.0
    %3938 = vmatpush2.msra.mxu0 0.0
    %3939 = vmatprep.subr.mxu0 0.0
    %3940 = vmatpush2.msra.mxu0 0.0
    %3941 = vmatprep.subr.mxu0 0.0
    %3942 = vmatpush2.msra.mxu0 0.0
    %3943 = vmatprep.subr.mxu0 0.0
    %3944 = vmatpush2.msra.mxu0 0.0
    %3945 = vmatprep.subr.mxu0 0.0
    %3946 = vmatpush2.msra.mxu0 0.0
    %3947 = vmatprep.subr.mxu0 0.0
    %3948 = vmatpush2.msra.mxu0 0.0
    %3949 = vmatprep.mubr.f32.mxu0 0.0
    %3950 = vmatmul.mubr.f32.gmra.mxu0 %v3880
    %v3951 = vpop.f32.mrf.mxu0
    %v3952 = vadd.f32 0.0, %v3951
    %v3953 = vpop.f32.mrf.mxu0
    %3954 = vmatprep.mubr.f32.mxu0 0.0
    %3955 = vmatmul.mubr.f32.gmra.mxu0 %v3883
    %v3956 = vpop.f32.mrf.mxu0
    %v3957 = vadd.f32 0.0, %v3956
    %v3958 = vpop.f32.mrf.mxu0
    %3959 = vdwg.mxu0
    %v3961 = vsel %vm3716, %v3690, 0
    %v3964 = vsel %vm3716, %v3691, 0
    %3966 = vmatprep.subr.mxu0 0.0
    %3967 = vmatpush1.msra.mxu0 0.0
    %3968 = vmatprep.subr.mxu0 0.0
    %3969 = vmatpush1.msra.mxu0 0.0
    %3970 = vmatprep.subr.mxu0 0.0
    %3971 = vmatpush1.msra.mxu0 0.0
    %3972 = vmatprep.subr.mxu0 0.0
    %3973 = vmatpush1.msra.mxu0 0.0
    %3974 = vmatprep.subr.mxu0 0.0
    %3975 = vmatpush1.msra.mxu0 0.0
    %3976 = vmatprep.subr.mxu0 0.0
    %3977 = vmatpush1.msra.mxu0 0.0
    %3978 = vmatprep.subr.mxu0 0.0
    %3979 = vmatpush1.msra.mxu0 0.0
    %3980 = vmatprep.subr.mxu0 0.0
    %3981 = vmatpush1.msra.mxu0 0.0
    %3982 = vmatprep.subr.mxu0 0.0
    %3983 = vmatpush1.msra.mxu0 0.0
    %3984 = vmatprep.subr.mxu0 0.0
    %3985 = vmatpush1.msra.mxu0 0.0
    %3986 = vmatprep.subr.mxu0 0.0
    %3987 = vmatpush1.msra.mxu0 0.0
    %3988 = vmatprep.subr.mxu0 0.0
    %3989 = vmatpush1.msra.mxu0 0.0
    %3990 = vmatprep.subr.mxu0 0.0
    %3991 = vmatpush1.msra.mxu0 0.0
    %3992 = vmatprep.subr.mxu0 0.0
    %3993 = vmatpush1.msra.mxu0 0.0
    %3994 = vmatprep.subr.mxu0 0.0
    %3995 = vmatpush1.msra.mxu0 %v3707
    %3996 = vmatprep.subr.mxu0 0.0
    %3997 = vmatpush1.msra.mxu0 %v3706
    %3998 = vmatprep.subr.mxu0 0.0
    %3999 = vmatpush2.msra.mxu0 0.0
    %4000 = vmatprep.subr.mxu0 0.0
    %4001 = vmatpush2.msra.mxu0 0.0
    %4002 = vmatprep.subr.mxu0 0.0
    %4003 = vmatpush2.msra.mxu0 0.0
    %4004 = vmatprep.subr.mxu0 0.0
    %4005 = vmatpush2.msra.mxu0 0.0
    %4006 = vmatprep.subr.mxu0 0.0
    %4007 = vmatpush2.msra.mxu0 0.0
    %4008 = vmatprep.subr.mxu0 0.0
    %4009 = vmatpush2.msra.mxu0 0.0
    %4010 = vmatprep.subr.mxu0 0.0
    %4011 = vmatpush2.msra.mxu0 0.0
    %4012 = vmatprep.subr.mxu0 0.0
    %4013 = vmatpush2.msra.mxu0 0.0
    %4014 = vmatprep.subr.mxu0 0.0
    %4015 = vmatpush2.msra.mxu0 0.0
    %4016 = vmatprep.subr.mxu0 0.0
    %4017 = vmatpush2.msra.mxu0 0.0
    %4018 = vmatprep.subr.mxu0 0.0
    %4019 = vmatpush2.msra.mxu0 0.0
    %4020 = vmatprep.subr.mxu0 0.0
    %4021 = vmatpush2.msra.mxu0 0.0
    %4022 = vmatprep.subr.mxu0 0.0
    %4023 = vmatpush2.msra.mxu0 0.0
    %4024 = vmatprep.subr.mxu0 0.0
    %4025 = vmatpush2.msra.mxu0 0.0
    %4026 = vmatprep.subr.mxu0 0.0
    %4027 = vmatpush2.msra.mxu0 0.0
    %4028 = vmatprep.subr.mxu0 0.0
    %4029 = vmatpush2.msra.mxu0 0.0
    %4030 = vmatprep.mubr.f32.mxu0 0.0
    %4031 = vmatmul.mubr.f32.gmra.mxu0 %v3961
    %v4032 = vpop.f32.mrf.mxu0
    %v4033 = vadd.f32 0.0, %v4032
    %v4034 = vpop.f32.mrf.mxu0
    %4035 = vmatprep.mubr.f32.mxu0 0.0
    %4036 = vmatmul.mubr.f32.gmra.mxu0 %v3964
    %v4037 = vpop.f32.mrf.mxu0
    %v4038 = vadd.f32 0.0, %v4037
    %v4039 = vpop.f32.mrf.mxu0
    %4040 = vdwg.mxu0
    %v4042 = vsel %vm3716, %v3692, 0
    %v4045 = vsel %vm3716, %v3693, 0
    %4047 = vmatprep.subr.mxu0 0.0
    %4048 = vmatpush1.msra.mxu0 0.0
    %4049 = vmatprep.subr.mxu0 0.0
    %4050 = vmatpush1.msra.mxu0 0.0
    %4051 = vmatprep.subr.mxu0 0.0
    %4052 = vmatpush1.msra.mxu0 0.0
    %4053 = vmatprep.subr.mxu0 0.0
    %4054 = vmatpush1.msra.mxu0 0.0
    %4055 = vmatprep.subr.mxu0 0.0
    %4056 = vmatpush1.msra.mxu0 0.0
    %4057 = vmatprep.subr.mxu0 0.0
    %4058 = vmatpush1.msra.mxu0 0.0
    %4059 = vmatprep.subr.mxu0 0.0
    %4060 = vmatpush1.msra.mxu0 0.0
    %4061 = vmatprep.subr.mxu0 0.0
    %4062 = vmatpush1.msra.mxu0 0.0
    %4063 = vmatprep.subr.mxu0 0.0
    %4064 = vmatpush1.msra.mxu0 0.0
    %4065 = vmatprep.subr.mxu0 0.0
    %4066 = vmatpush1.msra.mxu0 0.0
    %4067 = vmatprep.subr.mxu0 0.0
    %4068 = vmatpush1.msra.mxu0 0.0
    %4069 = vmatprep.subr.mxu0 0.0
    %4070 = vmatpush1.msra.mxu0 0.0
    %4071 = vmatprep.subr.mxu0 0.0
    %4072 = vmatpush1.msra.mxu0 0.0
    %4073 = vmatprep.subr.mxu0 0.0
    %4074 = vmatpush1.msra.mxu0 0.0
    %4075 = vmatprep.subr.mxu0 0.0
    %4076 = vmatpush1.msra.mxu0 %v3709
    %4077 = vmatprep.subr.mxu0 0.0
    %4078 = vmatpush1.msra.mxu0 %v3708
    %4079 = vmatprep.subr.mxu0 0.0
    %4080 = vmatpush2.msra.mxu0 0.0
    %4081 = vmatprep.subr.mxu0 0.0
    %4082 = vmatpush2.msra.mxu0 0.0
    %4083 = vmatprep.subr.mxu0 0.0
    %4084 = vmatpush2.msra.mxu0 0.0
    %4085 = vmatprep.subr.mxu0 0.0
    %4086 = vmatpush2.msra.mxu0 0.0
    %4087 = vmatprep.subr.mxu0 0.0
    %4088 = vmatpush2.msra.mxu0 0.0
    %4089 = vmatprep.subr.mxu0 0.0
    %4090 = vmatpush2.msra.mxu0 0.0
    %4091 = vmatprep.subr.mxu0 0.0
    %4092 = vmatpush2.msra.mxu0 0.0
    %4093 = vmatprep.subr.mxu0 0.0
    %4094 = vmatpush2.msra.mxu0 0.0
    %4095 = vmatprep.subr.mxu0 0.0
    %4096 = vmatpush2.msra.mxu0 0.0
    %4097 = vmatprep.subr.mxu0 0.0
    %4098 = vmatpush2.msra.mxu0 0.0
    %4099 = vmatprep.subr.mxu0 0.0
    %4100 = vmatpush2.msra.mxu0 0.0
    %4101 = vmatprep.subr.mxu0 0.0
    %4102 = vmatpush2.msra.mxu0 0.0
    %4103 = vmatprep.subr.mxu0 0.0
    %4104 = vmatpush2.msra.mxu0 0.0
    %4105 = vmatprep.subr.mxu0 0.0
    %4106 = vmatpush2.msra.mxu0 0.0
    %4107 = vmatprep.subr.mxu0 0.0
    %4108 = vmatpush2.msra.mxu0 0.0
    %4109 = vmatprep.subr.mxu0 0.0
    %4110 = vmatpush2.msra.mxu0 0.0
    %4111 = vmatprep.mubr.f32.mxu0 0.0
    %4112 = vmatmul.mubr.f32.gmra.mxu0 %v4042
    %v4113 = vpop.f32.mrf.mxu0
    %v4114 = vadd.f32 0.0, %v4113
    %v4115 = vpop.f32.mrf.mxu0
    %4116 = vmatprep.mubr.f32.mxu0 0.0
    %4117 = vmatmul.mubr.f32.gmra.mxu0 %v4045
    %v4118 = vpop.f32.mrf.mxu0
    %v4119 = vadd.f32 0.0, %v4118
    %v4120 = vpop.f32.mrf.mxu0
    %4121 = vdwg.mxu0
    %v4123 = vsel %vm3716, %v3694, 0
    %v4126 = vsel %vm3716, %v3695, 0
    %4128 = vmatprep.subr.mxu0 0.0
    %4129 = vmatpush1.msra.mxu0 0.0
    %4130 = vmatprep.subr.mxu0 0.0
    %4131 = vmatpush1.msra.mxu0 0.0
    %4132 = vmatprep.subr.mxu0 0.0
    %4133 = vmatpush1.msra.mxu0 0.0
    %4134 = vmatprep.subr.mxu0 0.0
    %4135 = vmatpush1.msra.mxu0 0.0
    %4136 = vmatprep.subr.mxu0 0.0
    %4137 = vmatpush1.msra.mxu0 0.0
    %4138 = vmatprep.subr.mxu0 0.0
    %4139 = vmatpush1.msra.mxu0 0.0
    %4140 = vmatprep.subr.mxu0 0.0
    %4141 = vmatpush1.msra.mxu0 0.0
    %4142 = vmatprep.subr.mxu0 0.0
    %4143 = vmatpush1.msra.mxu0 0.0
    %4144 = vmatprep.subr.mxu0 0.0
    %4145 = vmatpush1.msra.mxu0 0.0
    %4146 = vmatprep.subr.mxu0 0.0
    %4147 = vmatpush1.msra.mxu0 0.0
    %4148 = vmatprep.subr.mxu0 0.0
    %4149 = vmatpush1.msra.mxu0 0.0
    %4150 = vmatprep.subr.mxu0 0.0
    %4151 = vmatpush1.msra.mxu0 0.0
    %4152 = vmatprep.subr.mxu0 0.0
    %4153 = vmatpush1.msra.mxu0 0.0
    %4154 = vmatprep.subr.mxu0 0.0
    %4155 = vmatpush1.msra.mxu0 0.0
    %4156 = vmatprep.subr.mxu0 0.0
    %4157 = vmatpush1.msra.mxu0 %v3711
    %4158 = vmatprep.subr.mxu0 0.0
    %4159 = vmatpush1.msra.mxu0 %v3710
    %4160 = vmatprep.subr.mxu0 0.0
    %4161 = vmatpush2.msra.mxu0 0.0
    %4162 = vmatprep.subr.mxu0 0.0
    %4163 = vmatpush2.msra.mxu0 0.0
    %4164 = vmatprep.subr.mxu0 0.0
    %4165 = vmatpush2.msra.mxu0 0.0
    %4166 = vmatprep.subr.mxu0 0.0
    %4167 = vmatpush2.msra.mxu0 0.0
    %4168 = vmatprep.subr.mxu0 0.0
    %4169 = vmatpush2.msra.mxu0 0.0
    %4170 = vmatprep.subr.mxu0 0.0
    %4171 = vmatpush2.msra.mxu0 0.0
    %4172 = vmatprep.subr.mxu0 0.0
    %4173 = vmatpush2.msra.mxu0 0.0
    %4174 = vmatprep.subr.mxu0 0.0
    %4175 = vmatpush2.msra.mxu0 0.0
    %4176 = vmatprep.subr.mxu0 0.0
    %4177 = vmatpush2.msra.mxu0 0.0
    %4178 = vmatprep.subr.mxu0 0.0
    %4179 = vmatpush2.msra.mxu0 0.0
    %4180 = vmatprep.subr.mxu0 0.0
    %4181 = vmatpush2.msra.mxu0 0.0
    %4182 = vmatprep.subr.mxu0 0.0
    %4183 = vmatpush2.msra.mxu0 0.0
    %4184 = vmatprep.subr.mxu0 0.0
    %4185 = vmatpush2.msra.mxu0 0.0
    %4186 = vmatprep.subr.mxu0 0.0
    %4187 = vmatpush2.msra.mxu0 0.0
    %4188 = vmatprep.subr.mxu0 0.0
    %4189 = vmatpush2.msra.mxu0 0.0
    %4190 = vmatprep.subr.mxu0 0.0
    %4191 = vmatpush2.msra.mxu0 0.0
    %4192 = vmatprep.mubr.f32.mxu0 0.0
    %4193 = vmatmul.mubr.f32.gmra.mxu0 %v4123
    %v4194 = vpop.f32.mrf.mxu0
    %v4195 = vadd.f32 0.0, %v4194
    %v4196 = vpop.f32.mrf.mxu0
    %4197 = vmatprep.mubr.f32.mxu0 0.0
    %4198 = vmatmul.mubr.f32.gmra.mxu0 %v4126
    %v4199 = vpop.f32.mrf.mxu0
    %v4200 = vadd.f32 0.0, %v4199
    %v4201 = vpop.f32.mrf.mxu0
    %4202 = vdwg.mxu0
    %v4204 = vsel %vm3716, %v3696, 0
    %v4207 = vsel %vm3716, %v3697, 0
    %4209 = vmatprep.subr.mxu0 0.0
    %4210 = vmatpush1.msra.mxu0 0.0
    %4211 = vmatprep.subr.mxu0 0.0
    %4212 = vmatpush1.msra.mxu0 0.0
    %4213 = vmatprep.subr.mxu0 0.0
    %4214 = vmatpush1.msra.mxu0 0.0
    %4215 = vmatprep.subr.mxu0 0.0
    %4216 = vmatpush1.msra.mxu0 0.0
    %4217 = vmatprep.subr.mxu0 0.0
    %4218 = vmatpush1.msra.mxu0 0.0
    %4219 = vmatprep.subr.mxu0 0.0
    %4220 = vmatpush1.msra.mxu0 0.0
    %4221 = vmatprep.subr.mxu0 0.0
    %4222 = vmatpush1.msra.mxu0 0.0
    %4223 = vmatprep.subr.mxu0 0.0
    %4224 = vmatpush1.msra.mxu0 0.0
    %4225 = vmatprep.subr.mxu0 0.0
    %4226 = vmatpush1.msra.mxu0 0.0
    %4227 = vmatprep.subr.mxu0 0.0
    %4228 = vmatpush1.msra.mxu0 0.0
    %4229 = vmatprep.subr.mxu0 0.0
    %4230 = vmatpush1.msra.mxu0 0.0
    %4231 = vmatprep.subr.mxu0 0.0
    %4232 = vmatpush1.msra.mxu0 0.0
    %4233 = vmatprep.subr.mxu0 0.0
    %4234 = vmatpush1.msra.mxu0 0.0
    %4235 = vmatprep.subr.mxu0 0.0
    %4236 = vmatpush1.msra.mxu0 0.0
    %4237 = vmatprep.subr.mxu0 0.0
    %4238 = vmatpush1.msra.mxu0 %v3713
    %4239 = vmatprep.subr.mxu0 0.0
    %4240 = vmatpush1.msra.mxu0 %v3712
    %4241 = vmatprep.subr.mxu0 0.0
    %4242 = vmatpush2.msra.mxu0 0.0
    %4243 = vmatprep.subr.mxu0 0.0
    %4244 = vmatpush2.msra.mxu0 0.0
    %4245 = vmatprep.subr.mxu0 0.0
    %4246 = vmatpush2.msra.mxu0 0.0
    %4247 = vmatprep.subr.mxu0 0.0
    %4248 = vmatpush2.msra.mxu0 0.0
    %4249 = vmatprep.subr.mxu0 0.0
    %4250 = vmatpush2.msra.mxu0 0.0
    %4251 = vmatprep.subr.mxu0 0.0
    %4252 = vmatpush2.msra.mxu0 0.0
    %4253 = vmatprep.subr.mxu0 0.0
    %4254 = vmatpush2.msra.mxu0 0.0
    %4255 = vmatprep.subr.mxu0 0.0
    %4256 = vmatpush2.msra.mxu0 0.0
    %4257 = vmatprep.subr.mxu0 0.0
    %4258 = vmatpush2.msra.mxu0 0.0
    %4259 = vmatprep.subr.mxu0 0.0
    %4260 = vmatpush2.msra.mxu0 0.0
    %4261 = vmatprep.subr.mxu0 0.0
    %4262 = vmatpush2.msra.mxu0 0.0
    %4263 = vmatprep.subr.mxu0 0.0
    %4264 = vmatpush2.msra.mxu0 0.0
    %4265 = vmatprep.subr.mxu0 0.0
    %4266 = vmatpush2.msra.mxu0 0.0
    %4267 = vmatprep.subr.mxu0 0.0
    %4268 = vmatpush2.msra.mxu0 0.0
    %4269 = vmatprep.subr.mxu0 0.0
    %4270 = vmatpush2.msra.mxu0 0.0
    %4271 = vmatprep.subr.mxu0 0.0
    %4272 = vmatpush2.msra.mxu0 0.0
    %4273 = vmatprep.mubr.f32.mxu0 0.0
    %4274 = vmatmul.mubr.f32.gmra.mxu0 %v4204
    %v4275 = vpop.f32.mrf.mxu0
    %v4276 = vadd.f32 0.0, %v4275
    %v4277 = vpop.f32.mrf.mxu0
    %4278 = vmatprep.mubr.f32.mxu0 0.0
    %4279 = vmatmul.mubr.f32.gmra.mxu0 %v4207
    %v4280 = vpop.f32.mrf.mxu0
    %v4281 = vadd.f32 0.0, %v4280
    %v4282 = vpop.f32.mrf.mxu0
    %4283 = vdwg.mxu0
    %v4285 = vsel %vm3716, %v3698, 0
    %v4288 = vsel %vm3716, %v3699, 0
    %4290 = vmatprep.subr.mxu0 0.0
    %4291 = vmatpush1.msra.mxu0 0.0
    %4292 = vmatprep.subr.mxu0 0.0
    %4293 = vmatpush1.msra.mxu0 0.0
    %4294 = vmatprep.subr.mxu0 0.0
    %4295 = vmatpush1.msra.mxu0 0.0
    %4296 = vmatprep.subr.mxu0 0.0
    %4297 = vmatpush1.msra.mxu0 0.0
    %4298 = vmatprep.subr.mxu0 0.0
    %4299 = vmatpush1.msra.mxu0 0.0
    %4300 = vmatprep.subr.mxu0 0.0
    %4301 = vmatpush1.msra.mxu0 0.0
    %4302 = vmatprep.subr.mxu0 0.0
    %4303 = vmatpush1.msra.mxu0 0.0
    %4304 = vmatprep.subr.mxu0 0.0
    %4305 = vmatpush1.msra.mxu0 0.0
    %4306 = vmatprep.subr.mxu0 0.0
    %4307 = vmatpush1.msra.mxu0 0.0
    %4308 = vmatprep.subr.mxu0 0.0
    %4309 = vmatpush1.msra.mxu0 0.0
    %4310 = vmatprep.subr.mxu0 0.0
    %4311 = vmatpush1.msra.mxu0 0.0
    %4312 = vmatprep.subr.mxu0 0.0
    %4313 = vmatpush1.msra.mxu0 0.0
    %4314 = vmatprep.subr.mxu0 0.0
    %4315 = vmatpush1.msra.mxu0 0.0
    %4316 = vmatprep.subr.mxu0 0.0
    %4317 = vmatpush1.msra.mxu0 0.0
    %4318 = vmatprep.subr.mxu0 0.0
    %4319 = vmatpush1.msra.mxu0 %v3715
    %4320 = vmatprep.subr.mxu0 0.0
    %4321 = vmatpush1.msra.mxu0 %v3714
    %4322 = vmatprep.subr.mxu0 0.0
    %4323 = vmatpush2.msra.mxu0 0.0
    %4324 = vmatprep.subr.mxu0 0.0
    %4325 = vmatpush2.msra.mxu0 0.0
    %4326 = vmatprep.subr.mxu0 0.0
    %4327 = vmatpush2.msra.mxu0 0.0
    %4328 = vmatprep.subr.mxu0 0.0
    %4329 = vmatpush2.msra.mxu0 0.0
    %4330 = vmatprep.subr.mxu0 0.0
    %4331 = vmatpush2.msra.mxu0 0.0
    %4332 = vmatprep.subr.mxu0 0.0
    %4333 = vmatpush2.msra.mxu0 0.0
    %4334 = vmatprep.subr.mxu0 0.0
    %4335 = vmatpush2.msra.mxu0 0.0
    %4336 = vmatprep.subr.mxu0 0.0
    %4337 = vmatpush2.msra.mxu0 0.0
    %4338 = vmatprep.subr.mxu0 0.0
    %4339 = vmatpush2.msra.mxu0 0.0
    %4340 = vmatprep.subr.mxu0 0.0
    %4341 = vmatpush2.msra.mxu0 0.0
    %4342 = vmatprep.subr.mxu0 0.0
    %4343 = vmatpush2.msra.mxu0 0.0
    %4344 = vmatprep.subr.mxu0 0.0
    %4345 = vmatpush2.msra.mxu0 0.0
    %4346 = vmatprep.subr.mxu0 0.0
    %4347 = vmatpush2.msra.mxu0 0.0
    %4348 = vmatprep.subr.mxu0 0.0
    %4349 = vmatpush2.msra.mxu0 0.0
    %4350 = vmatprep.subr.mxu0 0.0
    %4351 = vmatpush2.msra.mxu0 0.0
    %4352 = vmatprep.subr.mxu0 0.0
    %4353 = vmatpush2.msra.mxu0 0.0
    %4354 = vmatprep.mubr.f32.mxu0 0.0
    %4355 = vmatmul.mubr.f32.gmra.mxu0 %v4285
    %v4356 = vpop.f32.mrf.mxu0
    %v4357 = vadd.f32 0.0, %v4356
    %v4358 = vpop.f32.mrf.mxu0
    %4359 = vmatprep.mubr.f32.mxu0 0.0
    %4360 = vmatmul.mubr.f32.gmra.mxu0 %v4288
    %v4361 = vpop.f32.mrf.mxu0
    %v4362 = vadd.f32 0.0, %v4361
    %v4363 = vpop.f32.mrf.mxu0
    %4364 = vdwg.mxu0
    %4365 = vst [vmem:[#allocation3] sm:$0xff] %v3790
    %4366 = vst [vmem:[#allocation3 + $0x8] sm:$0xff] %v3795
    %4367 = vst [vmem:[#allocation3 + $0x10] sm:$0xff] %v3871
    %4368 = vst [vmem:[#allocation3 + $0x18] sm:$0xff] %v3876
    %4369 = vst [vmem:[#allocation3 + $0x20] sm:$0xff] %v3952
    %4370 = vst [vmem:[#allocation3 + $0x28] sm:$0xff] %v3957
    %4371 = vst [vmem:[#allocation3 + $0x30] sm:$0xff] %v4033
    %4372 = vst [vmem:[#allocation3 + $0x38] sm:$0xff] %v4038
    %4373 = vst [vmem:[#allocation3 + $0x40] sm:$0xff] %v4114
    %4374 = vst [vmem:[#allocation3 + $0x48] sm:$0xff] %v4119
    %4375 = vst [vmem:[#allocation3 + $0x50] sm:$0xff] %v4195
    %4376 = vst [vmem:[#allocation3 + $0x58] sm:$0xff] %v4200
    %4377 = vst [vmem:[#allocation3 + $0x60] sm:$0xff] %v4276
    %4378 = vst [vmem:[#allocation3 + $0x68] sm:$0xff] %v4281
    %4379 = vst [vmem:[#allocation3 + $0x70] sm:$0xff] %v4357
    %4380 = vst [vmem:[#allocation3 + $0x78] sm:$0xff] %v4362
    %v4381 = vcombine.low %v20, %v24
    %v4382 = vcombine.high %v20, %v24
    %v4384 = vunpack.c.l.s4 1983009808
    %v4385 = vunpack.c.0.s8 %v4384
    %v4386 = vlaneseq
    %v4387 = vshrl.u32 %v4386, 7
    %v4388 = vsub.s32 %v4385, %v4387
    %v4389 = vrot.slane %v4381, %v4388
    %v4391 = vunpack.c.l.s4 1983009808
    %v4392 = vunpack.c.0.s8 %v4391
    %v4393 = vlaneseq
    %v4394 = vshrl.u32 %v4393, 7
    %v4395 = vsub.s32 %v4392, %v4394
    %v4396 = vrot.slane %v4382, %v4395
    %v4397 = vcombine.low %v22, %v26
    %v4398 = vcombine.high %v22, %v26
    %v4400 = vunpack.c.l.s4 1983009808
    %v4401 = vunpack.c.0.s8 %v4400
    %v4402 = vlaneseq
    %v4403 = vshrl.u32 %v4402, 7
    %v4404 = vsub.s32 %v4401, %v4403
    %v4405 = vrot.slane %v4397, %v4404
    %v4407 = vunpack.c.l.s4 1983009808
    %v4408 = vunpack.c.0.s8 %v4407
    %v4409 = vlaneseq
    %v4410 = vshrl.u32 %v4409, 7
    %v4411 = vsub.s32 %v4408, %v4410
    %v4412 = vrot.slane %v4398, %v4411
    %v4413 = vcombine.low %v28, %v32
    %v4414 = vcombine.high %v28, %v32
    %v4416 = vunpack.c.l.s4 1983009808
    %v4417 = vunpack.c.0.s8 %v4416
    %v4418 = vlaneseq
    %v4419 = vshrl.u32 %v4418, 7
    %v4420 = vsub.s32 %v4417, %v4419
    %v4421 = vrot.slane %v4413, %v4420
    %v4423 = vunpack.c.l.s4 1983009808
    %v4424 = vunpack.c.0.s8 %v4423
    %v4425 = vlaneseq
    %v4426 = vshrl.u32 %v4425, 7
    %v4427 = vsub.s32 %v4424, %v4426
    %v4428 = vrot.slane %v4414, %v4427
    %v4429 = vcombine.low %v30, %v34
    %v4430 = vcombine.high %v30, %v34
    %v4432 = vunpack.c.l.s4 1983009808
    %v4433 = vunpack.c.0.s8 %v4432
    %v4434 = vlaneseq
    %v4435 = vshrl.u32 %v4434, 7
    %v4436 = vsub.s32 %v4433, %v4435
    %v4437 = vrot.slane %v4429, %v4436
    %v4439 = vunpack.c.l.s4 1983009808
    %v4440 = vunpack.c.0.s8 %v4439
    %v4441 = vlaneseq
    %v4442 = vshrl.u32 %v4441, 7
    %v4443 = vsub.s32 %v4440, %v4442
    %v4444 = vrot.slane %v4430, %v4443
    %v4445 = vcombine.low %v4389, %v4405
    %v4446 = vcombine.high %v4389, %v4405
    %v4448 = vunpack.c.l.s4 1934713408
    %v4449 = vunpack.c.0.s8 %v4448
    %v4450 = vlaneseq
    %v4451 = vshrl.u32 %v4450, 7
    %v4452 = vsub.s32 %v4449, %v4451
    %v4453 = vrot.slane %v4445, %v4452
    %v4455 = vunpack.c.l.s4 1934713408
    %v4456 = vunpack.c.0.s8 %v4455
    %v4457 = vlaneseq
    %v4458 = vshrl.u32 %v4457, 7
    %v4459 = vsub.s32 %v4456, %v4458
    %v4460 = vrot.slane %v4446, %v4459
    %v4461 = vcombine.low %v4396, %v4412
    %v4462 = vcombine.high %v4396, %v4412
    %v4464 = vunpack.c.l.s4 1934713408
    %v4465 = vunpack.c.0.s8 %v4464
    %v4466 = vlaneseq
    %v4467 = vshrl.u32 %v4466, 7
    %v4468 = vsub.s32 %v4465, %v4467
    %v4469 = vrot.slane %v4461, %v4468
    %v4471 = vunpack.c.l.s4 1934713408
    %v4472 = vunpack.c.0.s8 %v4471
    %v4473 = vlaneseq
    %v4474 = vshrl.u32 %v4473, 7
    %v4475 = vsub.s32 %v4472, %v4474
    %v4476 = vrot.slane %v4462, %v4475
    %v4477 = vcombine.low %v4421, %v4437
    %v4478 = vcombine.high %v4421, %v4437
    %v4480 = vunpack.c.l.s4 1934713408
    %v4481 = vunpack.c.0.s8 %v4480
    %v4482 = vlaneseq
    %v4483 = vshrl.u32 %v4482, 7
    %v4484 = vsub.s32 %v4481, %v4483
    %v4485 = vrot.slane %v4477, %v4484
    %v4487 = vunpack.c.l.s4 1934713408
    %v4488 = vunpack.c.0.s8 %v4487
    %v4489 = vlaneseq
    %v4490 = vshrl.u32 %v4489, 7
    %v4491 = vsub.s32 %v4488, %v4490
    %v4492 = vrot.slane %v4478, %v4491
    %v4493 = vcombine.low %v4428, %v4444
    %v4494 = vcombine.high %v4428, %v4444
    %v4496 = vunpack.c.l.s4 1934713408
    %v4497 = vunpack.c.0.s8 %v4496
    %v4498 = vlaneseq
    %v4499 = vshrl.u32 %v4498, 7
    %v4500 = vsub.s32 %v4497, %v4499
    %v4501 = vrot.slane %v4493, %v4500
    %v4503 = vunpack.c.l.s4 1934713408
    %v4504 = vunpack.c.0.s8 %v4503
    %v4505 = vlaneseq
    %v4506 = vshrl.u32 %v4505, 7
    %v4507 = vsub.s32 %v4504, %v4506
    %v4508 = vrot.slane %v4494, %v4507
    %v4509 = vcombine.low %v4453, %v4485
    %v4510 = vcombine.high %v4453, %v4485
    %v4511 = vcombine.low %v4460, %v4492
    %v4512 = vcombine.high %v4460, %v4492
    %v4513 = vcombine.low %v4469, %v4501
    %v4514 = vcombine.high %v4469, %v4501
    %v4515 = vcombine.low %v4476, %v4508
    %v4516 = vcombine.high %v4476, %v4508
    %v4517 = vcombine.low %v36, %v40
    %v4518 = vcombine.high %v36, %v40
    %v4520 = vunpack.c.l.s4 1983009808
    %v4521 = vunpack.c.0.s8 %v4520
    %v4522 = vlaneseq
    %v4523 = vshrl.u32 %v4522, 7
    %v4524 = vsub.s32 %v4521, %v4523
    %v4525 = vrot.slane %v4517, %v4524
    %v4527 = vunpack.c.l.s4 1983009808
    %v4528 = vunpack.c.0.s8 %v4527
    %v4529 = vlaneseq
    %v4530 = vshrl.u32 %v4529, 7
    %v4531 = vsub.s32 %v4528, %v4530
    %v4532 = vrot.slane %v4518, %v4531
    %v4533 = vcombine.low %v38, %v42
    %v4534 = vcombine.high %v38, %v42
    %v4536 = vunpack.c.l.s4 1983009808
    %v4537 = vunpack.c.0.s8 %v4536
    %v4538 = vlaneseq
    %v4539 = vshrl.u32 %v4538, 7
    %v4540 = vsub.s32 %v4537, %v4539
    %v4541 = vrot.slane %v4533, %v4540
    %v4543 = vunpack.c.l.s4 1983009808
    %v4544 = vunpack.c.0.s8 %v4543
    %v4545 = vlaneseq
    %v4546 = vshrl.u32 %v4545, 7
    %v4547 = vsub.s32 %v4544, %v4546
    %v4548 = vrot.slane %v4534, %v4547
    %v4549 = vcombine.low %v44, %v48
    %v4550 = vcombine.high %v44, %v48
    %v4552 = vunpack.c.l.s4 1983009808
    %v4553 = vunpack.c.0.s8 %v4552
    %v4554 = vlaneseq
    %v4555 = vshrl.u32 %v4554, 7
    %v4556 = vsub.s32 %v4553, %v4555
    %v4557 = vrot.slane %v4549, %v4556
    %v4559 = vunpack.c.l.s4 1983009808
    %v4560 = vunpack.c.0.s8 %v4559
    %v4561 = vlaneseq
    %v4562 = vshrl.u32 %v4561, 7
    %v4563 = vsub.s32 %v4560, %v4562
    %v4564 = vrot.slane %v4550, %v4563
    %v4565 = vcombine.low %v46, %v50
    %v4566 = vcombine.high %v46, %v50
    %v4568 = vunpack.c.l.s4 1983009808
    %v4569 = vunpack.c.0.s8 %v4568
    %v4570 = vlaneseq
    %v4571 = vshrl.u32 %v4570, 7
    %v4572 = vsub.s32 %v4569, %v4571
    %v4573 = vrot.slane %v4565, %v4572
    %v4575 = vunpack.c.l.s4 1983009808
    %v4576 = vunpack.c.0.s8 %v4575
    %v4577 = vlaneseq
    %v4578 = vshrl.u32 %v4577, 7
    %v4579 = vsub.s32 %v4576, %v4578
    %v4580 = vrot.slane %v4566, %v4579
    %v4581 = vcombine.low %v4525, %v4541
    %v4582 = vcombine.high %v4525, %v4541
    %v4584 = vunpack.c.l.s4 1934713408
    %v4585 = vunpack.c.0.s8 %v4584
    %v4586 = vlaneseq
    %v4587 = vshrl.u32 %v4586, 7
    %v4588 = vsub.s32 %v4585, %v4587
    %v4589 = vrot.slane %v4581, %v4588
    %v4591 = vunpack.c.l.s4 1934713408
    %v4592 = vunpack.c.0.s8 %v4591
    %v4593 = vlaneseq
    %v4594 = vshrl.u32 %v4593, 7
    %v4595 = vsub.s32 %v4592, %v4594
    %v4596 = vrot.slane %v4582, %v4595
    %v4597 = vcombine.low %v4532, %v4548
    %v4598 = vcombine.high %v4532, %v4548
    %v4600 = vunpack.c.l.s4 1934713408
    %v4601 = vunpack.c.0.s8 %v4600
    %v4602 = vlaneseq
    %v4603 = vshrl.u32 %v4602, 7
    %v4604 = vsub.s32 %v4601, %v4603
    %v4605 = vrot.slane %v4597, %v4604
    %v4607 = vunpack.c.l.s4 1934713408
    %v4608 = vunpack.c.0.s8 %v4607
    %v4609 = vlaneseq
    %v4610 = vshrl.u32 %v4609, 7
    %v4611 = vsub.s32 %v4608, %v4610
    %v4612 = vrot.slane %v4598, %v4611
    %v4613 = vcombine.low %v4557, %v4573
    %v4614 = vcombine.high %v4557, %v4573
    %v4616 = vunpack.c.l.s4 1934713408
    %v4617 = vunpack.c.0.s8 %v4616
    %v4618 = vlaneseq
    %v4619 = vshrl.u32 %v4618, 7
    %v4620 = vsub.s32 %v4617, %v4619
    %v4621 = vrot.slane %v4613, %v4620
    %v4623 = vunpack.c.l.s4 1934713408
    %v4624 = vunpack.c.0.s8 %v4623
    %v4625 = vlaneseq
    %v4626 = vshrl.u32 %v4625, 7
    %v4627 = vsub.s32 %v4624, %v4626
    %v4628 = vrot.slane %v4614, %v4627
    %v4629 = vcombine.low %v4564, %v4580
    %v4630 = vcombine.high %v4564, %v4580
    %v4632 = vunpack.c.l.s4 1934713408
    %v4633 = vunpack.c.0.s8 %v4632
    %v4634 = vlaneseq
    %v4635 = vshrl.u32 %v4634, 7
    %v4636 = vsub.s32 %v4633, %v4635
    %v4637 = vrot.slane %v4629, %v4636
    %v4639 = vunpack.c.l.s4 1934713408
    %v4640 = vunpack.c.0.s8 %v4639
    %v4641 = vlaneseq
    %v4642 = vshrl.u32 %v4641, 7
    %v4643 = vsub.s32 %v4640, %v4642
    %v4644 = vrot.slane %v4630, %v4643
    %v4645 = vcombine.low %v4589, %v4621
    %v4646 = vcombine.high %v4589, %v4621
    %v4647 = vcombine.low %v4596, %v4628
    %v4648 = vcombine.high %v4596, %v4628
    %v4649 = vcombine.low %v4605, %v4637
    %v4650 = vcombine.high %v4605, %v4637
    %v4651 = vcombine.low %v4612, %v4644
    %v4652 = vcombine.high %v4612, %v4644
    %v4653 = vcombine.low %v21, %v25
    %v4655 = vunpack.c.l.s4 1983009808
    %v4656 = vunpack.c.0.s8 %v4655
    %v4657 = vlaneseq
    %v4658 = vshrl.u32 %v4657, 7
    %v4659 = vsub.s32 %v4656, %v4658
    %v4660 = vrot.slane %v4653, %v4659
    %v4661 = vcombine.low %v23, %v27
    %v4663 = vunpack.c.l.s4 1983009808
    %v4664 = vunpack.c.0.s8 %v4663
    %v4665 = vlaneseq
    %v4666 = vshrl.u32 %v4665, 7
    %v4667 = vsub.s32 %v4664, %v4666
    %v4668 = vrot.slane %v4661, %v4667
    %v4669 = vcombine.low %v29, %v33
    %v4671 = vunpack.c.l.s4 1983009808
    %v4672 = vunpack.c.0.s8 %v4671
    %v4673 = vlaneseq
    %v4674 = vshrl.u32 %v4673, 7
    %v4675 = vsub.s32 %v4672, %v4674
    %v4676 = vrot.slane %v4669, %v4675
    %v4677 = vcombine.low %v31, %v35
    %v4679 = vunpack.c.l.s4 1983009808
    %v4680 = vunpack.c.0.s8 %v4679
    %v4681 = vlaneseq
    %v4682 = vshrl.u32 %v4681, 7
    %v4683 = vsub.s32 %v4680, %v4682
    %v4684 = vrot.slane %v4677, %v4683
    %v4685 = vcombine.low %v4660, %v4668
    %v4687 = vunpack.c.l.s4 1934713408
    %v4688 = vunpack.c.0.s8 %v4687
    %v4689 = vlaneseq
    %v4690 = vshrl.u32 %v4689, 7
    %v4691 = vsub.s32 %v4688, %v4690
    %v4692 = vrot.slane %v4685, %v4691
    %v4693 = vcombine.low %v4676, %v4684
    %v4695 = vunpack.c.l.s4 1934713408
    %v4696 = vunpack.c.0.s8 %v4695
    %v4697 = vlaneseq
    %v4698 = vshrl.u32 %v4697, 7
    %v4699 = vsub.s32 %v4696, %v4698
    %v4700 = vrot.slane %v4693, %v4699
    %v4701 = vcombine.low %v4692, %v4700
    %v4702 = vcombine.high %v4692, %v4700
    %v4703 = vcombine.low %v37, %v41
    %v4705 = vunpack.c.l.s4 1983009808
    %v4706 = vunpack.c.0.s8 %v4705
    %v4707 = vlaneseq
    %v4708 = vshrl.u32 %v4707, 7
    %v4709 = vsub.s32 %v4706, %v4708
    %v4710 = vrot.slane %v4703, %v4709
    %v4711 = vcombine.low %v39, %v43
    %v4713 = vunpack.c.l.s4 1983009808
    %v4714 = vunpack.c.0.s8 %v4713
    %v4715 = vlaneseq
    %v4716 = vshrl.u32 %v4715, 7
    %v4717 = vsub.s32 %v4714, %v4716
    %v4718 = vrot.slane %v4711, %v4717
    %v4719 = vcombine.low %v45, %v49
    %v4721 = vunpack.c.l.s4 1983009808
    %v4722 = vunpack.c.0.s8 %v4721
    %v4723 = vlaneseq
    %v4724 = vshrl.u32 %v4723, 7
    %v4725 = vsub.s32 %v4722, %v4724
    %v4726 = vrot.slane %v4719, %v4725
    %v4727 = vcombine.low %v47, %v51
    %v4729 = vunpack.c.l.s4 1983009808
    %v4730 = vunpack.c.0.s8 %v4729
    %v4731 = vlaneseq
    %v4732 = vshrl.u32 %v4731, 7
    %v4733 = vsub.s32 %v4730, %v4732
    %v4734 = vrot.slane %v4727, %v4733
    %v4735 = vcombine.low %v4710, %v4718
    %v4737 = vunpack.c.l.s4 1934713408
    %v4738 = vunpack.c.0.s8 %v4737
    %v4739 = vlaneseq
    %v4740 = vshrl.u32 %v4739, 7
    %v4741 = vsub.s32 %v4738, %v4740
    %v4742 = vrot.slane %v4735, %v4741
    %v4743 = vcombine.low %v4726, %v4734
    %v4745 = vunpack.c.l.s4 1934713408
    %v4746 = vunpack.c.0.s8 %v4745
    %v4747 = vlaneseq
    %v4748 = vshrl.u32 %v4747, 7
    %v4749 = vsub.s32 %v4746, %v4748
    %v4750 = vrot.slane %v4743, %v4749
    %v4751 = vcombine.low %v4742, %v4750
    %v4752 = vcombine.high %v4742, %v4750
    %v4769 = vlaneseq
    %v4770 = vshrl.u32 %v4769, 7
    %v4771 = vsub.s32 %v3546, %v4770
    %v4772 = vrot.slane %v448, %v4771
    %v4773 = vlaneseq
    %v4774 = vshrl.u32 %v4773, 7
    %v4775 = vsub.s32 %v3551, %v4774
    %v4776 = vrot.slane %v449, %v4775
    %v4777 = vsel %vm3556, %v4776, %v4772
    %v4778 = vlaneseq
    %v4779 = vshrl.u32 %v4778, 7
    %v4780 = vsub.s32 %v3546, %v4779
    %v4781 = vrot.slane %v450, %v4780
    %v4782 = vlaneseq
    %v4783 = vshrl.u32 %v4782, 7
    %v4784 = vsub.s32 %v3551, %v4783
    %v4785 = vrot.slane %v451, %v4784
    %v4786 = vsel %vm3556, %v4785, %v4781
    %v4787 = vlaneseq
    %v4788 = vshrl.u32 %v4787, 7
    %v4789 = vsub.s32 %v3546, %v4788
    %v4790 = vrot.slane %v452, %v4789
    %v4791 = vlaneseq
    %v4792 = vshrl.u32 %v4791, 7
    %v4793 = vsub.s32 %v3551, %v4792
    %v4794 = vrot.slane %v453, %v4793
    %v4795 = vsel %vm3556, %v4794, %v4790
    %v4796 = vlaneseq
    %v4797 = vshrl.u32 %v4796, 7
    %v4798 = vsub.s32 %v3546, %v4797
    %v4799 = vrot.slane %v454, %v4798
    %v4800 = vlaneseq
    %v4801 = vshrl.u32 %v4800, 7
    %v4802 = vsub.s32 %v3551, %v4801
    %v4803 = vrot.slane %v455, %v4802
    %v4804 = vsel %vm3556, %v4803, %v4799
    %v4805 = vlaneseq
    %v4806 = vshrl.u32 %v4805, 7
    %v4807 = vsub.s32 %v3546, %v4806
    %v4808 = vrot.slane %v456, %v4807
    %v4809 = vlaneseq
    %v4810 = vshrl.u32 %v4809, 7
    %v4811 = vsub.s32 %v3551, %v4810
    %v4812 = vrot.slane %v457, %v4811
    %v4813 = vsel %vm3556, %v4812, %v4808
    %v4814 = vlaneseq
    %v4815 = vshrl.u32 %v4814, 7
    %v4816 = vsub.s32 %v3546, %v4815
    %v4817 = vrot.slane %v458, %v4816
    %v4818 = vlaneseq
    %v4819 = vshrl.u32 %v4818, 7
    %v4820 = vsub.s32 %v3551, %v4819
    %v4821 = vrot.slane %v459, %v4820
    %v4822 = vsel %vm3556, %v4821, %v4817
    %v4823 = vlaneseq
    %v4824 = vshrl.u32 %v4823, 7
    %v4825 = vsub.s32 %v3546, %v4824
    %v4826 = vrot.slane %v460, %v4825
    %v4827 = vlaneseq
    %v4828 = vshrl.u32 %v4827, 7
    %v4829 = vsub.s32 %v3551, %v4828
    %v4830 = vrot.slane %v461, %v4829
    %v4831 = vsel %vm3556, %v4830, %v4826
    %v4832 = vlaneseq
    %v4833 = vshrl.u32 %v4832, 7
    %v4834 = vsub.s32 %v3546, %v4833
    %v4835 = vrot.slane %v462, %v4834
    %v4836 = vlaneseq
    %v4837 = vshrl.u32 %v4836, 7
    %v4838 = vsub.s32 %v3551, %v4837
    %v4839 = vrot.slane %v463, %v4838
    %v4840 = vsel %vm3556, %v4839, %v4835
    %v4841 = vsel %vm3621, %v4786, %v4777
    %v4842 = vsel %vm3622, %v4795, %v4841
    %v4843 = vsel %vm3624, %v4804, %v4842
    %v4844 = vsel %vm3626, %v4813, %v4843
    %v4845 = vsel %vm3628, %v4822, %v4844
    %v4846 = vsel %vm3630, %v4831, %v4845
    %v4847 = vsel %vm3632, %v4840, %v4846
    %v4848 = vsel %vm3716, %v4847, 0
    %4850 = vmatprep.subr.mxu0 0.0
    %4851 = vmatpush1.msra.mxu0 0.0
    %4852 = vmatprep.subr.mxu0 0.0
    %4853 = vmatpush1.msra.mxu0 0.0
    %4854 = vmatprep.subr.mxu0 0.0
    %4855 = vmatpush1.msra.mxu0 0.0
    %4856 = vmatprep.subr.mxu0 0.0
    %4857 = vmatpush1.msra.mxu0 0.0
    %4858 = vmatprep.subr.mxu0 0.0
    %4859 = vmatpush1.msra.mxu0 0.0
    %4860 = vmatprep.subr.mxu0 0.0
    %4861 = vmatpush1.msra.mxu0 0.0
    %4862 = vmatprep.subr.mxu0 0.0
    %4863 = vmatpush1.msra.mxu0 0.0
    %4864 = vmatprep.subr.mxu0 0.0
    %4865 = vmatpush1.msra.mxu0 0.0
    %4866 = vmatprep.subr.mxu0 0.0
    %4867 = vmatpush1.msra.mxu0 0.0
    %4868 = vmatprep.subr.mxu0 0.0
    %4869 = vmatpush1.msra.mxu0 0.0
    %4870 = vmatprep.subr.mxu0 0.0
    %4871 = vmatpush1.msra.mxu0 0.0
    %4872 = vmatprep.subr.mxu0 0.0
    %4873 = vmatpush1.msra.mxu0 0.0
    %4874 = vmatprep.subr.mxu0 0.0
    %4875 = vmatpush1.msra.mxu0 0.0
    %4876 = vmatprep.subr.mxu0 0.0
    %4877 = vmatpush1.msra.mxu0 0.0
    %4878 = vmatprep.subr.mxu0 %v4646
    %4879 = vmatpush1.msra.mxu0 %v4645
    %4880 = vmatprep.subr.mxu0 %v4510
    %4881 = vmatpush1.msra.mxu0 %v4509
    %4882 = vmatprep.subr.mxu0 0.0
    %4883 = vmatpush2.msra.mxu0 0.0
    %4884 = vmatprep.subr.mxu0 0.0
    %4885 = vmatpush2.msra.mxu0 0.0
    %4886 = vmatprep.subr.mxu0 0.0
    %4887 = vmatpush2.msra.mxu0 0.0
    %4888 = vmatprep.subr.mxu0 0.0
    %4889 = vmatpush2.msra.mxu0 0.0
    %4890 = vmatprep.subr.mxu0 0.0
    %4891 = vmatpush2.msra.mxu0 0.0
    %4892 = vmatprep.subr.mxu0 0.0
    %4893 = vmatpush2.msra.mxu0 0.0
    %4894 = vmatprep.subr.mxu0 0.0
    %4895 = vmatpush2.msra.mxu0 0.0
    %4896 = vmatprep.subr.mxu0 0.0
    %4897 = vmatpush2.msra.mxu0 0.0
    %4898 = vmatprep.subr.mxu0 0.0
    %4899 = vmatpush2.msra.mxu0 0.0
    %4900 = vmatprep.subr.mxu0 0.0
    %4901 = vmatpush2.msra.mxu0 0.0
    %4902 = vmatprep.subr.mxu0 0.0
    %4903 = vmatpush2.msra.mxu0 0.0
    %4904 = vmatprep.subr.mxu0 0.0
    %4905 = vmatpush2.msra.mxu0 0.0
    %4906 = vmatprep.subr.mxu0 0.0
    %4907 = vmatpush2.msra.mxu0 0.0
    %4908 = vmatprep.subr.mxu0 0.0
    %4909 = vmatpush2.msra.mxu0 0.0
    %4910 = vmatprep.subr.mxu0 0.0
    %4911 = vmatpush2.msra.mxu0 0.0
    %4912 = vmatprep.subr.mxu0 0.0
    %4913 = vmatpush2.msra.mxu0 0.0
    %4914 = vmatprep.mubr.f32.mxu0 0.0
    %4915 = vmatmul.mubr.f32.gmra.mxu0 %v4848
    %v4916 = vpop.f32.mrf.mxu0
    %v4917 = vadd.f32 0.0, %v4916
    %v4918 = vpop.f32.mrf.mxu0
    %v4919 = vadd.f32 0.0, %v4918
    %4920 = vdwg.mxu0
    %4921 = vmatprep.subr.mxu0 0.0
    %4922 = vmatpush1.msra.mxu0 0.0
    %4923 = vmatprep.subr.mxu0 0.0
    %4924 = vmatpush1.msra.mxu0 0.0
    %4925 = vmatprep.subr.mxu0 0.0
    %4926 = vmatpush1.msra.mxu0 0.0
    %4927 = vmatprep.subr.mxu0 0.0
    %4928 = vmatpush1.msra.mxu0 0.0
    %4929 = vmatprep.subr.mxu0 0.0
    %4930 = vmatpush1.msra.mxu0 0.0
    %4931 = vmatprep.subr.mxu0 0.0
    %4932 = vmatpush1.msra.mxu0 0.0
    %4933 = vmatprep.subr.mxu0 0.0
    %4934 = vmatpush1.msra.mxu0 0.0
    %4935 = vmatprep.subr.mxu0 0.0
    %4936 = vmatpush1.msra.mxu0 0.0
    %4937 = vmatprep.subr.mxu0 0.0
    %4938 = vmatpush1.msra.mxu0 0.0
    %4939 = vmatprep.subr.mxu0 0.0
    %4940 = vmatpush1.msra.mxu0 0.0
    %4941 = vmatprep.subr.mxu0 0.0
    %4942 = vmatpush1.msra.mxu0 0.0
    %4943 = vmatprep.subr.mxu0 0.0
    %4944 = vmatpush1.msra.mxu0 0.0
    %4945 = vmatprep.subr.mxu0 0.0
    %4946 = vmatpush1.msra.mxu0 0.0
    %4947 = vmatprep.subr.mxu0 0.0
    %4948 = vmatpush1.msra.mxu0 0.0
    %4949 = vmatprep.subr.mxu0 %v4648
    %4950 = vmatpush1.msra.mxu0 %v4647
    %4951 = vmatprep.subr.mxu0 %v4512
    %4952 = vmatpush1.msra.mxu0 %v4511
    %4953 = vmatprep.subr.mxu0 0.0
    %4954 = vmatpush2.msra.mxu0 0.0
    %4955 = vmatprep.subr.mxu0 0.0
    %4956 = vmatpush2.msra.mxu0 0.0
    %4957 = vmatprep.subr.mxu0 0.0
    %4958 = vmatpush2.msra.mxu0 0.0
    %4959 = vmatprep.subr.mxu0 0.0
    %4960 = vmatpush2.msra.mxu0 0.0
    %4961 = vmatprep.subr.mxu0 0.0
    %4962 = vmatpush2.msra.mxu0 0.0
    %4963 = vmatprep.subr.mxu0 0.0
    %4964 = vmatpush2.msra.mxu0 0.0
    %4965 = vmatprep.subr.mxu0 0.0
    %4966 = vmatpush2.msra.mxu0 0.0
    %4967 = vmatprep.subr.mxu0 0.0
    %4968 = vmatpush2.msra.mxu0 0.0
    %4969 = vmatprep.subr.mxu0 0.0
    %4970 = vmatpush2.msra.mxu0 0.0
    %4971 = vmatprep.subr.mxu0 0.0
    %4972 = vmatpush2.msra.mxu0 0.0
    %4973 = vmatprep.subr.mxu0 0.0
    %4974 = vmatpush2.msra.mxu0 0.0
    %4975 = vmatprep.subr.mxu0 0.0
    %4976 = vmatpush2.msra.mxu0 0.0
    %4977 = vmatprep.subr.mxu0 0.0
    %4978 = vmatpush2.msra.mxu0 0.0
    %4979 = vmatprep.subr.mxu0 0.0
    %4980 = vmatpush2.msra.mxu0 0.0
    %4981 = vmatprep.subr.mxu0 0.0
    %4982 = vmatpush2.msra.mxu0 0.0
    %4983 = vmatprep.subr.mxu0 0.0
    %4984 = vmatpush2.msra.mxu0 0.0
    %4985 = vmatprep.mubr.f32.mxu0 0.0
    %4986 = vmatmul.mubr.f32.gmra.mxu0 %v4848
    %v4987 = vpop.f32.mrf.mxu0
    %v4988 = vadd.f32 0.0, %v4987
    %v4989 = vpop.f32.mrf.mxu0
    %v4990 = vadd.f32 0.0, %v4989
    %4991 = vdwg.mxu0
    %4992 = vmatprep.subr.mxu0 0.0
    %4993 = vmatpush1.msra.mxu0 0.0
    %4994 = vmatprep.subr.mxu0 0.0
    %4995 = vmatpush1.msra.mxu0 0.0
    %4996 = vmatprep.subr.mxu0 0.0
    %4997 = vmatpush1.msra.mxu0 0.0
    %4998 = vmatprep.subr.mxu0 0.0
    %4999 = vmatpush1.msra.mxu0 0.0
    %5000 = vmatprep.subr.mxu0 0.0
    %5001 = vmatpush1.msra.mxu0 0.0
    %5002 = vmatprep.subr.mxu0 0.0
    %5003 = vmatpush1.msra.mxu0 0.0
    %5004 = vmatprep.subr.mxu0 0.0
    %5005 = vmatpush1.msra.mxu0 0.0
    %5006 = vmatprep.subr.mxu0 0.0
    %5007 = vmatpush1.msra.mxu0 0.0
    %5008 = vmatprep.subr.mxu0 0.0
    %5009 = vmatpush1.msra.mxu0 0.0
    %5010 = vmatprep.subr.mxu0 0.0
    %5011 = vmatpush1.msra.mxu0 0.0
    %5012 = vmatprep.subr.mxu0 0.0
    %5013 = vmatpush1.msra.mxu0 0.0
    %5014 = vmatprep.subr.mxu0 0.0
    %5015 = vmatpush1.msra.mxu0 0.0
    %5016 = vmatprep.subr.mxu0 0.0
    %5017 = vmatpush1.msra.mxu0 0.0
    %5018 = vmatprep.subr.mxu0 0.0
    %5019 = vmatpush1.msra.mxu0 0.0
    %5020 = vmatprep.subr.mxu0 %v4650
    %5021 = vmatpush1.msra.mxu0 %v4649
    %5022 = vmatprep.subr.mxu0 %v4514
    %5023 = vmatpush1.msra.mxu0 %v4513
    %5024 = vmatprep.subr.mxu0 0.0
    %5025 = vmatpush2.msra.mxu0 0.0
    %5026 = vmatprep.subr.mxu0 0.0
    %5027 = vmatpush2.msra.mxu0 0.0
    %5028 = vmatprep.subr.mxu0 0.0
    %5029 = vmatpush2.msra.mxu0 0.0
    %5030 = vmatprep.subr.mxu0 0.0
    %5031 = vmatpush2.msra.mxu0 0.0
    %5032 = vmatprep.subr.mxu0 0.0
    %5033 = vmatpush2.msra.mxu0 0.0
    %5034 = vmatprep.subr.mxu0 0.0
    %5035 = vmatpush2.msra.mxu0 0.0
    %5036 = vmatprep.subr.mxu0 0.0
    %5037 = vmatpush2.msra.mxu0 0.0
    %5038 = vmatprep.subr.mxu0 0.0
    %5039 = vmatpush2.msra.mxu0 0.0
    %5040 = vmatprep.subr.mxu0 0.0
    %5041 = vmatpush2.msra.mxu0 0.0
    %5042 = vmatprep.subr.mxu0 0.0
    %5043 = vmatpush2.msra.mxu0 0.0
    %5044 = vmatprep.subr.mxu0 0.0
    %5045 = vmatpush2.msra.mxu0 0.0
    %5046 = vmatprep.subr.mxu0 0.0
    %5047 = vmatpush2.msra.mxu0 0.0
    %5048 = vmatprep.subr.mxu0 0.0
    %5049 = vmatpush2.msra.mxu0 0.0
    %5050 = vmatprep.subr.mxu0 0.0
    %5051 = vmatpush2.msra.mxu0 0.0
    %5052 = vmatprep.subr.mxu0 0.0
    %5053 = vmatpush2.msra.mxu0 0.0
    %5054 = vmatprep.subr.mxu0 0.0
    %5055 = vmatpush2.msra.mxu0 0.0
    %5056 = vmatprep.mubr.f32.mxu0 0.0
    %5057 = vmatmul.mubr.f32.gmra.mxu0 %v4848
    %v5058 = vpop.f32.mrf.mxu0
    %v5059 = vadd.f32 0.0, %v5058
    %v5060 = vpop.f32.mrf.mxu0
    %v5061 = vadd.f32 0.0, %v5060
    %5062 = vdwg.mxu0
    %5063 = vmatprep.subr.mxu0 0.0
    %5064 = vmatpush1.msra.mxu0 0.0
    %5065 = vmatprep.subr.mxu0 0.0
    %5066 = vmatpush1.msra.mxu0 0.0
    %5067 = vmatprep.subr.mxu0 0.0
    %5068 = vmatpush1.msra.mxu0 0.0
    %5069 = vmatprep.subr.mxu0 0.0
    %5070 = vmatpush1.msra.mxu0 0.0
    %5071 = vmatprep.subr.mxu0 0.0
    %5072 = vmatpush1.msra.mxu0 0.0
    %5073 = vmatprep.subr.mxu0 0.0
    %5074 = vmatpush1.msra.mxu0 0.0
    %5075 = vmatprep.subr.mxu0 0.0
    %5076 = vmatpush1.msra.mxu0 0.0
    %5077 = vmatprep.subr.mxu0 0.0
    %5078 = vmatpush1.msra.mxu0 0.0
    %5079 = vmatprep.subr.mxu0 0.0
    %5080 = vmatpush1.msra.mxu0 0.0
    %5081 = vmatprep.subr.mxu0 0.0
    %5082 = vmatpush1.msra.mxu0 0.0
    %5083 = vmatprep.subr.mxu0 0.0
    %5084 = vmatpush1.msra.mxu0 0.0
    %5085 = vmatprep.subr.mxu0 0.0
    %5086 = vmatpush1.msra.mxu0 0.0
    %5087 = vmatprep.subr.mxu0 0.0
    %5088 = vmatpush1.msra.mxu0 0.0
    %5089 = vmatprep.subr.mxu0 0.0
    %5090 = vmatpush1.msra.mxu0 0.0
    %5091 = vmatprep.subr.mxu0 %v4652
    %5092 = vmatpush1.msra.mxu0 %v4651
    %5093 = vmatprep.subr.mxu0 %v4516
    %5094 = vmatpush1.msra.mxu0 %v4515
    %5095 = vmatprep.subr.mxu0 0.0
    %5096 = vmatpush2.msra.mxu0 0.0
    %5097 = vmatprep.subr.mxu0 0.0
    %5098 = vmatpush2.msra.mxu0 0.0
    %5099 = vmatprep.subr.mxu0 0.0
    %5100 = vmatpush2.msra.mxu0 0.0
    %5101 = vmatprep.subr.mxu0 0.0
    %5102 = vmatpush2.msra.mxu0 0.0
    %5103 = vmatprep.subr.mxu0 0.0
    %5104 = vmatpush2.msra.mxu0 0.0
    %5105 = vmatprep.subr.mxu0 0.0
    %5106 = vmatpush2.msra.mxu0 0.0
    %5107 = vmatprep.subr.mxu0 0.0
    %5108 = vmatpush2.msra.mxu0 0.0
    %5109 = vmatprep.subr.mxu0 0.0
    %5110 = vmatpush2.msra.mxu0 0.0
    %5111 = vmatprep.subr.mxu0 0.0
    %5112 = vmatpush2.msra.mxu0 0.0
    %5113 = vmatprep.subr.mxu0 0.0
    %5114 = vmatpush2.msra.mxu0 0.0
    %5115 = vmatprep.subr.mxu0 0.0
    %5116 = vmatpush2.msra.mxu0 0.0
    %5117 = vmatprep.subr.mxu0 0.0
    %5118 = vmatpush2.msra.mxu0 0.0
    %5119 = vmatprep.subr.mxu0 0.0
    %5120 = vmatpush2.msra.mxu0 0.0
    %5121 = vmatprep.subr.mxu0 0.0
    %5122 = vmatpush2.msra.mxu0 0.0
    %5123 = vmatprep.subr.mxu0 0.0
    %5124 = vmatpush2.msra.mxu0 0.0
    %5125 = vmatprep.subr.mxu0 0.0
    %5126 = vmatpush2.msra.mxu0 0.0
    %5127 = vmatprep.mubr.f32.mxu0 0.0
    %5128 = vmatmul.mubr.f32.gmra.mxu0 %v4848
    %v5129 = vpop.f32.mrf.mxu0
    %v5130 = vadd.f32 0.0, %v5129
    %v5131 = vpop.f32.mrf.mxu0
    %v5132 = vadd.f32 0.0, %v5131
    %5133 = vdwg.mxu0
    %5134 = vmatprep.subr.mxu0 0.0
    %5135 = vmatpush1.msra.mxu0 0.0
    %5136 = vmatprep.subr.mxu0 0.0
    %5137 = vmatpush1.msra.mxu0 0.0
    %5138 = vmatprep.subr.mxu0 0.0
    %5139 = vmatpush1.msra.mxu0 0.0
    %5140 = vmatprep.subr.mxu0 0.0
    %5141 = vmatpush1.msra.mxu0 0.0
    %5142 = vmatprep.subr.mxu0 0.0
    %5143 = vmatpush1.msra.mxu0 0.0
    %5144 = vmatprep.subr.mxu0 0.0
    %5145 = vmatpush1.msra.mxu0 0.0
    %5146 = vmatprep.subr.mxu0 0.0
    %5147 = vmatpush1.msra.mxu0 0.0
    %5148 = vmatprep.subr.mxu0 0.0
    %5149 = vmatpush1.msra.mxu0 0.0
    %5150 = vmatprep.subr.mxu0 0.0
    %5151 = vmatpush1.msra.mxu0 0.0
    %5152 = vmatprep.subr.mxu0 0.0
    %5153 = vmatpush1.msra.mxu0 0.0
    %5154 = vmatprep.subr.mxu0 0.0
    %5155 = vmatpush1.msra.mxu0 0.0
    %5156 = vmatprep.subr.mxu0 0.0
    %5157 = vmatpush1.msra.mxu0 0.0
    %5158 = vmatprep.subr.mxu0 0.0
    %5159 = vmatpush1.msra.mxu0 0.0
    %5160 = vmatprep.subr.mxu0 0.0
    %5161 = vmatpush1.msra.mxu0 0.0
    %5162 = vmatprep.subr.mxu0 %v4752
    %5163 = vmatpush1.msra.mxu0 %v4751
    %5164 = vmatprep.subr.mxu0 %v4702
    %5165 = vmatpush1.msra.mxu0 %v4701
    %5166 = vmatprep.subr.mxu0 0.0
    %5167 = vmatpush2.msra.mxu0 0.0
    %5168 = vmatprep.subr.mxu0 0.0
    %5169 = vmatpush2.msra.mxu0 0.0
    %5170 = vmatprep.subr.mxu0 0.0
    %5171 = vmatpush2.msra.mxu0 0.0
    %5172 = vmatprep.subr.mxu0 0.0
    %5173 = vmatpush2.msra.mxu0 0.0
    %5174 = vmatprep.subr.mxu0 0.0
    %5175 = vmatpush2.msra.mxu0 0.0
    %5176 = vmatprep.subr.mxu0 0.0
    %5177 = vmatpush2.msra.mxu0 0.0
    %5178 = vmatprep.subr.mxu0 0.0
    %5179 = vmatpush2.msra.mxu0 0.0
    %5180 = vmatprep.subr.mxu0 0.0
    %5181 = vmatpush2.msra.mxu0 0.0
    %5182 = vmatprep.subr.mxu0 0.0
    %5183 = vmatpush2.msra.mxu0 0.0
    %5184 = vmatprep.subr.mxu0 0.0
    %5185 = vmatpush2.msra.mxu0 0.0
    %5186 = vmatprep.subr.mxu0 0.0
    %5187 = vmatpush2.msra.mxu0 0.0
    %5188 = vmatprep.subr.mxu0 0.0
    %5189 = vmatpush2.msra.mxu0 0.0
    %5190 = vmatprep.subr.mxu0 0.0
    %5191 = vmatpush2.msra.mxu0 0.0
    %5192 = vmatprep.subr.mxu0 0.0
    %5193 = vmatpush2.msra.mxu0 0.0
    %5194 = vmatprep.subr.mxu0 0.0
    %5195 = vmatpush2.msra.mxu0 0.0
    %5196 = vmatprep.subr.mxu0 0.0
    %5197 = vmatpush2.msra.mxu0 0.0
    %5198 = vmatprep.mubr.f32.mxu0 0.0
    %5199 = vmatmul.mubr.f32.gmra.mxu0 %v4848
    %v5200 = vpop.f32.mrf.mxu0
    %v5201 = vadd.f32 0.0, %v5200
    %v5202 = vpop.f32.mrf.mxu0
    %v5203 = vadd.f32 0.0, %v5202
    %5204 = vdwg.mxu0
    %v5205 = vcombine.low %v4917, %v4988
    %v5206 = vcombine.high %v4917, %v4988
    %v5208 = vunpack.c.l.s4 1983009808
    %v5209 = vunpack.c.0.s8 %v5208
    %v5210 = vlaneseq
    %v5211 = vshrl.u32 %v5210, 7
    %v5212 = vsub.s32 %v5209, %v5211
    %v5213 = vrot.slane %v5205, %v5212
    %v5215 = vunpack.c.l.s4 1983009808
    %v5216 = vunpack.c.0.s8 %v5215
    %v5217 = vlaneseq
    %v5218 = vshrl.u32 %v5217, 7
    %v5219 = vsub.s32 %v5216, %v5218
    %v5220 = vrot.slane %v5206, %v5219
    %v5221 = vcombine.low %v4919, %v4990
    %v5222 = vcombine.high %v4919, %v4990
    %v5224 = vunpack.c.l.s4 1983009808
    %v5225 = vunpack.c.0.s8 %v5224
    %v5226 = vlaneseq
    %v5227 = vshrl.u32 %v5226, 7
    %v5228 = vsub.s32 %v5225, %v5227
    %v5229 = vrot.slane %v5221, %v5228
    %v5231 = vunpack.c.l.s4 1983009808
    %v5232 = vunpack.c.0.s8 %v5231
    %v5233 = vlaneseq
    %v5234 = vshrl.u32 %v5233, 7
    %v5235 = vsub.s32 %v5232, %v5234
    %v5236 = vrot.slane %v5222, %v5235
    %v5237 = vcombine.low %v5059, %v5130
    %v5238 = vcombine.high %v5059, %v5130
    %v5240 = vunpack.c.l.s4 1983009808
    %v5241 = vunpack.c.0.s8 %v5240
    %v5242 = vlaneseq
    %v5243 = vshrl.u32 %v5242, 7
    %v5244 = vsub.s32 %v5241, %v5243
    %v5245 = vrot.slane %v5237, %v5244
    %v5247 = vunpack.c.l.s4 1983009808
    %v5248 = vunpack.c.0.s8 %v5247
    %v5249 = vlaneseq
    %v5250 = vshrl.u32 %v5249, 7
    %v5251 = vsub.s32 %v5248, %v5250
    %v5252 = vrot.slane %v5238, %v5251
    %v5253 = vcombine.low %v5061, %v5132
    %v5254 = vcombine.high %v5061, %v5132
    %v5256 = vunpack.c.l.s4 1983009808
    %v5257 = vunpack.c.0.s8 %v5256
    %v5258 = vlaneseq
    %v5259 = vshrl.u32 %v5258, 7
    %v5260 = vsub.s32 %v5257, %v5259
    %v5261 = vrot.slane %v5253, %v5260
    %v5263 = vunpack.c.l.s4 1983009808
    %v5264 = vunpack.c.0.s8 %v5263
    %v5265 = vlaneseq
    %v5266 = vshrl.u32 %v5265, 7
    %v5267 = vsub.s32 %v5264, %v5266
    %v5268 = vrot.slane %v5254, %v5267
    %v5269 = vcombine.low %v5213, %v5229
    %v5270 = vcombine.high %v5213, %v5229
    %v5272 = vunpack.c.l.s4 1934713408
    %v5273 = vunpack.c.0.s8 %v5272
    %v5274 = vlaneseq
    %v5275 = vshrl.u32 %v5274, 7
    %v5276 = vsub.s32 %v5273, %v5275
    %v5277 = vrot.slane %v5269, %v5276
    %v5279 = vunpack.c.l.s4 1934713408
    %v5280 = vunpack.c.0.s8 %v5279
    %v5281 = vlaneseq
    %v5282 = vshrl.u32 %v5281, 7
    %v5283 = vsub.s32 %v5280, %v5282
    %v5284 = vrot.slane %v5270, %v5283
    %v5285 = vcombine.low %v5220, %v5236
    %v5286 = vcombine.high %v5220, %v5236
    %v5288 = vunpack.c.l.s4 1934713408
    %v5289 = vunpack.c.0.s8 %v5288
    %v5290 = vlaneseq
    %v5291 = vshrl.u32 %v5290, 7
    %v5292 = vsub.s32 %v5289, %v5291
    %v5293 = vrot.slane %v5285, %v5292
    %v5295 = vunpack.c.l.s4 1934713408
    %v5296 = vunpack.c.0.s8 %v5295
    %v5297 = vlaneseq
    %v5298 = vshrl.u32 %v5297, 7
    %v5299 = vsub.s32 %v5296, %v5298
    %v5300 = vrot.slane %v5286, %v5299
    %v5301 = vcombine.low %v5245, %v5261
    %v5302 = vcombine.high %v5245, %v5261
    %v5304 = vunpack.c.l.s4 1934713408
    %v5305 = vunpack.c.0.s8 %v5304
    %v5306 = vlaneseq
    %v5307 = vshrl.u32 %v5306, 7
    %v5308 = vsub.s32 %v5305, %v5307
    %v5309 = vrot.slane %v5301, %v5308
    %v5311 = vunpack.c.l.s4 1934713408
    %v5312 = vunpack.c.0.s8 %v5311
    %v5313 = vlaneseq
    %v5314 = vshrl.u32 %v5313, 7
    %v5315 = vsub.s32 %v5312, %v5314
    %v5316 = vrot.slane %v5302, %v5315
    %v5317 = vcombine.low %v5252, %v5268
    %v5318 = vcombine.high %v5252, %v5268
    %v5320 = vunpack.c.l.s4 1934713408
    %v5321 = vunpack.c.0.s8 %v5320
    %v5322 = vlaneseq
    %v5323 = vshrl.u32 %v5322, 7
    %v5324 = vsub.s32 %v5321, %v5323
    %v5325 = vrot.slane %v5317, %v5324
    %v5327 = vunpack.c.l.s4 1934713408
    %v5328 = vunpack.c.0.s8 %v5327
    %v5329 = vlaneseq
    %v5330 = vshrl.u32 %v5329, 7
    %v5331 = vsub.s32 %v5328, %v5330
    %v5332 = vrot.slane %v5318, %v5331
    %v5333 = vcombine.low %v5277, %v5309
    %v5334 = vcombine.high %v5277, %v5309
    %v5335 = vcombine.low %v5284, %v5316
    %v5336 = vcombine.high %v5284, %v5316
    %v5337 = vcombine.low %v5293, %v5325
    %v5338 = vcombine.high %v5293, %v5325
    %v5339 = vcombine.low %v5300, %v5332
    %v5340 = vcombine.high %v5300, %v5332
    %v5341 = vcombine.high %v5201, 0.0
    %v5343 = vunpack.c.l.s4 1983009808
    %v5344 = vunpack.c.0.s8 %v5343
    %v5345 = vlaneseq
    %v5346 = vshrl.u32 %v5345, 7
    %v5347 = vsub.s32 %v5344, %v5346
    %v5348 = vrot.slane %v5201, %v5347
    %v5350 = vunpack.c.l.s4 1983009808
    %v5351 = vunpack.c.0.s8 %v5350
    %v5352 = vlaneseq
    %v5353 = vshrl.u32 %v5352, 7
    %v5354 = vsub.s32 %v5351, %v5353
    %v5355 = vrot.slane %v5341, %v5354
    %v5356 = vcombine.high %v5203, 0.0
    %v5358 = vunpack.c.l.s4 1983009808
    %v5359 = vunpack.c.0.s8 %v5358
    %v5360 = vlaneseq
    %v5361 = vshrl.u32 %v5360, 7
    %v5362 = vsub.s32 %v5359, %v5361
    %v5363 = vrot.slane %v5203, %v5362
    %v5365 = vunpack.c.l.s4 1983009808
    %v5366 = vunpack.c.0.s8 %v5365
    %v5367 = vlaneseq
    %v5368 = vshrl.u32 %v5367, 7
    %v5369 = vsub.s32 %v5366, %v5368
    %v5370 = vrot.slane %v5356, %v5369
    %v5371 = vcombine.low %v5348, %v5363
    %v5372 = vcombine.high %v5348, %v5363
    %v5374 = vunpack.c.l.s4 1934713408
    %v5375 = vunpack.c.0.s8 %v5374
    %v5376 = vlaneseq
    %v5377 = vshrl.u32 %v5376, 7
    %v5378 = vsub.s32 %v5375, %v5377
    %v5379 = vrot.slane %v5371, %v5378
    %v5381 = vunpack.c.l.s4 1934713408
    %v5382 = vunpack.c.0.s8 %v5381
    %v5383 = vlaneseq
    %v5384 = vshrl.u32 %v5383, 7
    %v5385 = vsub.s32 %v5382, %v5384
    %v5386 = vrot.slane %v5372, %v5385
    %v5387 = vcombine.low %v5355, %v5370
    %v5388 = vcombine.high %v5355, %v5370
    %v5390 = vunpack.c.l.s4 1934713408
    %v5391 = vunpack.c.0.s8 %v5390
    %v5392 = vlaneseq
    %v5393 = vshrl.u32 %v5392, 7
    %v5394 = vsub.s32 %v5391, %v5393
    %v5395 = vrot.slane %v5387, %v5394
    %v5397 = vunpack.c.l.s4 1934713408
    %v5398 = vunpack.c.0.s8 %v5397
    %v5399 = vlaneseq
    %v5400 = vshrl.u32 %v5399, 7
    %v5401 = vsub.s32 %v5398, %v5400
    %v5402 = vrot.slane %v5388, %v5401
    %v5403 = vcombine.high %v5379, 0.0
    %v5404 = vcombine.high %v5386, 0.0
    %v5405 = vcombine.high %v5395, 0.0
    %v5406 = vcombine.high %v5402, 0.0
    %v5407 = vld [vmem:[#allocation3] sm:$0xff]
    %v5408 = vld [vmem:[#allocation3 + $0x8] sm:$0xff]
    %v5409 = vld [vmem:[#allocation3 + $0x10] sm:$0xff]
    %v5410 = vld [vmem:[#allocation3 + $0x18] sm:$0xff]
    %v5411 = vld [vmem:[#allocation3 + $0x20] sm:$0xff]
    %v5412 = vld [vmem:[#allocation3 + $0x28] sm:$0xff]
    %v5413 = vld [vmem:[#allocation3 + $0x30] sm:$0xff]
    %v5414 = vld [vmem:[#allocation3 + $0x38] sm:$0xff]
    %v5415 = vld [vmem:[#allocation3 + $0x40] sm:$0xff]
    %v5416 = vld [vmem:[#allocation3 + $0x48] sm:$0xff]
    %v5417 = vld [vmem:[#allocation3 + $0x50] sm:$0xff]
    %v5418 = vld [vmem:[#allocation3 + $0x58] sm:$0xff]
    %v5419 = vld [vmem:[#allocation3 + $0x60] sm:$0xff]
    %v5420 = vld [vmem:[#allocation3 + $0x68] sm:$0xff]
    %v5421 = vld [vmem:[#allocation3 + $0x70] sm:$0xff]
    %v5422 = vld [vmem:[#allocation3 + $0x78] sm:$0xff]
    %v5424 = vsel %vm473, %v5379, 0
    %5426 = vmatprep.subr.mxu0 0.0
    %5427 = vmatpush1.msra.mxu0 0.0
    %5428 = vmatprep.subr.mxu0 0.0
    %5429 = vmatpush1.msra.mxu0 0.0
    %5430 = vmatprep.subr.mxu0 0.0
    %5431 = vmatpush1.msra.mxu0 0.0
    %5432 = vmatprep.subr.mxu0 0.0
    %5433 = vmatpush1.msra.mxu0 0.0
    %5434 = vmatprep.subr.mxu0 0.0
    %5435 = vmatpush1.msra.mxu0 0.0
    %5436 = vmatprep.subr.mxu0 0.0
    %5437 = vmatpush1.msra.mxu0 0.0
    %5438 = vmatprep.subr.mxu0 0.0
    %5439 = vmatpush1.msra.mxu0 0.0
    %5440 = vmatprep.subr.mxu0 0.0
    %5441 = vmatpush1.msra.mxu0 0.0
    %5442 = vmatprep.subr.mxu0 0.0
    %5443 = vmatpush1.msra.mxu0 0.0
    %5444 = vmatprep.subr.mxu0 0.0
    %5445 = vmatpush1.msra.mxu0 0.0
    %5446 = vmatprep.subr.mxu0 0.0
    %5447 = vmatpush1.msra.mxu0 0.0
    %5448 = vmatprep.subr.mxu0 0.0
    %5449 = vmatpush1.msra.mxu0 0.0
    %5450 = vmatprep.subr.mxu0 0.0
    %5451 = vmatpush1.msra.mxu0 0.0
    %5452 = vmatprep.subr.mxu0 0.0
    %5453 = vmatpush1.msra.mxu0 0.0
    %5454 = vmatprep.subr.mxu0 0.0
    %5455 = vmatpush1.msra.mxu0 %v5424
    %5456 = vmatprep.subr.mxu0 0.0
    %5457 = vmatpush1.msra.mxu0 %v5333
    %5458 = vmatprep.subr.mxu0 0.0
    %5459 = vmatpush2.msra.mxu0 0.0
    %5460 = vmatprep.subr.mxu0 0.0
    %5461 = vmatpush2.msra.mxu0 0.0
    %5462 = vmatprep.subr.mxu0 0.0
    %5463 = vmatpush2.msra.mxu0 0.0
    %5464 = vmatprep.subr.mxu0 0.0
    %5465 = vmatpush2.msra.mxu0 0.0
    %5466 = vmatprep.subr.mxu0 0.0
    %5467 = vmatpush2.msra.mxu0 0.0
    %5468 = vmatprep.subr.mxu0 0.0
    %5469 = vmatpush2.msra.mxu0 0.0
    %5470 = vmatprep.subr.mxu0 0.0
    %5471 = vmatpush2.msra.mxu0 0.0
    %5472 = vmatprep.subr.mxu0 0.0
    %5473 = vmatpush2.msra.mxu0 0.0
    %5474 = vmatprep.subr.mxu0 0.0
    %5475 = vmatpush2.msra.mxu0 0.0
    %5476 = vmatprep.subr.mxu0 0.0
    %5477 = vmatpush2.msra.mxu0 0.0
    %5478 = vmatprep.subr.mxu0 0.0
    %5479 = vmatpush2.msra.mxu0 0.0
    %5480 = vmatprep.subr.mxu0 0.0
    %5481 = vmatpush2.msra.mxu0 0.0
    %5482 = vmatprep.subr.mxu0 0.0
    %5483 = vmatpush2.msra.mxu0 0.0
    %5484 = vmatprep.subr.mxu0 0.0
    %5485 = vmatpush2.msra.mxu0 0.0
    %5486 = vmatprep.subr.mxu0 0.0
    %5487 = vmatpush2.msra.mxu0 0.0
    %5488 = vmatprep.subr.mxu0 0.0
    %5489 = vmatpush2.msra.mxu0 0.0
    %5490 = vmatprep.mubr.f32.mxu0 0.0
    %5491 = vmatmul.mubr.f32.gmra.mxu0 %v2834
    %v5492 = vpop.f32.mrf.mxu0
    %v5493 = vadd.f32 0.0, %v5492
    %v5494 = vpop.f32.mrf.mxu0
    %5495 = vmatprep.mubr.f32.mxu0 0.0
    %5496 = vmatmul.mubr.f32.gmra.mxu0 %v2837
    %v5497 = vpop.f32.mrf.mxu0
    %v5498 = vadd.f32 0.0, %v5497
    %v5499 = vpop.f32.mrf.mxu0
    %5500 = vdwg.mxu0
    %v5502 = vsel %vm473, %v5403, 0
    %5504 = vmatprep.subr.mxu0 0.0
    %5505 = vmatpush1.msra.mxu0 0.0
    %5506 = vmatprep.subr.mxu0 0.0
    %5507 = vmatpush1.msra.mxu0 0.0
    %5508 = vmatprep.subr.mxu0 0.0
    %5509 = vmatpush1.msra.mxu0 0.0
    %5510 = vmatprep.subr.mxu0 0.0
    %5511 = vmatpush1.msra.mxu0 0.0
    %5512 = vmatprep.subr.mxu0 0.0
    %5513 = vmatpush1.msra.mxu0 0.0
    %5514 = vmatprep.subr.mxu0 0.0
    %5515 = vmatpush1.msra.mxu0 0.0
    %5516 = vmatprep.subr.mxu0 0.0
    %5517 = vmatpush1.msra.mxu0 0.0
    %5518 = vmatprep.subr.mxu0 0.0
    %5519 = vmatpush1.msra.mxu0 0.0
    %5520 = vmatprep.subr.mxu0 0.0
    %5521 = vmatpush1.msra.mxu0 0.0
    %5522 = vmatprep.subr.mxu0 0.0
    %5523 = vmatpush1.msra.mxu0 0.0
    %5524 = vmatprep.subr.mxu0 0.0
    %5525 = vmatpush1.msra.mxu0 0.0
    %5526 = vmatprep.subr.mxu0 0.0
    %5527 = vmatpush1.msra.mxu0 0.0
    %5528 = vmatprep.subr.mxu0 0.0
    %5529 = vmatpush1.msra.mxu0 0.0
    %5530 = vmatprep.subr.mxu0 0.0
    %5531 = vmatpush1.msra.mxu0 0.0
    %5532 = vmatprep.subr.mxu0 0.0
    %5533 = vmatpush1.msra.mxu0 %v5502
    %5534 = vmatprep.subr.mxu0 0.0
    %5535 = vmatpush1.msra.mxu0 %v5334
    %5536 = vmatprep.subr.mxu0 0.0
    %5537 = vmatpush2.msra.mxu0 0.0
    %5538 = vmatprep.subr.mxu0 0.0
    %5539 = vmatpush2.msra.mxu0 0.0
    %5540 = vmatprep.subr.mxu0 0.0
    %5541 = vmatpush2.msra.mxu0 0.0
    %5542 = vmatprep.subr.mxu0 0.0
    %5543 = vmatpush2.msra.mxu0 0.0
    %5544 = vmatprep.subr.mxu0 0.0
    %5545 = vmatpush2.msra.mxu0 0.0
    %5546 = vmatprep.subr.mxu0 0.0
    %5547 = vmatpush2.msra.mxu0 0.0
    %5548 = vmatprep.subr.mxu0 0.0
    %5549 = vmatpush2.msra.mxu0 0.0
    %5550 = vmatprep.subr.mxu0 0.0
    %5551 = vmatpush2.msra.mxu0 0.0
    %5552 = vmatprep.subr.mxu0 0.0
    %5553 = vmatpush2.msra.mxu0 0.0
    %5554 = vmatprep.subr.mxu0 0.0
    %5555 = vmatpush2.msra.mxu0 0.0
    %5556 = vmatprep.subr.mxu0 0.0
    %5557 = vmatpush2.msra.mxu0 0.0
    %5558 = vmatprep.subr.mxu0 0.0
    %5559 = vmatpush2.msra.mxu0 0.0
    %5560 = vmatprep.subr.mxu0 0.0
    %5561 = vmatpush2.msra.mxu0 0.0
    %5562 = vmatprep.subr.mxu0 0.0
    %5563 = vmatpush2.msra.mxu0 0.0
    %5564 = vmatprep.subr.mxu0 0.0
    %5565 = vmatpush2.msra.mxu0 0.0
    %5566 = vmatprep.subr.mxu0 0.0
    %5567 = vmatpush2.msra.mxu0 0.0
    %5568 = vmatprep.mubr.f32.mxu0 0.0
    %5569 = vmatmul.mubr.f32.gmra.mxu0 %v2921
    %v5570 = vpop.f32.mrf.mxu0
    %v5571 = vadd.f32 0.0, %v5570
    %v5572 = vpop.f32.mrf.mxu0
    %5573 = vmatprep.mubr.f32.mxu0 0.0
    %5574 = vmatmul.mubr.f32.gmra.mxu0 %v2924
    %v5575 = vpop.f32.mrf.mxu0
    %v5576 = vadd.f32 0.0, %v5575
    %v5577 = vpop.f32.mrf.mxu0
    %5578 = vdwg.mxu0
    %v5580 = vsel %vm473, %v5386, 0
    %5582 = vmatprep.subr.mxu0 0.0
    %5583 = vmatpush1.msra.mxu0 0.0
    %5584 = vmatprep.subr.mxu0 0.0
    %5585 = vmatpush1.msra.mxu0 0.0
    %5586 = vmatprep.subr.mxu0 0.0
    %5587 = vmatpush1.msra.mxu0 0.0
    %5588 = vmatprep.subr.mxu0 0.0
    %5589 = vmatpush1.msra.mxu0 0.0
    %5590 = vmatprep.subr.mxu0 0.0
    %5591 = vmatpush1.msra.mxu0 0.0
    %5592 = vmatprep.subr.mxu0 0.0
    %5593 = vmatpush1.msra.mxu0 0.0
    %5594 = vmatprep.subr.mxu0 0.0
    %5595 = vmatpush1.msra.mxu0 0.0
    %5596 = vmatprep.subr.mxu0 0.0
    %5597 = vmatpush1.msra.mxu0 0.0
    %5598 = vmatprep.subr.mxu0 0.0
    %5599 = vmatpush1.msra.mxu0 0.0
    %5600 = vmatprep.subr.mxu0 0.0
    %5601 = vmatpush1.msra.mxu0 0.0
    %5602 = vmatprep.subr.mxu0 0.0
    %5603 = vmatpush1.msra.mxu0 0.0
    %5604 = vmatprep.subr.mxu0 0.0
    %5605 = vmatpush1.msra.mxu0 0.0
    %5606 = vmatprep.subr.mxu0 0.0
    %5607 = vmatpush1.msra.mxu0 0.0
    %5608 = vmatprep.subr.mxu0 0.0
    %5609 = vmatpush1.msra.mxu0 0.0
    %5610 = vmatprep.subr.mxu0 0.0
    %5611 = vmatpush1.msra.mxu0 %v5580
    %5612 = vmatprep.subr.mxu0 0.0
    %5613 = vmatpush1.msra.mxu0 %v5335
    %5614 = vmatprep.subr.mxu0 0.0
    %5615 = vmatpush2.msra.mxu0 0.0
    %5616 = vmatprep.subr.mxu0 0.0
    %5617 = vmatpush2.msra.mxu0 0.0
    %5618 = vmatprep.subr.mxu0 0.0
    %5619 = vmatpush2.msra.mxu0 0.0
    %5620 = vmatprep.subr.mxu0 0.0
    %5621 = vmatpush2.msra.mxu0 0.0
    %5622 = vmatprep.subr.mxu0 0.0
    %5623 = vmatpush2.msra.mxu0 0.0
    %5624 = vmatprep.subr.mxu0 0.0
    %5625 = vmatpush2.msra.mxu0 0.0
    %5626 = vmatprep.subr.mxu0 0.0
    %5627 = vmatpush2.msra.mxu0 0.0
    %5628 = vmatprep.subr.mxu0 0.0
    %5629 = vmatpush2.msra.mxu0 0.0
    %5630 = vmatprep.subr.mxu0 0.0
    %5631 = vmatpush2.msra.mxu0 0.0
    %5632 = vmatprep.subr.mxu0 0.0
    %5633 = vmatpush2.msra.mxu0 0.0
    %5634 = vmatprep.subr.mxu0 0.0
    %5635 = vmatpush2.msra.mxu0 0.0
    %5636 = vmatprep.subr.mxu0 0.0
    %5637 = vmatpush2.msra.mxu0 0.0
    %5638 = vmatprep.subr.mxu0 0.0
    %5639 = vmatpush2.msra.mxu0 0.0
    %5640 = vmatprep.subr.mxu0 0.0
    %5641 = vmatpush2.msra.mxu0 0.0
    %5642 = vmatprep.subr.mxu0 0.0
    %5643 = vmatpush2.msra.mxu0 0.0
    %5644 = vmatprep.subr.mxu0 0.0
    %5645 = vmatpush2.msra.mxu0 0.0
    %5646 = vmatprep.mubr.f32.mxu0 0.0
    %5647 = vmatmul.mubr.f32.gmra.mxu0 %v3008
    %v5648 = vpop.f32.mrf.mxu0
    %v5649 = vadd.f32 0.0, %v5648
    %v5650 = vpop.f32.mrf.mxu0
    %5651 = vmatprep.mubr.f32.mxu0 0.0
    %5652 = vmatmul.mubr.f32.gmra.mxu0 %v3011
    %v5653 = vpop.f32.mrf.mxu0
    %v5654 = vadd.f32 0.0, %v5653
    %v5655 = vpop.f32.mrf.mxu0
    %5656 = vdwg.mxu0
    %v5658 = vsel %vm473, %v5404, 0
    %5660 = vmatprep.subr.mxu0 0.0
    %5661 = vmatpush1.msra.mxu0 0.0
    %5662 = vmatprep.subr.mxu0 0.0
    %5663 = vmatpush1.msra.mxu0 0.0
    %5664 = vmatprep.subr.mxu0 0.0
    %5665 = vmatpush1.msra.mxu0 0.0
    %5666 = vmatprep.subr.mxu0 0.0
    %5667 = vmatpush1.msra.mxu0 0.0
    %5668 = vmatprep.subr.mxu0 0.0
    %5669 = vmatpush1.msra.mxu0 0.0
    %5670 = vmatprep.subr.mxu0 0.0
    %5671 = vmatpush1.msra.mxu0 0.0
    %5672 = vmatprep.subr.mxu0 0.0
    %5673 = vmatpush1.msra.mxu0 0.0
    %5674 = vmatprep.subr.mxu0 0.0
    %5675 = vmatpush1.msra.mxu0 0.0
    %5676 = vmatprep.subr.mxu0 0.0
    %5677 = vmatpush1.msra.mxu0 0.0
    %5678 = vmatprep.subr.mxu0 0.0
    %5679 = vmatpush1.msra.mxu0 0.0
    %5680 = vmatprep.subr.mxu0 0.0
    %5681 = vmatpush1.msra.mxu0 0.0
    %5682 = vmatprep.subr.mxu0 0.0
    %5683 = vmatpush1.msra.mxu0 0.0
    %5684 = vmatprep.subr.mxu0 0.0
    %5685 = vmatpush1.msra.mxu0 0.0
    %5686 = vmatprep.subr.mxu0 0.0
    %5687 = vmatpush1.msra.mxu0 0.0
    %5688 = vmatprep.subr.mxu0 0.0
    %5689 = vmatpush1.msra.mxu0 %v5658
    %5690 = vmatprep.subr.mxu0 0.0
    %5691 = vmatpush1.msra.mxu0 %v5336
    %5692 = vmatprep.subr.mxu0 0.0
    %5693 = vmatpush2.msra.mxu0 0.0
    %5694 = vmatprep.subr.mxu0 0.0
    %5695 = vmatpush2.msra.mxu0 0.0
    %5696 = vmatprep.subr.mxu0 0.0
    %5697 = vmatpush2.msra.mxu0 0.0
    %5698 = vmatprep.subr.mxu0 0.0
    %5699 = vmatpush2.msra.mxu0 0.0
    %5700 = vmatprep.subr.mxu0 0.0
    %5701 = vmatpush2.msra.mxu0 0.0
    %5702 = vmatprep.subr.mxu0 0.0
    %5703 = vmatpush2.msra.mxu0 0.0
    %5704 = vmatprep.subr.mxu0 0.0
    %5705 = vmatpush2.msra.mxu0 0.0
    %5706 = vmatprep.subr.mxu0 0.0
    %5707 = vmatpush2.msra.mxu0 0.0
    %5708 = vmatprep.subr.mxu0 0.0
    %5709 = vmatpush2.msra.mxu0 0.0
    %5710 = vmatprep.subr.mxu0 0.0
    %5711 = vmatpush2.msra.mxu0 0.0
    %5712 = vmatprep.subr.mxu0 0.0
    %5713 = vmatpush2.msra.mxu0 0.0
    %5714 = vmatprep.subr.mxu0 0.0
    %5715 = vmatpush2.msra.mxu0 0.0
    %5716 = vmatprep.subr.mxu0 0.0
    %5717 = vmatpush2.msra.mxu0 0.0
    %5718 = vmatprep.subr.mxu0 0.0
    %5719 = vmatpush2.msra.mxu0 0.0
    %5720 = vmatprep.subr.mxu0 0.0
    %5721 = vmatpush2.msra.mxu0 0.0
    %5722 = vmatprep.subr.mxu0 0.0
    %5723 = vmatpush2.msra.mxu0 0.0
    %5724 = vmatprep.mubr.f32.mxu0 0.0
    %5725 = vmatmul.mubr.f32.gmra.mxu0 %v3095
    %v5726 = vpop.f32.mrf.mxu0
    %v5727 = vadd.f32 0.0, %v5726
    %v5728 = vpop.f32.mrf.mxu0
    %5729 = vmatprep.mubr.f32.mxu0 0.0
    %5730 = vmatmul.mubr.f32.gmra.mxu0 %v3098
    %v5731 = vpop.f32.mrf.mxu0
    %v5732 = vadd.f32 0.0, %v5731
    %v5733 = vpop.f32.mrf.mxu0
    %5734 = vdwg.mxu0
    %v5736 = vsel %vm473, %v5395, 0
    %5738 = vmatprep.subr.mxu0 0.0
    %5739 = vmatpush1.msra.mxu0 0.0
    %5740 = vmatprep.subr.mxu0 0.0
    %5741 = vmatpush1.msra.mxu0 0.0
    %5742 = vmatprep.subr.mxu0 0.0
    %5743 = vmatpush1.msra.mxu0 0.0
    %5744 = vmatprep.subr.mxu0 0.0
    %5745 = vmatpush1.msra.mxu0 0.0
    %5746 = vmatprep.subr.mxu0 0.0
    %5747 = vmatpush1.msra.mxu0 0.0
    %5748 = vmatprep.subr.mxu0 0.0
    %5749 = vmatpush1.msra.mxu0 0.0
    %5750 = vmatprep.subr.mxu0 0.0
    %5751 = vmatpush1.msra.mxu0 0.0
    %5752 = vmatprep.subr.mxu0 0.0
    %5753 = vmatpush1.msra.mxu0 0.0
    %5754 = vmatprep.subr.mxu0 0.0
    %5755 = vmatpush1.msra.mxu0 0.0
    %5756 = vmatprep.subr.mxu0 0.0
    %5757 = vmatpush1.msra.mxu0 0.0
    %5758 = vmatprep.subr.mxu0 0.0
    %5759 = vmatpush1.msra.mxu0 0.0
    %5760 = vmatprep.subr.mxu0 0.0
    %5761 = vmatpush1.msra.mxu0 0.0
    %5762 = vmatprep.subr.mxu0 0.0
    %5763 = vmatpush1.msra.mxu0 0.0
    %5764 = vmatprep.subr.mxu0 0.0
    %5765 = vmatpush1.msra.mxu0 0.0
    %5766 = vmatprep.subr.mxu0 0.0
    %5767 = vmatpush1.msra.mxu0 %v5736
    %5768 = vmatprep.subr.mxu0 0.0
    %5769 = vmatpush1.msra.mxu0 %v5337
    %5770 = vmatprep.subr.mxu0 0.0
    %5771 = vmatpush2.msra.mxu0 0.0
    %5772 = vmatprep.subr.mxu0 0.0
    %5773 = vmatpush2.msra.mxu0 0.0
    %5774 = vmatprep.subr.mxu0 0.0
    %5775 = vmatpush2.msra.mxu0 0.0
    %5776 = vmatprep.subr.mxu0 0.0
    %5777 = vmatpush2.msra.mxu0 0.0
    %5778 = vmatprep.subr.mxu0 0.0
    %5779 = vmatpush2.msra.mxu0 0.0
    %5780 = vmatprep.subr.mxu0 0.0
    %5781 = vmatpush2.msra.mxu0 0.0
    %5782 = vmatprep.subr.mxu0 0.0
    %5783 = vmatpush2.msra.mxu0 0.0
    %5784 = vmatprep.subr.mxu0 0.0
    %5785 = vmatpush2.msra.mxu0 0.0
    %5786 = vmatprep.subr.mxu0 0.0
    %5787 = vmatpush2.msra.mxu0 0.0
    %5788 = vmatprep.subr.mxu0 0.0
    %5789 = vmatpush2.msra.mxu0 0.0
    %5790 = vmatprep.subr.mxu0 0.0
    %5791 = vmatpush2.msra.mxu0 0.0
    %5792 = vmatprep.subr.mxu0 0.0
    %5793 = vmatpush2.msra.mxu0 0.0
    %5794 = vmatprep.subr.mxu0 0.0
    %5795 = vmatpush2.msra.mxu0 0.0
    %5796 = vmatprep.subr.mxu0 0.0
    %5797 = vmatpush2.msra.mxu0 0.0
    %5798 = vmatprep.subr.mxu0 0.0
    %5799 = vmatpush2.msra.mxu0 0.0
    %5800 = vmatprep.subr.mxu0 0.0
    %5801 = vmatpush2.msra.mxu0 0.0
    %5802 = vmatprep.mubr.f32.mxu0 0.0
    %5803 = vmatmul.mubr.f32.gmra.mxu0 %v3182
    %v5804 = vpop.f32.mrf.mxu0
    %v5805 = vadd.f32 0.0, %v5804
    %v5806 = vpop.f32.mrf.mxu0
    %5807 = vmatprep.mubr.f32.mxu0 0.0
    %5808 = vmatmul.mubr.f32.gmra.mxu0 %v3185
    %v5809 = vpop.f32.mrf.mxu0
    %v5810 = vadd.f32 0.0, %v5809
    %v5811 = vpop.f32.mrf.mxu0
    %5812 = vdwg.mxu0
    %v5814 = vsel %vm473, %v5405, 0
    %5816 = vmatprep.subr.mxu0 0.0
    %5817 = vmatpush1.msra.mxu0 0.0
    %5818 = vmatprep.subr.mxu0 0.0
    %5819 = vmatpush1.msra.mxu0 0.0
    %5820 = vmatprep.subr.mxu0 0.0
    %5821 = vmatpush1.msra.mxu0 0.0
    %5822 = vmatprep.subr.mxu0 0.0
    %5823 = vmatpush1.msra.mxu0 0.0
    %5824 = vmatprep.subr.mxu0 0.0
    %5825 = vmatpush1.msra.mxu0 0.0
    %5826 = vmatprep.subr.mxu0 0.0
    %5827 = vmatpush1.msra.mxu0 0.0
    %5828 = vmatprep.subr.mxu0 0.0
    %5829 = vmatpush1.msra.mxu0 0.0
    %5830 = vmatprep.subr.mxu0 0.0
    %5831 = vmatpush1.msra.mxu0 0.0
    %5832 = vmatprep.subr.mxu0 0.0
    %5833 = vmatpush1.msra.mxu0 0.0
    %5834 = vmatprep.subr.mxu0 0.0
    %5835 = vmatpush1.msra.mxu0 0.0
    %5836 = vmatprep.subr.mxu0 0.0
    %5837 = vmatpush1.msra.mxu0 0.0
    %5838 = vmatprep.subr.mxu0 0.0
    %5839 = vmatpush1.msra.mxu0 0.0
    %5840 = vmatprep.subr.mxu0 0.0
    %5841 = vmatpush1.msra.mxu0 0.0
    %5842 = vmatprep.subr.mxu0 0.0
    %5843 = vmatpush1.msra.mxu0 0.0
    %5844 = vmatprep.subr.mxu0 0.0
    %5845 = vmatpush1.msra.mxu0 %v5814
    %5846 = vmatprep.subr.mxu0 0.0
    %5847 = vmatpush1.msra.mxu0 %v5338
    %5848 = vmatprep.subr.mxu0 0.0
    %5849 = vmatpush2.msra.mxu0 0.0
    %5850 = vmatprep.subr.mxu0 0.0
    %5851 = vmatpush2.msra.mxu0 0.0
    %5852 = vmatprep.subr.mxu0 0.0
    %5853 = vmatpush2.msra.mxu0 0.0
    %5854 = vmatprep.subr.mxu0 0.0
    %5855 = vmatpush2.msra.mxu0 0.0
    %5856 = vmatprep.subr.mxu0 0.0
    %5857 = vmatpush2.msra.mxu0 0.0
    %5858 = vmatprep.subr.mxu0 0.0
    %5859 = vmatpush2.msra.mxu0 0.0
    %5860 = vmatprep.subr.mxu0 0.0
    %5861 = vmatpush2.msra.mxu0 0.0
    %5862 = vmatprep.subr.mxu0 0.0
    %5863 = vmatpush2.msra.mxu0 0.0
    %5864 = vmatprep.subr.mxu0 0.0
    %5865 = vmatpush2.msra.mxu0 0.0
    %5866 = vmatprep.subr.mxu0 0.0
    %5867 = vmatpush2.msra.mxu0 0.0
    %5868 = vmatprep.subr.mxu0 0.0
    %5869 = vmatpush2.msra.mxu0 0.0
    %5870 = vmatprep.subr.mxu0 0.0
    %5871 = vmatpush2.msra.mxu0 0.0
    %5872 = vmatprep.subr.mxu0 0.0
    %5873 = vmatpush2.msra.mxu0 0.0
    %5874 = vmatprep.subr.mxu0 0.0
    %5875 = vmatpush2.msra.mxu0 0.0
    %5876 = vmatprep.subr.mxu0 0.0
    %5877 = vmatpush2.msra.mxu0 0.0
    %5878 = vmatprep.subr.mxu0 0.0
    %5879 = vmatpush2.msra.mxu0 0.0
    %5880 = vmatprep.mubr.f32.mxu0 0.0
    %5881 = vmatmul.mubr.f32.gmra.mxu0 %v3269
    %v5882 = vpop.f32.mrf.mxu0
    %v5883 = vadd.f32 0.0, %v5882
    %v5884 = vpop.f32.mrf.mxu0
    %5885 = vmatprep.mubr.f32.mxu0 0.0
    %5886 = vmatmul.mubr.f32.gmra.mxu0 %v3272
    %v5887 = vpop.f32.mrf.mxu0
    %v5888 = vadd.f32 0.0, %v5887
    %v5889 = vpop.f32.mrf.mxu0
    %5890 = vdwg.mxu0
    %v5892 = vsel %vm473, %v5402, 0
    %5894 = vmatprep.subr.mxu0 0.0
    %5895 = vmatpush1.msra.mxu0 0.0
    %5896 = vmatprep.subr.mxu0 0.0
    %5897 = vmatpush1.msra.mxu0 0.0
    %5898 = vmatprep.subr.mxu0 0.0
    %5899 = vmatpush1.msra.mxu0 0.0
    %5900 = vmatprep.subr.mxu0 0.0
    %5901 = vmatpush1.msra.mxu0 0.0
    %5902 = vmatprep.subr.mxu0 0.0
    %5903 = vmatpush1.msra.mxu0 0.0
    %5904 = vmatprep.subr.mxu0 0.0
    %5905 = vmatpush1.msra.mxu0 0.0
    %5906 = vmatprep.subr.mxu0 0.0
    %5907 = vmatpush1.msra.mxu0 0.0
    %5908 = vmatprep.subr.mxu0 0.0
    %5909 = vmatpush1.msra.mxu0 0.0
    %5910 = vmatprep.subr.mxu0 0.0
    %5911 = vmatpush1.msra.mxu0 0.0
    %5912 = vmatprep.subr.mxu0 0.0
    %5913 = vmatpush1.msra.mxu0 0.0
    %5914 = vmatprep.subr.mxu0 0.0
    %5915 = vmatpush1.msra.mxu0 0.0
    %5916 = vmatprep.subr.mxu0 0.0
    %5917 = vmatpush1.msra.mxu0 0.0
    %5918 = vmatprep.subr.mxu0 0.0
    %5919 = vmatpush1.msra.mxu0 0.0
    %5920 = vmatprep.subr.mxu0 0.0
    %5921 = vmatpush1.msra.mxu0 0.0
    %5922 = vmatprep.subr.mxu0 0.0
    %5923 = vmatpush1.msra.mxu0 %v5892
    %5924 = vmatprep.subr.mxu0 0.0
    %5925 = vmatpush1.msra.mxu0 %v5339
    %5926 = vmatprep.subr.mxu0 0.0
    %5927 = vmatpush2.msra.mxu0 0.0
    %5928 = vmatprep.subr.mxu0 0.0
    %5929 = vmatpush2.msra.mxu0 0.0
    %5930 = vmatprep.subr.mxu0 0.0
    %5931 = vmatpush2.msra.mxu0 0.0
    %5932 = vmatprep.subr.mxu0 0.0
    %5933 = vmatpush2.msra.mxu0 0.0
    %5934 = vmatprep.subr.mxu0 0.0
    %5935 = vmatpush2.msra.mxu0 0.0
    %5936 = vmatprep.subr.mxu0 0.0
    %5937 = vmatpush2.msra.mxu0 0.0
    %5938 = vmatprep.subr.mxu0 0.0
    %5939 = vmatpush2.msra.mxu0 0.0
    %5940 = vmatprep.subr.mxu0 0.0
    %5941 = vmatpush2.msra.mxu0 0.0
    %5942 = vmatprep.subr.mxu0 0.0
    %5943 = vmatpush2.msra.mxu0 0.0
    %5944 = vmatprep.subr.mxu0 0.0
    %5945 = vmatpush2.msra.mxu0 0.0
    %5946 = vmatprep.subr.mxu0 0.0
    %5947 = vmatpush2.msra.mxu0 0.0
    %5948 = vmatprep.subr.mxu0 0.0
    %5949 = vmatpush2.msra.mxu0 0.0
    %5950 = vmatprep.subr.mxu0 0.0
    %5951 = vmatpush2.msra.mxu0 0.0
    %5952 = vmatprep.subr.mxu0 0.0
    %5953 = vmatpush2.msra.mxu0 0.0
    %5954 = vmatprep.subr.mxu0 0.0
    %5955 = vmatpush2.msra.mxu0 0.0
    %5956 = vmatprep.subr.mxu0 0.0
    %5957 = vmatpush2.msra.mxu0 0.0
    %5958 = vmatprep.mubr.f32.mxu0 0.0
    %5959 = vmatmul.mubr.f32.gmra.mxu0 %v3356
    %v5960 = vpop.f32.mrf.mxu0
    %v5961 = vadd.f32 0.0, %v5960
    %v5962 = vpop.f32.mrf.mxu0
    %5963 = vmatprep.mubr.f32.mxu0 0.0
    %5964 = vmatmul.mubr.f32.gmra.mxu0 %v3359
    %v5965 = vpop.f32.mrf.mxu0
    %v5966 = vadd.f32 0.0, %v5965
    %v5967 = vpop.f32.mrf.mxu0
    %5968 = vdwg.mxu0
    %v5970 = vsel %vm473, %v5406, 0
    %5972 = vmatprep.subr.mxu0 0.0
    %5973 = vmatpush1.msra.mxu0 0.0
    %5974 = vmatprep.subr.mxu0 0.0
    %5975 = vmatpush1.msra.mxu0 0.0
    %5976 = vmatprep.subr.mxu0 0.0
    %5977 = vmatpush1.msra.mxu0 0.0
    %5978 = vmatprep.subr.mxu0 0.0
    %5979 = vmatpush1.msra.mxu0 0.0
    %5980 = vmatprep.subr.mxu0 0.0
    %5981 = vmatpush1.msra.mxu0 0.0
    %5982 = vmatprep.subr.mxu0 0.0
    %5983 = vmatpush1.msra.mxu0 0.0
    %5984 = vmatprep.subr.mxu0 0.0
    %5985 = vmatpush1.msra.mxu0 0.0
    %5986 = vmatprep.subr.mxu0 0.0
    %5987 = vmatpush1.msra.mxu0 0.0
    %5988 = vmatprep.subr.mxu0 0.0
    %5989 = vmatpush1.msra.mxu0 0.0
    %5990 = vmatprep.subr.mxu0 0.0
    %5991 = vmatpush1.msra.mxu0 0.0
    %5992 = vmatprep.subr.mxu0 0.0
    %5993 = vmatpush1.msra.mxu0 0.0
    %5994 = vmatprep.subr.mxu0 0.0
    %5995 = vmatpush1.msra.mxu0 0.0
    %5996 = vmatprep.subr.mxu0 0.0
    %5997 = vmatpush1.msra.mxu0 0.0
    %5998 = vmatprep.subr.mxu0 0.0
    %5999 = vmatpush1.msra.mxu0 0.0
    %6000 = vmatprep.subr.mxu0 0.0
    %6001 = vmatpush1.msra.mxu0 %v5970
    %6002 = vmatprep.subr.mxu0 0.0
    %6003 = vmatpush1.msra.mxu0 %v5340
    %6004 = vmatprep.subr.mxu0 0.0
    %6005 = vmatpush2.msra.mxu0 0.0
    %6006 = vmatprep.subr.mxu0 0.0
    %6007 = vmatpush2.msra.mxu0 0.0
    %6008 = vmatprep.subr.mxu0 0.0
    %6009 = vmatpush2.msra.mxu0 0.0
    %6010 = vmatprep.subr.mxu0 0.0
    %6011 = vmatpush2.msra.mxu0 0.0
    %6012 = vmatprep.subr.mxu0 0.0
    %6013 = vmatpush2.msra.mxu0 0.0
    %6014 = vmatprep.subr.mxu0 0.0
    %6015 = vmatpush2.msra.mxu0 0.0
    %6016 = vmatprep.subr.mxu0 0.0
    %6017 = vmatpush2.msra.mxu0 0.0
    %6018 = vmatprep.subr.mxu0 0.0
    %6019 = vmatpush2.msra.mxu0 0.0
    %6020 = vmatprep.subr.mxu0 0.0
    %6021 = vmatpush2.msra.mxu0 0.0
    %6022 = vmatprep.subr.mxu0 0.0
    %6023 = vmatpush2.msra.mxu0 0.0
    %6024 = vmatprep.subr.mxu0 0.0
    %6025 = vmatpush2.msra.mxu0 0.0
    %6026 = vmatprep.subr.mxu0 0.0
    %6027 = vmatpush2.msra.mxu0 0.0
    %6028 = vmatprep.subr.mxu0 0.0
    %6029 = vmatpush2.msra.mxu0 0.0
    %6030 = vmatprep.subr.mxu0 0.0
    %6031 = vmatpush2.msra.mxu0 0.0
    %6032 = vmatprep.subr.mxu0 0.0
    %6033 = vmatpush2.msra.mxu0 0.0
    %6034 = vmatprep.subr.mxu0 0.0
    %6035 = vmatpush2.msra.mxu0 0.0
    %6036 = vmatprep.mubr.f32.mxu0 0.0
    %6037 = vmatmul.mubr.f32.gmra.mxu0 %v3443
    %v6038 = vpop.f32.mrf.mxu0
    %v6039 = vadd.f32 0.0, %v6038
    %v6040 = vpop.f32.mrf.mxu0
    %6041 = vmatprep.mubr.f32.mxu0 0.0
    %6042 = vmatmul.mubr.f32.gmra.mxu0 %v3446
    %v6043 = vpop.f32.mrf.mxu0
    %v6044 = vadd.f32 0.0, %v6043
    %v6045 = vpop.f32.mrf.mxu0
    %6046 = vdwg.mxu0
    %v6047 = vsub.f32 %v5407, %v5493
    %v6048 = vsub.f32 %v5408, %v5498
    %v6049 = vsub.f32 %v5409, %v5571
    %v6050 = vsub.f32 %v5410, %v5576
    %v6051 = vsub.f32 %v5411, %v5649
    %v6052 = vsub.f32 %v5412, %v5654
    %v6053 = vsub.f32 %v5413, %v5727
    %v6054 = vsub.f32 %v5414, %v5732
    %v6055 = vsub.f32 %v5415, %v5805
    %v6056 = vsub.f32 %v5416, %v5810
    %v6057 = vsub.f32 %v5417, %v5883
    %v6058 = vsub.f32 %v5418, %v5888
    %v6059 = vsub.f32 %v5419, %v5961
    %v6060 = vsub.f32 %v5420, %v5966
    %v6061 = vsub.f32 %v5421, %v6039
    %v6062 = vsub.f32 %v5422, %v6044
    %6063 = vst [vmem:[#allocation3] sm:$0xff] %v6047
    %6064 = vst [vmem:[#allocation3 + $0x8] sm:$0xff] %v6048
    %6065 = vst [vmem:[#allocation3 + $0x10] sm:$0xff] %v6049
    %6066 = vst [vmem:[#allocation3 + $0x18] sm:$0xff] %v6050
    %6067 = vst [vmem:[#allocation3 + $0x20] sm:$0xff] %v6051
    %6068 = vst [vmem:[#allocation3 + $0x28] sm:$0xff] %v6052
    %6069 = vst [vmem:[#allocation3 + $0x30] sm:$0xff] %v6053
    %6070 = vst [vmem:[#allocation3 + $0x38] sm:$0xff] %v6054
    %6071 = vst [vmem:[#allocation3 + $0x40] sm:$0xff] %v6055
    %6072 = vst [vmem:[#allocation3 + $0x48] sm:$0xff] %v6056
    %6073 = vst [vmem:[#allocation3 + $0x50] sm:$0xff] %v6057
    %6074 = vst [vmem:[#allocation3 + $0x58] sm:$0xff] %v6058
    %6075 = vst [vmem:[#allocation3 + $0x60] sm:$0xff] %v6059
    %6076 = vst [vmem:[#allocation3 + $0x68] sm:$0xff] %v6060
    %6077 = vst [vmem:[#allocation3 + $0x70] sm:$0xff] %v6061
    %6078 = vst [vmem:[#allocation3 + $0x78] sm:$0xff] %v6062
    // Predicated region
    $region18: #{tpu_custom_call.1} parent=1 // pred_check
      _
    $region19: #{tpu_custom_call.1} parent=1 // pred_check_branch
      %6080 = sbr.rel (0) target = $region21
    $region20: #{tpu_custom_call.1} parent=1 // pred_region
      %s6082 = ssub.s32 2048, 2048
      %6083 = vsyncadd [#allocation4], %s6082
      %s6084 = sshll.u32 [#allocation3], 4
      %s6085 = int_to_ptr.vmem [resolvable:$true] %s6084
      %6090 = dma.vmem_to_hbm [thread:$0]  %s6085, 2048, %s4, [#allocation4], 128, 128, 8
    $region21: #{tpu_custom_call.1} parent=1 // pred_fallthru
      _
    // Predicated region
    $region22: #{tpu_custom_call.1} parent=1 // pred_check
      _
    $region23: #{tpu_custom_call.1} parent=1 // pred_check_branch
      %6092 = sbr.rel (0) target = $region25
    $region24: #{tpu_custom_call.1} parent=1 // pred_region
      %6093 = dma.done [#allocation4], 2048
    $region25: #{tpu_custom_call.1} parent=1 // pred_fallthru
      _
    %6094 = vsyncpa [#allocation4], 1

</llo_original>
